<compile_context>
chip_gen: v5e
topology: v5e:2x2
jax: 0.10.0
libtpu: 0.0.40
codegen_flags: <defaults>
</compile_context>

<pallas_src>
import functools

import jax
import jax.numpy as jnp
from jax import lax
from jax.experimental import pallas as pl
from jax.experimental.pallas import tpu as pltpu

EPS = 1e-5
K = 7
PAD = 3


def _round_up(x, m):
    return ((x + m - 1) // m) * m


# ---------------------------------------------------------------------------
# Fused kernel: one grid step == one batch image.
# ---------------------------------------------------------------------------
def _spa_cnn_kernel(x_ref, w1_ref, w2_ref, s1_ref, b1_ref, s2_ref, b2_ref,
                    mask_ref, o_ref, patch_ref, *, shifts, c_p, cm_p):
    x = x_ref[...]                                       # [C_p, L] f32 (padded img)

    # ---- stage 1: in-kernel im2col of the zero-padded input ----------------
    # tap (ky,kx) == constant lane shift of the flattened padded image.
    for t, sh in enumerate(shifts):
        patch_ref[t * c_p:(t + 1) * c_p, :] = pltpu.roll(x, sh, axis=1)
    k1 = len(shifts) * c_p
    h = jnp.dot(w1_ref[...], patch_ref[0:k1, :],
                preferred_element_type=jnp.float32)      # [Cm_p, L]
    h = jnp.maximum(h * s1_ref[...] + b1_ref[...], 0.0)  # folded bias+BN, ReLU
    # zero the padding ring (+ lane padding) so conv2 sees true zero padding
    h = h * mask_ref[...]

    # ---- stage 2: in-kernel im2col of the stage-1 activation ---------------
    for t, sh in enumerate(shifts):
        patch_ref[t * cm_p:(t + 1) * cm_p, :] = pltpu.roll(h, sh, axis=1)
    k2 = len(shifts) * cm_p
    y = jnp.dot(w2_ref[...], patch_ref[0:k2, :],
                preferred_element_type=jnp.float32)      # [C_p, L]
    att = jax.nn.sigmoid(y * s2_ref[...] + b2_ref[...])  # spatial attention
    o_ref[...] = (x * att).astype(o_ref.dtype)           # gate the input


# ---------------------------------------------------------------------------
# forward pass
# ---------------------------------------------------------------------------
def spa_cnn_forward(x_nchw, params):
    B, C, H, W = x_nchw.shape
    Cm = params["w1"].shape[0]                  # mid channels
    Hp, Wp = H + 2 * PAD, W + 2 * PAD           # zero-padded spatial dims
    L = _round_up(Hp * Wp, 128)                 # lane-dense pixel dimension
    C_p, Cm_p = _round_up(C, 8), _round_up(Cm, 8)
    cpat = max(C_p, Cm_p)

    # ---- input: zero-pad spatially, flatten pixels onto lanes --------------
    xf = x_nchw.astype(jnp.float32)
    x_pad = jnp.pad(xf, ((0, 0), (0, 0), (PAD, PAD), (PAD, PAD)))
    x_flat = x_pad.reshape(B, C, Hp * Wp)
    x_flat = jnp.pad(x_flat, ((0, 0), (0, C_p - C), (0, L - Hp * Wp)))
    x_rows = x_flat.reshape(B * C_p, L)

    # ---- fold conv bias + eval-mode BatchNorm into per-channel scale/shift --
    def _fold(g, beta, m, v, bias, rows):
        scale = g * lax.rsqrt(v + EPS)
        shift = beta + (bias - m) * scale
        col = lambda u: jnp.pad(u.astype(jnp.float32),
                                (0, rows - u.shape[0])).reshape(rows, 1)
        return col(scale), col(shift)

    s1, t1 = _fold(params["g1"], params["beta1"], params["m1"], params["v1"],
                   params["b1"], Cm_p)
    s2, t2 = _fold(params["g2"], params["beta2"], params["m2"], params["v2"],
                   params["b2"], C_p)

    # ---- weights OIHW -> [C_out_p, 49 * C_in_p] (tap-major columns) ---------
    def _wmat(w, cout_p, cin_p):
        cout, cin = w.shape[:2]
        m = jnp.transpose(w.reshape(cout, cin, K * K), (0, 2, 1))   # [co,t,ci]
        m = jnp.pad(m, ((0, cout_p - cout), (0, 0), (0, cin_p - cin)))
        return m.reshape(cout_p, K * K * cin_p).astype(jnp.float32)

    w1m = _wmat(params["w1"].astype(jnp.float32), Cm_p, C_p)
    w2m = _wmat(params["w2"].astype(jnp.float32), C_p, Cm_p)

    # ---- interior mask: 1.0 inside the original HxW window, else 0.0 -------
    pos = jnp.arange(L)
    row, col = pos // Wp, pos % Wp
    inside = ((row >= PAD) & (row < PAD + H) &
              (col >= PAD) & (col < PAD + W) & (pos < Hp * Wp))
    mask = jnp.broadcast_to(inside.astype(jnp.float32)[None, :], (Cm_p, L))

    # ---- static per-tap lane shifts in the flattened padded image ----------
    shifts = tuple(int((-((ky - PAD) * Wp + (kx - PAD))) % L)
                   for ky in range(K) for kx in range(K))

    kernel = functools.partial(_spa_cnn_kernel, shifts=shifts,
                               c_p=C_p, cm_p=Cm_p)

    def _resident(arr):                      # small, VMEM-resident every step
        return pl.BlockSpec(arr.shape, lambda i: (0, 0))

    out_rows = pl.pallas_call(
        kernel,
        out_shape=jax.ShapeDtypeStruct((B * C_p, L), jnp.float32),
        grid_spec=pltpu.PrefetchScalarGridSpec(
            num_scalar_prefetch=0,
            grid=(B,),
            in_specs=[pl.BlockSpec((C_p, L), lambda i: (i, 0)),   # per-image x
                      _resident(w1m), _resident(w2m),
                      _resident(s1), _resident(t1),
                      _resident(s2), _resident(t2),
                      _resident(mask)],
            out_specs=pl.BlockSpec((C_p, L), lambda i: (i, 0)),
            scratch_shapes=[pltpu.VMEM((K * K * cpat, L), jnp.float32)]),
        compiler_params=pltpu.CompilerParams(
            dimension_semantics=("parallel",)),
    )(x_rows, w1m, w2m, s1, t1, s2, t2, mask)

    out = out_rows.reshape(B, C_p, L)[:, :C, :Hp * Wp]
    out = out.reshape(B, C, Hp, Wp)[:, :, PAD:PAD + H, PAD:PAD + W]
    return out.astype(x_nchw.dtype)


# ---------------------------------------------------------------------------
# Pure-JAX reference (for correctness check)
# ---------------------------------------------------------------------------
def spa_cnn_reference(x, p):
    x = x.astype(jnp.float32)

    def conv(z, w, b):
        y = lax.conv_general_dilated(
            z, w, window_strides=(1, 1), padding=[(PAD, PAD), (PAD, PAD)],
            dimension_numbers=("NCHW", "OIHW", "NCHW"),
            precision=lax.Precision.HIGHEST)
        return y + b.reshape(1, -1, 1, 1)

    def bn(z, g, beta, m, v):
        g = g.reshape(1, -1, 1, 1); beta = beta.reshape(1, -1, 1, 1)
        m = m.reshape(1, -1, 1, 1); v = v.reshape(1, -1, 1, 1)
        return (z - m) * (g * lax.rsqrt(v + EPS)) + beta

    h = jnp.maximum(
        bn(conv(x, p["w1"], p["b1"]), p["g1"], p["beta1"], p["m1"], p["v1"]),
        0.0)
    att = jax.nn.sigmoid(
        bn(conv(h, p["w2"], p["b2"]), p["g2"], p["beta2"], p["m2"], p["v2"]))
    return x * att


# ---------------------------------------------------------------------------
if __name__ == "__main__":
    B, C, H, W = 2, 4, 16, 16          # [bs, n_channels, n_second, de_features]
    channel_rate = 1
    Cm = C // channel_rate

    key = jax.random.PRNGKey(0)
    ks = jax.random.split(key, 13)
    x = jax.random.normal(ks[0], (B, C, H, W), jnp.float32)

    # Deterministic synthetic parameters (BatchNorm in eval mode: running stats)
    params = dict(
        w1=0.1 * jax.random.normal(ks[1], (Cm, C, K, K), jnp.float32),
        b1=0.1 * jax.random.normal(ks[2], (Cm,), jnp.float32),
        g1=1.0 + 0.1 * jax.random.normal(ks[3], (Cm,), jnp.float32),
        beta1=0.1 * jax.random.normal(ks[4], (Cm,), jnp.float32),
        m1=0.1 * jax.random.normal(ks[5], (Cm,), jnp.float32),
        v1=1.0 + 0.1 * jnp.abs(jax.random.normal(ks[6], (Cm,), jnp.float32)),
        w2=0.1 * jax.random.normal(ks[7], (C, Cm, K, K), jnp.float32),
        b2=0.1 * jax.random.normal(ks[8], (C,), jnp.float32),
        g2=1.0 + 0.1 * jax.random.normal(ks[9], (C,), jnp.float32),
        beta2=0.1 * jax.random.normal(ks[10], (C,), jnp.float32),
        m2=0.1 * jax.random.normal(ks[11], (C,), jnp.float32),
        v2=1.0 + 0.1 * jnp.abs(jax.random.normal(ks[12], (C,), jnp.float32)),
    )

    out = jax.jit(spa_cnn_forward)(x, params)
    out = jax.block_until_ready(out)

    ref = spa_cnn_reference(x, params)
    assert out.shape == x.shape and out.dtype == x.dtype
    max_err = float(jnp.max(jnp.abs(out - ref)))
    assert jnp.allclose(out, ref, rtol=2e-2, atol=2e-2), f"max_err={max_err}"

    print("KERNEL_OK")
</pallas_src>

<mosaic_0001>
module attributes {stable_mosaic.version = 11 : i64} {
  func.func @_spa_cnn_kernel(%arg0: i32, %arg1: memref<8x512xf32, #tpu.memory_space<vmem>>, %arg2: memref<8x392xf32, #tpu.memory_space<vmem>>, %arg3: memref<8x392xf32, #tpu.memory_space<vmem>>, %arg4: memref<8x1xf32, #tpu.memory_space<vmem>>, %arg5: memref<8x1xf32, #tpu.memory_space<vmem>>, %arg6: memref<8x1xf32, #tpu.memory_space<vmem>>, %arg7: memref<8x1xf32, #tpu.memory_space<vmem>>, %arg8: memref<8x512xf32, #tpu.memory_space<vmem>>, %arg9: memref<8x512xf32, #tpu.memory_space<vmem>>, %arg10: memref<392x512xf32, #tpu.memory_space<vmem>>) attributes {dimension_semantics = [#tpu.dimension_semantics<parallel>], iteration_bounds = array<i64: 2>, scalar_prefetch = 0 : i64, scratch_operands = 1 : i64, tpu.core_type = #tpu.core_type<tc>, window_params = [{transform_indices = @transform_0, window_bounds = array<i64: 8, 512>}, {pipeline_mode = #tpu.pipeline_mode<synchronous>, transform_indices = @transform_1, window_bounds = array<i64: 8, 392>}, {pipeline_mode = #tpu.pipeline_mode<synchronous>, transform_indices = @transform_2, window_bounds = array<i64: 8, 392>}, {pipeline_mode = #tpu.pipeline_mode<synchronous>, transform_indices = @transform_3, window_bounds = array<i64: 8, 1>}, {pipeline_mode = #tpu.pipeline_mode<synchronous>, transform_indices = @transform_4, window_bounds = array<i64: 8, 1>}, {pipeline_mode = #tpu.pipeline_mode<synchronous>, transform_indices = @transform_5, window_bounds = array<i64: 8, 1>}, {pipeline_mode = #tpu.pipeline_mode<synchronous>, transform_indices = @transform_6, window_bounds = array<i64: 8, 1>}, {pipeline_mode = #tpu.pipeline_mode<synchronous>, transform_indices = @transform_7, window_bounds = array<i64: 8, 512>}, {transform_indices = @transform_8, window_bounds = array<i64: 8, 512>}]} {
    %c0 = arith.constant 0 : index
    %c0_0 = arith.constant 0 : index
    %0 = vector.load %arg1[%c0, %c0_0] : memref<8x512xf32, #tpu.memory_space<vmem>>, vector<8x512xf32>
    %c69_i32 = arith.constant 69 : i32
    %1 = tpu.dynamic_rotate %0 by %c69_i32 dim 1 : vector<8x512xf32>, i32 -> vector<8x512xf32>
    %c0_1 = arith.constant 0 : index
    %c0_2 = arith.constant 0 : index
    %2 = vector.load %arg10[%c0_1, %c0_2] : memref<392x512xf32, #tpu.memory_space<vmem>>, vector<8x512xf32>
    tpu.vector_store %arg10[%c0_1, %c0_2], %1 {strides = array<i32>} : memref<392x512xf32, #tpu.memory_space<vmem>>, vector<8x512xf32>,
    %c68_i32 = arith.constant 68 : i32
    %3 = tpu.dynamic_rotate %0 by %c68_i32 dim 1 : vector<8x512xf32>, i32 -> vector<8x512xf32>
    %c8 = arith.constant 8 : index
    %c0_3 = arith.constant 0 : index
    %4 = vector.load %arg10[%c8, %c0_3] : memref<392x512xf32, #tpu.memory_space<vmem>>, vector<8x512xf32>
    tpu.vector_store %arg10[%c8, %c0_3], %3 {strides = array<i32>} : memref<392x512xf32, #tpu.memory_space<vmem>>, vector<8x512xf32>,
    %c67_i32 = arith.constant 67 : i32
    %5 = tpu.dynamic_rotate %0 by %c67_i32 dim 1 : vector<8x512xf32>, i32 -> vector<8x512xf32>
    %c16 = arith.constant 16 : index
    %c0_4 = arith.constant 0 : index
    %6 = vector.load %arg10[%c16, %c0_4] : memref<392x512xf32, #tpu.memory_space<vmem>>, vector<8x512xf32>
    tpu.vector_store %arg10[%c16, %c0_4], %5 {strides = array<i32>} : memref<392x512xf32, #tpu.memory_space<vmem>>, vector<8x512xf32>,
    %c66_i32 = arith.constant 66 : i32
    %7 = tpu.dynamic_rotate %0 by %c66_i32 dim 1 : vector<8x512xf32>, i32 -> vector<8x512xf32>
    %c24 = arith.constant 24 : index
    %c0_5 = arith.constant 0 : index
    %8 = vector.load %arg10[%c24, %c0_5] : memref<392x512xf32, #tpu.memory_space<vmem>>, vector<8x512xf32>
    tpu.vector_store %arg10[%c24, %c0_5], %7 {strides = array<i32>} : memref<392x512xf32, #tpu.memory_space<vmem>>, vector<8x512xf32>,
    %c65_i32 = arith.constant 65 : i32
    %9 = tpu.dynamic_rotate %0 by %c65_i32 dim 1 : vector<8x512xf32>, i32 -> vector<8x512xf32>
    %c32 = arith.constant 32 : index
    %c0_6 = arith.constant 0 : index
    %10 = vector.load %arg10[%c32, %c0_6] : memref<392x512xf32, #tpu.memory_space<vmem>>, vector<8x512xf32>
    tpu.vector_store %arg10[%c32, %c0_6], %9 {strides = array<i32>} : memref<392x512xf32, #tpu.memory_space<vmem>>, vector<8x512xf32>,
    %c64_i32 = arith.constant 64 : i32
    %11 = tpu.dynamic_rotate %0 by %c64_i32 dim 1 : vector<8x512xf32>, i32 -> vector<8x512xf32>
    %c40 = arith.constant 40 : index
    %c0_7 = arith.constant 0 : index
    %12 = vector.load %arg10[%c40, %c0_7] : memref<392x512xf32, #tpu.memory_space<vmem>>, vector<8x512xf32>
    tpu.vector_store %arg10[%c40, %c0_7], %11 {strides = array<i32>} : memref<392x512xf32, #tpu.memory_space<vmem>>, vector<8x512xf32>,
    %c63_i32 = arith.constant 63 : i32
    %13 = tpu.dynamic_rotate %0 by %c63_i32 dim 1 : vector<8x512xf32>, i32 -> vector<8x512xf32>
    %c48 = arith.constant 48 : index
    %c0_8 = arith.constant 0 : index
    %14 = vector.load %arg10[%c48, %c0_8] : memref<392x512xf32, #tpu.memory_space<vmem>>, vector<8x512xf32>
    tpu.vector_store %arg10[%c48, %c0_8], %13 {strides = array<i32>} : memref<392x512xf32, #tpu.memory_space<vmem>>, vector<8x512xf32>,
    %c47_i32 = arith.constant 47 : i32
    %15 = tpu.dynamic_rotate %0 by %c47_i32 dim 1 : vector<8x512xf32>, i32 -> vector<8x512xf32>
    %c56 = arith.constant 56 : index
    %c0_9 = arith.constant 0 : index
    %16 = vector.load %arg10[%c56, %c0_9] : memref<392x512xf32, #tpu.memory_space<vmem>>, vector<8x512xf32>
    tpu.vector_store %arg10[%c56, %c0_9], %15 {strides = array<i32>} : memref<392x512xf32, #tpu.memory_space<vmem>>, vector<8x512xf32>,
    %c46_i32 = arith.constant 46 : i32
    %17 = tpu.dynamic_rotate %0 by %c46_i32 dim 1 : vector<8x512xf32>, i32 -> vector<8x512xf32>
    %c64 = arith.constant 64 : index
    %c0_10 = arith.constant 0 : index
    %18 = vector.load %arg10[%c64, %c0_10] : memref<392x512xf32, #tpu.memory_space<vmem>>, vector<8x512xf32>
    tpu.vector_store %arg10[%c64, %c0_10], %17 {strides = array<i32>} : memref<392x512xf32, #tpu.memory_space<vmem>>, vector<8x512xf32>,
    %c45_i32 = arith.constant 45 : i32
    %19 = tpu.dynamic_rotate %0 by %c45_i32 dim 1 : vector<8x512xf32>, i32 -> vector<8x512xf32>
    %c72 = arith.constant 72 : index
    %c0_11 = arith.constant 0 : index
    %20 = vector.load %arg10[%c72, %c0_11] : memref<392x512xf32, #tpu.memory_space<vmem>>, vector<8x512xf32>
    tpu.vector_store %arg10[%c72, %c0_11], %19 {strides = array<i32>} : memref<392x512xf32, #tpu.memory_space<vmem>>, vector<8x512xf32>,
    %c44_i32 = arith.constant 44 : i32
    %21 = tpu.dynamic_rotate %0 by %c44_i32 dim 1 : vector<8x512xf32>, i32 -> vector<8x512xf32>
    %c80 = arith.constant 80 : index
    %c0_12 = arith.constant 0 : index
    %22 = vector.load %arg10[%c80, %c0_12] : memref<392x512xf32, #tpu.memory_space<vmem>>, vector<8x512xf32>
    tpu.vector_store %arg10[%c80, %c0_12], %21 {strides = array<i32>} : memref<392x512xf32, #tpu.memory_space<vmem>>, vector<8x512xf32>,
    %c43_i32 = arith.constant 43 : i32
    %23 = tpu.dynamic_rotate %0 by %c43_i32 dim 1 : vector<8x512xf32>, i32 -> vector<8x512xf32>
    %c88 = arith.constant 88 : index
    %c0_13 = arith.constant 0 : index
    %24 = vector.load %arg10[%c88, %c0_13] : memref<392x512xf32, #tpu.memory_space<vmem>>, vector<8x512xf32>
    tpu.vector_store %arg10[%c88, %c0_13], %23 {strides = array<i32>} : memref<392x512xf32, #tpu.memory_space<vmem>>, vector<8x512xf32>,
    %c42_i32 = arith.constant 42 : i32
    %25 = tpu.dynamic_rotate %0 by %c42_i32 dim 1 : vector<8x512xf32>, i32 -> vector<8x512xf32>
    %c96 = arith.constant 96 : index
    %c0_14 = arith.constant 0 : index
    %26 = vector.load %arg10[%c96, %c0_14] : memref<392x512xf32, #tpu.memory_space<vmem>>, vector<8x512xf32>
    tpu.vector_store %arg10[%c96, %c0_14], %25 {strides = array<i32>} : memref<392x512xf32, #tpu.memory_space<vmem>>, vector<8x512xf32>,
    %c41_i32 = arith.constant 41 : i32
    %27 = tpu.dynamic_rotate %0 by %c41_i32 dim 1 : vector<8x512xf32>, i32 -> vector<8x512xf32>
    %c104 = arith.constant 104 : index
    %c0_15 = arith.constant 0 : index
    %28 = vector.load %arg10[%c104, %c0_15] : memref<392x512xf32, #tpu.memory_space<vmem>>, vector<8x512xf32>
    tpu.vector_store %arg10[%c104, %c0_15], %27 {strides = array<i32>} : memref<392x512xf32, #tpu.memory_space<vmem>>, vector<8x512xf32>,
    %c25_i32 = arith.constant 25 : i32
    %29 = tpu.dynamic_rotate %0 by %c25_i32 dim 1 : vector<8x512xf32>, i32 -> vector<8x512xf32>
    %c112 = arith.constant 112 : index
    %c0_16 = arith.constant 0 : index
    %30 = vector.load %arg10[%c112, %c0_16] : memref<392x512xf32, #tpu.memory_space<vmem>>, vector<8x512xf32>
    tpu.vector_store %arg10[%c112, %c0_16], %29 {strides = array<i32>} : memref<392x512xf32, #tpu.memory_space<vmem>>, vector<8x512xf32>,
    %c24_i32 = arith.constant 24 : i32
    %31 = tpu.dynamic_rotate %0 by %c24_i32 dim 1 : vector<8x512xf32>, i32 -> vector<8x512xf32>
    %c120 = arith.constant 120 : index
    %c0_17 = arith.constant 0 : index
    %32 = vector.load %arg10[%c120, %c0_17] : memref<392x512xf32, #tpu.memory_space<vmem>>, vector<8x512xf32>
    tpu.vector_store %arg10[%c120, %c0_17], %31 {strides = array<i32>} : memref<392x512xf32, #tpu.memory_space<vmem>>, vector<8x512xf32>,
    %c23_i32 = arith.constant 23 : i32
    %33 = tpu.dynamic_rotate %0 by %c23_i32 dim 1 : vector<8x512xf32>, i32 -> vector<8x512xf32>
    %c128 = arith.constant 128 : index
    %c0_18 = arith.constant 0 : index
    %34 = vector.load %arg10[%c128, %c0_18] : memref<392x512xf32, #tpu.memory_space<vmem>>, vector<8x512xf32>
    tpu.vector_store %arg10[%c128, %c0_18], %33 {strides = array<i32>} : memref<392x512xf32, #tpu.memory_space<vmem>>, vector<8x512xf32>,
    %c22_i32 = arith.constant 22 : i32
    %35 = tpu.dynamic_rotate %0 by %c22_i32 dim 1 : vector<8x512xf32>, i32 -> vector<8x512xf32>
    %c136 = arith.constant 136 : index
    %c0_19 = arith.constant 0 : index
    %36 = vector.load %arg10[%c136, %c0_19] : memref<392x512xf32, #tpu.memory_space<vmem>>, vector<8x512xf32>
    tpu.vector_store %arg10[%c136, %c0_19], %35 {strides = array<i32>} : memref<392x512xf32, #tpu.memory_space<vmem>>, vector<8x512xf32>,
    %c21_i32 = arith.constant 21 : i32
    %37 = tpu.dynamic_rotate %0 by %c21_i32 dim 1 : vector<8x512xf32>, i32 -> vector<8x512xf32>
    %c144 = arith.constant 144 : index
    %c0_20 = arith.constant 0 : index
    %38 = vector.load %arg10[%c144, %c0_20] : memref<392x512xf32, #tpu.memory_space<vmem>>, vector<8x512xf32>
    tpu.vector_store %arg10[%c144, %c0_20], %37 {strides = array<i32>} : memref<392x512xf32, #tpu.memory_space<vmem>>, vector<8x512xf32>,
    %c20_i32 = arith.constant 20 : i32
    %39 = tpu.dynamic_rotate %0 by %c20_i32 dim 1 : vector<8x512xf32>, i32 -> vector<8x512xf32>
    %c152 = arith.constant 152 : index
    %c0_21 = arith.constant 0 : index
    %40 = vector.load %arg10[%c152, %c0_21] : memref<392x512xf32, #tpu.memory_space<vmem>>, vector<8x512xf32>
    tpu.vector_store %arg10[%c152, %c0_21], %39 {strides = array<i32>} : memref<392x512xf32, #tpu.memory_space<vmem>>, vector<8x512xf32>,
    %c19_i32 = arith.constant 19 : i32
    %41 = tpu.dynamic_rotate %0 by %c19_i32 dim 1 : vector<8x512xf32>, i32 -> vector<8x512xf32>
    %c160 = arith.constant 160 : index
    %c0_22 = arith.constant 0 : index
    %42 = vector.load %arg10[%c160, %c0_22] : memref<392x512xf32, #tpu.memory_space<vmem>>, vector<8x512xf32>
    tpu.vector_store %arg10[%c160, %c0_22], %41 {strides = array<i32>} : memref<392x512xf32, #tpu.memory_space<vmem>>, vector<8x512xf32>,
    %c3_i32 = arith.constant 3 : i32
    %43 = tpu.dynamic_rotate %0 by %c3_i32 dim 1 : vector<8x512xf32>, i32 -> vector<8x512xf32>
    %c168 = arith.constant 168 : index
    %c0_23 = arith.constant 0 : index
    %44 = vector.load %arg10[%c168, %c0_23] : memref<392x512xf32, #tpu.memory_space<vmem>>, vector<8x512xf32>
    tpu.vector_store %arg10[%c168, %c0_23], %43 {strides = array<i32>} : memref<392x512xf32, #tpu.memory_space<vmem>>, vector<8x512xf32>,
    %c2_i32 = arith.constant 2 : i32
    %45 = tpu.dynamic_rotate %0 by %c2_i32 dim 1 : vector<8x512xf32>, i32 -> vector<8x512xf32>
    %c176 = arith.constant 176 : index
    %c0_24 = arith.constant 0 : index
    %46 = vector.load %arg10[%c176, %c0_24] : memref<392x512xf32, #tpu.memory_space<vmem>>, vector<8x512xf32>
    tpu.vector_store %arg10[%c176, %c0_24], %45 {strides = array<i32>} : memref<392x512xf32, #tpu.memory_space<vmem>>, vector<8x512xf32>,
    %c1_i32 = arith.constant 1 : i32
    %47 = tpu.dynamic_rotate %0 by %c1_i32 dim 1 : vector<8x512xf32>, i32 -> vector<8x512xf32>
    %c184 = arith.constant 184 : index
    %c0_25 = arith.constant 0 : index
    %48 = vector.load %arg10[%c184, %c0_25] : memref<392x512xf32, #tpu.memory_space<vmem>>, vector<8x512xf32>
    tpu.vector_store %arg10[%c184, %c0_25], %47 {strides = array<i32>} : memref<392x512xf32, #tpu.memory_space<vmem>>, vector<8x512xf32>,
    %c0_i32 = arith.constant 0 : i32
    %49 = tpu.dynamic_rotate %0 by %c0_i32 dim 1 : vector<8x512xf32>, i32 -> vector<8x512xf32>
    %c192 = arith.constant 192 : index
    %c0_26 = arith.constant 0 : index
    %50 = vector.load %arg10[%c192, %c0_26] : memref<392x512xf32, #tpu.memory_space<vmem>>, vector<8x512xf32>
    tpu.vector_store %arg10[%c192, %c0_26], %49 {strides = array<i32>} : memref<392x512xf32, #tpu.memory_space<vmem>>, vector<8x512xf32>,
    %c511_i32 = arith.constant 511 : i32
    %51 = tpu.dynamic_rotate %0 by %c511_i32 dim 1 : vector<8x512xf32>, i32 -> vector<8x512xf32>
    %c200 = arith.constant 200 : index
    %c0_27 = arith.constant 0 : index
    %52 = vector.load %arg10[%c200, %c0_27] : memref<392x512xf32, #tpu.memory_space<vmem>>, vector<8x512xf32>
    tpu.vector_store %arg10[%c200, %c0_27], %51 {strides = array<i32>} : memref<392x512xf32, #tpu.memory_space<vmem>>, vector<8x512xf32>,
    %c510_i32 = arith.constant 510 : i32
    %53 = tpu.dynamic_rotate %0 by %c510_i32 dim 1 : vector<8x512xf32>, i32 -> vector<8x512xf32>
    %c208 = arith.constant 208 : index
    %c0_28 = arith.constant 0 : index
    %54 = vector.load %arg10[%c208, %c0_28] : memref<392x512xf32, #tpu.memory_space<vmem>>, vector<8x512xf32>
    tpu.vector_store %arg10[%c208, %c0_28], %53 {strides = array<i32>} : memref<392x512xf32, #tpu.memory_space<vmem>>, vector<8x512xf32>,
    %c509_i32 = arith.constant 509 : i32
    %55 = tpu.dynamic_rotate %0 by %c509_i32 dim 1 : vector<8x512xf32>, i32 -> vector<8x512xf32>
    %c216 = arith.constant 216 : index
    %c0_29 = arith.constant 0 : index
    %56 = vector.load %arg10[%c216, %c0_29] : memref<392x512xf32, #tpu.memory_space<vmem>>, vector<8x512xf32>
    tpu.vector_store %arg10[%c216, %c0_29], %55 {strides = array<i32>} : memref<392x512xf32, #tpu.memory_space<vmem>>, vector<8x512xf32>,
    %c493_i32 = arith.constant 493 : i32
    %57 = tpu.dynamic_rotate %0 by %c493_i32 dim 1 : vector<8x512xf32>, i32 -> vector<8x512xf32>
    %c224 = arith.constant 224 : index
    %c0_30 = arith.constant 0 : index
    %58 = vector.load %arg10[%c224, %c0_30] : memref<392x512xf32, #tpu.memory_space<vmem>>, vector<8x512xf32>
    tpu.vector_store %arg10[%c224, %c0_30], %57 {strides = array<i32>} : memref<392x512xf32, #tpu.memory_space<vmem>>, vector<8x512xf32>,
    %c492_i32 = arith.constant 492 : i32
    %59 = tpu.dynamic_rotate %0 by %c492_i32 dim 1 : vector<8x512xf32>, i32 -> vector<8x512xf32>
    %c232 = arith.constant 232 : index
    %c0_31 = arith.constant 0 : index
    %60 = vector.load %arg10[%c232, %c0_31] : memref<392x512xf32, #tpu.memory_space<vmem>>, vector<8x512xf32>
    tpu.vector_store %arg10[%c232, %c0_31], %59 {strides = array<i32>} : memref<392x512xf32, #tpu.memory_space<vmem>>, vector<8x512xf32>,
    %c491_i32 = arith.constant 491 : i32
    %61 = tpu.dynamic_rotate %0 by %c491_i32 dim 1 : vector<8x512xf32>, i32 -> vector<8x512xf32>
    %c240 = arith.constant 240 : index
    %c0_32 = arith.constant 0 : index
    %62 = vector.load %arg10[%c240, %c0_32] : memref<392x512xf32, #tpu.memory_space<vmem>>, vector<8x512xf32>
    tpu.vector_store %arg10[%c240, %c0_32], %61 {strides = array<i32>} : memref<392x512xf32, #tpu.memory_space<vmem>>, vector<8x512xf32>,
    %c490_i32 = arith.constant 490 : i32
    %63 = tpu.dynamic_rotate %0 by %c490_i32 dim 1 : vector<8x512xf32>, i32 -> vector<8x512xf32>
    %c248 = arith.constant 248 : index
    %c0_33 = arith.constant 0 : index
    %64 = vector.load %arg10[%c248, %c0_33] : memref<392x512xf32, #tpu.memory_space<vmem>>, vector<8x512xf32>
    tpu.vector_store %arg10[%c248, %c0_33], %63 {strides = array<i32>} : memref<392x512xf32, #tpu.memory_space<vmem>>, vector<8x512xf32>,
    %c489_i32 = arith.constant 489 : i32
    %65 = tpu.dynamic_rotate %0 by %c489_i32 dim 1 : vector<8x512xf32>, i32 -> vector<8x512xf32>
    %c256 = arith.constant 256 : index
    %c0_34 = arith.constant 0 : index
    %66 = vector.load %arg10[%c256, %c0_34] : memref<392x512xf32, #tpu.memory_space<vmem>>, vector<8x512xf32>
    tpu.vector_store %arg10[%c256, %c0_34], %65 {strides = array<i32>} : memref<392x512xf32, #tpu.memory_space<vmem>>, vector<8x512xf32>,
    %c488_i32 = arith.constant 488 : i32
    %67 = tpu.dynamic_rotate %0 by %c488_i32 dim 1 : vector<8x512xf32>, i32 -> vector<8x512xf32>
    %c264 = arith.constant 264 : index
    %c0_35 = arith.constant 0 : index
    %68 = vector.load %arg10[%c264, %c0_35] : memref<392x512xf32, #tpu.memory_space<vmem>>, vector<8x512xf32>
    tpu.vector_store %arg10[%c264, %c0_35], %67 {strides = array<i32>} : memref<392x512xf32, #tpu.memory_space<vmem>>, vector<8x512xf32>,
    %c487_i32 = arith.constant 487 : i32
    %69 = tpu.dynamic_rotate %0 by %c487_i32 dim 1 : vector<8x512xf32>, i32 -> vector<8x512xf32>
    %c272 = arith.constant 272 : index
    %c0_36 = arith.constant 0 : index
    %70 = vector.load %arg10[%c272, %c0_36] : memref<392x512xf32, #tpu.memory_space<vmem>>, vector<8x512xf32>
    tpu.vector_store %arg10[%c272, %c0_36], %69 {strides = array<i32>} : memref<392x512xf32, #tpu.memory_space<vmem>>, vector<8x512xf32>,
    %c471_i32 = arith.constant 471 : i32
    %71 = tpu.dynamic_rotate %0 by %c471_i32 dim 1 : vector<8x512xf32>, i32 -> vector<8x512xf32>
    %c280 = arith.constant 280 : index
    %c0_37 = arith.constant 0 : index
    %72 = vector.load %arg10[%c280, %c0_37] : memref<392x512xf32, #tpu.memory_space<vmem>>, vector<8x512xf32>
    tpu.vector_store %arg10[%c280, %c0_37], %71 {strides = array<i32>} : memref<392x512xf32, #tpu.memory_space<vmem>>, vector<8x512xf32>,
    %c470_i32 = arith.constant 470 : i32
    %73 = tpu.dynamic_rotate %0 by %c470_i32 dim 1 : vector<8x512xf32>, i32 -> vector<8x512xf32>
    %c288 = arith.constant 288 : index
    %c0_38 = arith.constant 0 : index
    %74 = vector.load %arg10[%c288, %c0_38] : memref<392x512xf32, #tpu.memory_space<vmem>>, vector<8x512xf32>
    tpu.vector_store %arg10[%c288, %c0_38], %73 {strides = array<i32>} : memref<392x512xf32, #tpu.memory_space<vmem>>, vector<8x512xf32>,
    %c469_i32 = arith.constant 469 : i32
    %75 = tpu.dynamic_rotate %0 by %c469_i32 dim 1 : vector<8x512xf32>, i32 -> vector<8x512xf32>
    %c296 = arith.constant 296 : index
    %c0_39 = arith.constant 0 : index
    %76 = vector.load %arg10[%c296, %c0_39] : memref<392x512xf32, #tpu.memory_space<vmem>>, vector<8x512xf32>
    tpu.vector_store %arg10[%c296, %c0_39], %75 {strides = array<i32>} : memref<392x512xf32, #tpu.memory_space<vmem>>, vector<8x512xf32>,
    %c468_i32 = arith.constant 468 : i32
    %77 = tpu.dynamic_rotate %0 by %c468_i32 dim 1 : vector<8x512xf32>, i32 -> vector<8x512xf32>
    %c304 = arith.constant 304 : index
    %c0_40 = arith.constant 0 : index
    %78 = vector.load %arg10[%c304, %c0_40] : memref<392x512xf32, #tpu.memory_space<vmem>>, vector<8x512xf32>
    tpu.vector_store %arg10[%c304, %c0_40], %77 {strides = array<i32>} : memref<392x512xf32, #tpu.memory_space<vmem>>, vector<8x512xf32>,
    %c467_i32 = arith.constant 467 : i32
    %79 = tpu.dynamic_rotate %0 by %c467_i32 dim 1 : vector<8x512xf32>, i32 -> vector<8x512xf32>
    %c312 = arith.constant 312 : index
    %c0_41 = arith.constant 0 : index
    %80 = vector.load %arg10[%c312, %c0_41] : memref<392x512xf32, #tpu.memory_space<vmem>>, vector<8x512xf32>
    tpu.vector_store %arg10[%c312, %c0_41], %79 {strides = array<i32>} : memref<392x512xf32, #tpu.memory_space<vmem>>, vector<8x512xf32>,
    %c466_i32 = arith.constant 466 : i32
    %81 = tpu.dynamic_rotate %0 by %c466_i32 dim 1 : vector<8x512xf32>, i32 -> vector<8x512xf32>
    %c320 = arith.constant 320 : index
    %c0_42 = arith.constant 0 : index
    %82 = vector.load %arg10[%c320, %c0_42] : memref<392x512xf32, #tpu.memory_space<vmem>>, vector<8x512xf32>
    tpu.vector_store %arg10[%c320, %c0_42], %81 {strides = array<i32>} : memref<392x512xf32, #tpu.memory_space<vmem>>, vector<8x512xf32>,
    %c465_i32 = arith.constant 465 : i32
    %83 = tpu.dynamic_rotate %0 by %c465_i32 dim 1 : vector<8x512xf32>, i32 -> vector<8x512xf32>
    %c328 = arith.constant 328 : index
    %c0_43 = arith.constant 0 : index
    %84 = vector.load %arg10[%c328, %c0_43] : memref<392x512xf32, #tpu.memory_space<vmem>>, vector<8x512xf32>
    tpu.vector_store %arg10[%c328, %c0_43], %83 {strides = array<i32>} : memref<392x512xf32, #tpu.memory_space<vmem>>, vector<8x512xf32>,
    %c449_i32 = arith.constant 449 : i32
    %85 = tpu.dynamic_rotate %0 by %c449_i32 dim 1 : vector<8x512xf32>, i32 -> vector<8x512xf32>
    %c336 = arith.constant 336 : index
    %c0_44 = arith.constant 0 : index
    %86 = vector.load %arg10[%c336, %c0_44] : memref<392x512xf32, #tpu.memory_space<vmem>>, vector<8x512xf32>
    tpu.vector_store %arg10[%c336, %c0_44], %85 {strides = array<i32>} : memref<392x512xf32, #tpu.memory_space<vmem>>, vector<8x512xf32>,
    %c448_i32 = arith.constant 448 : i32
    %87 = tpu.dynamic_rotate %0 by %c448_i32 dim 1 : vector<8x512xf32>, i32 -> vector<8x512xf32>
    %c344 = arith.constant 344 : index
    %c0_45 = arith.constant 0 : index
    %88 = vector.load %arg10[%c344, %c0_45] : memref<392x512xf32, #tpu.memory_space<vmem>>, vector<8x512xf32>
    tpu.vector_store %arg10[%c344, %c0_45], %87 {strides = array<i32>} : memref<392x512xf32, #tpu.memory_space<vmem>>, vector<8x512xf32>,
    %c447_i32 = arith.constant 447 : i32
    %89 = tpu.dynamic_rotate %0 by %c447_i32 dim 1 : vector<8x512xf32>, i32 -> vector<8x512xf32>
    %c352 = arith.constant 352 : index
    %c0_46 = arith.constant 0 : index
    %90 = vector.load %arg10[%c352, %c0_46] : memref<392x512xf32, #tpu.memory_space<vmem>>, vector<8x512xf32>
    tpu.vector_store %arg10[%c352, %c0_46], %89 {strides = array<i32>} : memref<392x512xf32, #tpu.memory_space<vmem>>, vector<8x512xf32>,
    %c446_i32 = arith.constant 446 : i32
    %91 = tpu.dynamic_rotate %0 by %c446_i32 dim 1 : vector<8x512xf32>, i32 -> vector<8x512xf32>
    %c360 = arith.constant 360 : index
    %c0_47 = arith.constant 0 : index
    %92 = vector.load %arg10[%c360, %c0_47] : memref<392x512xf32, #tpu.memory_space<vmem>>, vector<8x512xf32>
    tpu.vector_store %arg10[%c360, %c0_47], %91 {strides = array<i32>} : memref<392x512xf32, #tpu.memory_space<vmem>>, vector<8x512xf32>,
    %c445_i32 = arith.constant 445 : i32
    %93 = tpu.dynamic_rotate %0 by %c445_i32 dim 1 : vector<8x512xf32>, i32 -> vector<8x512xf32>
    %c368 = arith.constant 368 : index
    %c0_48 = arith.constant 0 : index
    %94 = vector.load %arg10[%c368, %c0_48] : memref<392x512xf32, #tpu.memory_space<vmem>>, vector<8x512xf32>
    tpu.vector_store %arg10[%c368, %c0_48], %93 {strides = array<i32>} : memref<392x512xf32, #tpu.memory_space<vmem>>, vector<8x512xf32>,
    %c444_i32 = arith.constant 444 : i32
    %95 = tpu.dynamic_rotate %0 by %c444_i32 dim 1 : vector<8x512xf32>, i32 -> vector<8x512xf32>
    %c376 = arith.constant 376 : index
    %c0_49 = arith.constant 0 : index
    %96 = vector.load %arg10[%c376, %c0_49] : memref<392x512xf32, #tpu.memory_space<vmem>>, vector<8x512xf32>
    tpu.vector_store %arg10[%c376, %c0_49], %95 {strides = array<i32>} : memref<392x512xf32, #tpu.memory_space<vmem>>, vector<8x512xf32>,
    %c443_i32 = arith.constant 443 : i32
    %97 = tpu.dynamic_rotate %0 by %c443_i32 dim 1 : vector<8x512xf32>, i32 -> vector<8x512xf32>
    %c384 = arith.constant 384 : index
    %c0_50 = arith.constant 0 : index
    %98 = vector.load %arg10[%c384, %c0_50] : memref<392x512xf32, #tpu.memory_space<vmem>>, vector<8x512xf32>
    tpu.vector_store %arg10[%c384, %c0_50], %97 {strides = array<i32>} : memref<392x512xf32, #tpu.memory_space<vmem>>, vector<8x512xf32>,
    %c0_51 = arith.constant 0 : index
    %c0_52 = arith.constant 0 : index
    %99 = vector.load %arg2[%c0_51, %c0_52] : memref<8x392xf32, #tpu.memory_space<vmem>>, vector<8x392xf32>
    %c0_53 = arith.constant 0 : index
    %c0_54 = arith.constant 0 : index
    %100 = vector.load %arg10[%c0_53, %c0_54] : memref<392x512xf32, #tpu.memory_space<vmem>>, vector<392x512xf32>
    %cst = arith.constant dense<0.000000e+00> : vector<8x512xf32>
    %101 = tpu.matmul %99, %100, %cst {dimension_numbers = #tpu.dot_dimension_numbers<[1], [0], [0], [1], [0, 0, 1, 1], [], []>} : vector<8x392xf32>, vector<392x512xf32>, vector<8x512xf32> -> vector<8x512xf32>
    %c0_55 = arith.constant 0 : index
    %c0_56 = arith.constant 0 : index
    %102 = vector.load %arg4[%c0_55, %c0_56] : memref<8x1xf32, #tpu.memory_space<vmem>>, vector<8x1xf32>
    %103 = vector.broadcast %102 : vector<8x1xf32> to vector<8x512xf32>
    %104 = arith.mulf %101, %103 : vector<8x512xf32>
    %c0_57 = arith.constant 0 : index
    %c0_58 = arith.constant 0 : index
    %105 = vector.load %arg5[%c0_57, %c0_58] : memref<8x1xf32, #tpu.memory_space<vmem>>, vector<8x1xf32>
    %106 = vector.broadcast %105 : vector<8x1xf32> to vector<8x512xf32>
    %107 = arith.addf %104, %106 : vector<8x512xf32>
    %cst_59 = arith.constant 0.000000e+00 : f32
    %108 = vector.broadcast %cst_59 : f32 to vector<8x512xf32>
    %109 = arith.maximumf %107, %108 : vector<8x512xf32>
    %c0_60 = arith.constant 0 : index
    %c0_61 = arith.constant 0 : index
    %110 = vector.load %arg8[%c0_60, %c0_61] : memref<8x512xf32, #tpu.memory_space<vmem>>, vector<8x512xf32>
    %111 = arith.mulf %109, %110 : vector<8x512xf32>
    %c69_i32_62 = arith.constant 69 : i32
    %112 = tpu.dynamic_rotate %111 by %c69_i32_62 dim 1 : vector<8x512xf32>, i32 -> vector<8x512xf32>
    %c0_63 = arith.constant 0 : index
    %c0_64 = arith.constant 0 : index
    %113 = vector.load %arg10[%c0_63, %c0_64] : memref<392x512xf32, #tpu.memory_space<vmem>>, vector<8x512xf32>
    tpu.vector_store %arg10[%c0_63, %c0_64], %112 {strides = array<i32>} : memref<392x512xf32, #tpu.memory_space<vmem>>, vector<8x512xf32>,
    %c68_i32_65 = arith.constant 68 : i32
    %114 = tpu.dynamic_rotate %111 by %c68_i32_65 dim 1 : vector<8x512xf32>, i32 -> vector<8x512xf32>
    %c8_66 = arith.constant 8 : index
    %c0_67 = arith.constant 0 : index
    %115 = vector.load %arg10[%c8_66, %c0_67] : memref<392x512xf32, #tpu.memory_space<vmem>>, vector<8x512xf32>
    tpu.vector_store %arg10[%c8_66, %c0_67], %114 {strides = array<i32>} : memref<392x512xf32, #tpu.memory_space<vmem>>, vector<8x512xf32>,
    %c67_i32_68 = arith.constant 67 : i32
    %116 = tpu.dynamic_rotate %111 by %c67_i32_68 dim 1 : vector<8x512xf32>, i32 -> vector<8x512xf32>
    %c16_69 = arith.constant 16 : index
    %c0_70 = arith.constant 0 : index
    %117 = vector.load %arg10[%c16_69, %c0_70] : memref<392x512xf32, #tpu.memory_space<vmem>>, vector<8x512xf32>
    tpu.vector_store %arg10[%c16_69, %c0_70], %116 {strides = array<i32>} : memref<392x512xf32, #tpu.memory_space<vmem>>, vector<8x512xf32>,
    %c66_i32_71 = arith.constant 66 : i32
    %118 = tpu.dynamic_rotate %111 by %c66_i32_71 dim 1 : vector<8x512xf32>, i32 -> vector<8x512xf32>
    %c24_72 = arith.constant 24 : index
    %c0_73 = arith.constant 0 : index
    %119 = vector.load %arg10[%c24_72, %c0_73] : memref<392x512xf32, #tpu.memory_space<vmem>>, vector<8x512xf32>
    tpu.vector_store %arg10[%c24_72, %c0_73], %118 {strides = array<i32>} : memref<392x512xf32, #tpu.memory_space<vmem>>, vector<8x512xf32>,
    %c65_i32_74 = arith.constant 65 : i32
    %120 = tpu.dynamic_rotate %111 by %c65_i32_74 dim 1 : vector<8x512xf32>, i32 -> vector<8x512xf32>
    %c32_75 = arith.constant 32 : index
    %c0_76 = arith.constant 0 : index
    %121 = vector.load %arg10[%c32_75, %c0_76] : memref<392x512xf32, #tpu.memory_space<vmem>>, vector<8x512xf32>
    tpu.vector_store %arg10[%c32_75, %c0_76], %120 {strides = array<i32>} : memref<392x512xf32, #tpu.memory_space<vmem>>, vector<8x512xf32>,
    %c64_i32_77 = arith.constant 64 : i32
    %122 = tpu.dynamic_rotate %111 by %c64_i32_77 dim 1 : vector<8x512xf32>, i32 -> vector<8x512xf32>
    %c40_78 = arith.constant 40 : index
    %c0_79 = arith.constant 0 : index
    %123 = vector.load %arg10[%c40_78, %c0_79] : memref<392x512xf32, #tpu.memory_space<vmem>>, vector<8x512xf32>
    tpu.vector_store %arg10[%c40_78, %c0_79], %122 {strides = array<i32>} : memref<392x512xf32, #tpu.memory_space<vmem>>, vector<8x512xf32>,
    %c63_i32_80 = arith.constant 63 : i32
    %124 = tpu.dynamic_rotate %111 by %c63_i32_80 dim 1 : vector<8x512xf32>, i32 -> vector<8x512xf32>
    %c48_81 = arith.constant 48 : index
    %c0_82 = arith.constant 0 : index
    %125 = vector.load %arg10[%c48_81, %c0_82] : memref<392x512xf32, #tpu.memory_space<vmem>>, vector<8x512xf32>
    tpu.vector_store %arg10[%c48_81, %c0_82], %124 {strides = array<i32>} : memref<392x512xf32, #tpu.memory_space<vmem>>, vector<8x512xf32>,
    %c47_i32_83 = arith.constant 47 : i32
    %126 = tpu.dynamic_rotate %111 by %c47_i32_83 dim 1 : vector<8x512xf32>, i32 -> vector<8x512xf32>
    %c56_84 = arith.constant 56 : index
    %c0_85 = arith.constant 0 : index
    %127 = vector.load %arg10[%c56_84, %c0_85] : memref<392x512xf32, #tpu.memory_space<vmem>>, vector<8x512xf32>
    tpu.vector_store %arg10[%c56_84, %c0_85], %126 {strides = array<i32>} : memref<392x512xf32, #tpu.memory_space<vmem>>, vector<8x512xf32>,
    %c46_i32_86 = arith.constant 46 : i32
    %128 = tpu.dynamic_rotate %111 by %c46_i32_86 dim 1 : vector<8x512xf32>, i32 -> vector<8x512xf32>
    %c64_87 = arith.constant 64 : index
    %c0_88 = arith.constant 0 : index
    %129 = vector.load %arg10[%c64_87, %c0_88] : memref<392x512xf32, #tpu.memory_space<vmem>>, vector<8x512xf32>
    tpu.vector_store %arg10[%c64_87, %c0_88], %128 {strides = array<i32>} : memref<392x512xf32, #tpu.memory_space<vmem>>, vector<8x512xf32>,
    %c45_i32_89 = arith.constant 45 : i32
    %130 = tpu.dynamic_rotate %111 by %c45_i32_89 dim 1 : vector<8x512xf32>, i32 -> vector<8x512xf32>
    %c72_90 = arith.constant 72 : index
    %c0_91 = arith.constant 0 : index
    %131 = vector.load %arg10[%c72_90, %c0_91] : memref<392x512xf32, #tpu.memory_space<vmem>>, vector<8x512xf32>
    tpu.vector_store %arg10[%c72_90, %c0_91], %130 {strides = array<i32>} : memref<392x512xf32, #tpu.memory_space<vmem>>, vector<8x512xf32>,
    %c44_i32_92 = arith.constant 44 : i32
    %132 = tpu.dynamic_rotate %111 by %c44_i32_92 dim 1 : vector<8x512xf32>, i32 -> vector<8x512xf32>
    %c80_93 = arith.constant 80 : index
    %c0_94 = arith.constant 0 : index
    %133 = vector.load %arg10[%c80_93, %c0_94] : memref<392x512xf32, #tpu.memory_space<vmem>>, vector<8x512xf32>
    tpu.vector_store %arg10[%c80_93, %c0_94], %132 {strides = array<i32>} : memref<392x512xf32, #tpu.memory_space<vmem>>, vector<8x512xf32>,
    %c43_i32_95 = arith.constant 43 : i32
    %134 = tpu.dynamic_rotate %111 by %c43_i32_95 dim 1 : vector<8x512xf32>, i32 -> vector<8x512xf32>
    %c88_96 = arith.constant 88 : index
    %c0_97 = arith.constant 0 : index
    %135 = vector.load %arg10[%c88_96, %c0_97] : memref<392x512xf32, #tpu.memory_space<vmem>>, vector<8x512xf32>
    tpu.vector_store %arg10[%c88_96, %c0_97], %134 {strides = array<i32>} : memref<392x512xf32, #tpu.memory_space<vmem>>, vector<8x512xf32>,
    %c42_i32_98 = arith.constant 42 : i32
    %136 = tpu.dynamic_rotate %111 by %c42_i32_98 dim 1 : vector<8x512xf32>, i32 -> vector<8x512xf32>
    %c96_99 = arith.constant 96 : index
    %c0_100 = arith.constant 0 : index
    %137 = vector.load %arg10[%c96_99, %c0_100] : memref<392x512xf32, #tpu.memory_space<vmem>>, vector<8x512xf32>
    tpu.vector_store %arg10[%c96_99, %c0_100], %136 {strides = array<i32>} : memref<392x512xf32, #tpu.memory_space<vmem>>, vector<8x512xf32>,
    %c41_i32_101 = arith.constant 41 : i32
    %138 = tpu.dynamic_rotate %111 by %c41_i32_101 dim 1 : vector<8x512xf32>, i32 -> vector<8x512xf32>
    %c104_102 = arith.constant 104 : index
    %c0_103 = arith.constant 0 : index
    %139 = vector.load %arg10[%c104_102, %c0_103] : memref<392x512xf32, #tpu.memory_space<vmem>>, vector<8x512xf32>
    tpu.vector_store %arg10[%c104_102, %c0_103], %138 {strides = array<i32>} : memref<392x512xf32, #tpu.memory_space<vmem>>, vector<8x512xf32>,
    %c25_i32_104 = arith.constant 25 : i32
    %140 = tpu.dynamic_rotate %111 by %c25_i32_104 dim 1 : vector<8x512xf32>, i32 -> vector<8x512xf32>
    %c112_105 = arith.constant 112 : index
    %c0_106 = arith.constant 0 : index
    %141 = vector.load %arg10[%c112_105, %c0_106] : memref<392x512xf32, #tpu.memory_space<vmem>>, vector<8x512xf32>
    tpu.vector_store %arg10[%c112_105, %c0_106], %140 {strides = array<i32>} : memref<392x512xf32, #tpu.memory_space<vmem>>, vector<8x512xf32>,
    %c24_i32_107 = arith.constant 24 : i32
    %142 = tpu.dynamic_rotate %111 by %c24_i32_107 dim 1 : vector<8x512xf32>, i32 -> vector<8x512xf32>
    %c120_108 = arith.constant 120 : index
    %c0_109 = arith.constant 0 : index
    %143 = vector.load %arg10[%c120_108, %c0_109] : memref<392x512xf32, #tpu.memory_space<vmem>>, vector<8x512xf32>
    tpu.vector_store %arg10[%c120_108, %c0_109], %142 {strides = array<i32>} : memref<392x512xf32, #tpu.memory_space<vmem>>, vector<8x512xf32>,
    %c23_i32_110 = arith.constant 23 : i32
    %144 = tpu.dynamic_rotate %111 by %c23_i32_110 dim 1 : vector<8x512xf32>, i32 -> vector<8x512xf32>
    %c128_111 = arith.constant 128 : index
    %c0_112 = arith.constant 0 : index
    %145 = vector.load %arg10[%c128_111, %c0_112] : memref<392x512xf32, #tpu.memory_space<vmem>>, vector<8x512xf32>
    tpu.vector_store %arg10[%c128_111, %c0_112], %144 {strides = array<i32>} : memref<392x512xf32, #tpu.memory_space<vmem>>, vector<8x512xf32>,
    %c22_i32_113 = arith.constant 22 : i32
    %146 = tpu.dynamic_rotate %111 by %c22_i32_113 dim 1 : vector<8x512xf32>, i32 -> vector<8x512xf32>
    %c136_114 = arith.constant 136 : index
    %c0_115 = arith.constant 0 : index
    %147 = vector.load %arg10[%c136_114, %c0_115] : memref<392x512xf32, #tpu.memory_space<vmem>>, vector<8x512xf32>
    tpu.vector_store %arg10[%c136_114, %c0_115], %146 {strides = array<i32>} : memref<392x512xf32, #tpu.memory_space<vmem>>, vector<8x512xf32>,
    %c21_i32_116 = arith.constant 21 : i32
    %148 = tpu.dynamic_rotate %111 by %c21_i32_116 dim 1 : vector<8x512xf32>, i32 -> vector<8x512xf32>
    %c144_117 = arith.constant 144 : index
    %c0_118 = arith.constant 0 : index
    %149 = vector.load %arg10[%c144_117, %c0_118] : memref<392x512xf32, #tpu.memory_space<vmem>>, vector<8x512xf32>
    tpu.vector_store %arg10[%c144_117, %c0_118], %148 {strides = array<i32>} : memref<392x512xf32, #tpu.memory_space<vmem>>, vector<8x512xf32>,
    %c20_i32_119 = arith.constant 20 : i32
    %150 = tpu.dynamic_rotate %111 by %c20_i32_119 dim 1 : vector<8x512xf32>, i32 -> vector<8x512xf32>
    %c152_120 = arith.constant 152 : index
    %c0_121 = arith.constant 0 : index
    %151 = vector.load %arg10[%c152_120, %c0_121] : memref<392x512xf32, #tpu.memory_space<vmem>>, vector<8x512xf32>
    tpu.vector_store %arg10[%c152_120, %c0_121], %150 {strides = array<i32>} : memref<392x512xf32, #tpu.memory_space<vmem>>, vector<8x512xf32>,
    %c19_i32_122 = arith.constant 19 : i32
    %152 = tpu.dynamic_rotate %111 by %c19_i32_122 dim 1 : vector<8x512xf32>, i32 -> vector<8x512xf32>
    %c160_123 = arith.constant 160 : index
    %c0_124 = arith.constant 0 : index
    %153 = vector.load %arg10[%c160_123, %c0_124] : memref<392x512xf32, #tpu.memory_space<vmem>>, vector<8x512xf32>
    tpu.vector_store %arg10[%c160_123, %c0_124], %152 {strides = array<i32>} : memref<392x512xf32, #tpu.memory_space<vmem>>, vector<8x512xf32>,
    %c3_i32_125 = arith.constant 3 : i32
    %154 = tpu.dynamic_rotate %111 by %c3_i32_125 dim 1 : vector<8x512xf32>, i32 -> vector<8x512xf32>
    %c168_126 = arith.constant 168 : index
    %c0_127 = arith.constant 0 : index
    %155 = vector.load %arg10[%c168_126, %c0_127] : memref<392x512xf32, #tpu.memory_space<vmem>>, vector<8x512xf32>
    tpu.vector_store %arg10[%c168_126, %c0_127], %154 {strides = array<i32>} : memref<392x512xf32, #tpu.memory_space<vmem>>, vector<8x512xf32>,
    %c2_i32_128 = arith.constant 2 : i32
    %156 = tpu.dynamic_rotate %111 by %c2_i32_128 dim 1 : vector<8x512xf32>, i32 -> vector<8x512xf32>
    %c176_129 = arith.constant 176 : index
    %c0_130 = arith.constant 0 : index
    %157 = vector.load %arg10[%c176_129, %c0_130] : memref<392x512xf32, #tpu.memory_space<vmem>>, vector<8x512xf32>
    tpu.vector_store %arg10[%c176_129, %c0_130], %156 {strides = array<i32>} : memref<392x512xf32, #tpu.memory_space<vmem>>, vector<8x512xf32>,
    %c1_i32_131 = arith.constant 1 : i32
    %158 = tpu.dynamic_rotate %111 by %c1_i32_131 dim 1 : vector<8x512xf32>, i32 -> vector<8x512xf32>
    %c184_132 = arith.constant 184 : index
    %c0_133 = arith.constant 0 : index
    %159 = vector.load %arg10[%c184_132, %c0_133] : memref<392x512xf32, #tpu.memory_space<vmem>>, vector<8x512xf32>
    tpu.vector_store %arg10[%c184_132, %c0_133], %158 {strides = array<i32>} : memref<392x512xf32, #tpu.memory_space<vmem>>, vector<8x512xf32>,
    %c0_i32_134 = arith.constant 0 : i32
    %160 = tpu.dynamic_rotate %111 by %c0_i32_134 dim 1 : vector<8x512xf32>, i32 -> vector<8x512xf32>
    %c192_135 = arith.constant 192 : index
    %c0_136 = arith.constant 0 : index
    %161 = vector.load %arg10[%c192_135, %c0_136] : memref<392x512xf32, #tpu.memory_space<vmem>>, vector<8x512xf32>
    tpu.vector_store %arg10[%c192_135, %c0_136], %160 {strides = array<i32>} : memref<392x512xf32, #tpu.memory_space<vmem>>, vector<8x512xf32>,
    %c511_i32_137 = arith.constant 511 : i32
    %162 = tpu.dynamic_rotate %111 by %c511_i32_137 dim 1 : vector<8x512xf32>, i32 -> vector<8x512xf32>
    %c200_138 = arith.constant 200 : index
    %c0_139 = arith.constant 0 : index
    %163 = vector.load %arg10[%c200_138, %c0_139] : memref<392x512xf32, #tpu.memory_space<vmem>>, vector<8x512xf32>
    tpu.vector_store %arg10[%c200_138, %c0_139], %162 {strides = array<i32>} : memref<392x512xf32, #tpu.memory_space<vmem>>, vector<8x512xf32>,
    %c510_i32_140 = arith.constant 510 : i32
    %164 = tpu.dynamic_rotate %111 by %c510_i32_140 dim 1 : vector<8x512xf32>, i32 -> vector<8x512xf32>
    %c208_141 = arith.constant 208 : index
    %c0_142 = arith.constant 0 : index
    %165 = vector.load %arg10[%c208_141, %c0_142] : memref<392x512xf32, #tpu.memory_space<vmem>>, vector<8x512xf32>
    tpu.vector_store %arg10[%c208_141, %c0_142], %164 {strides = array<i32>} : memref<392x512xf32, #tpu.memory_space<vmem>>, vector<8x512xf32>,
    %c509_i32_143 = arith.constant 509 : i32
    %166 = tpu.dynamic_rotate %111 by %c509_i32_143 dim 1 : vector<8x512xf32>, i32 -> vector<8x512xf32>
    %c216_144 = arith.constant 216 : index
    %c0_145 = arith.constant 0 : index
    %167 = vector.load %arg10[%c216_144, %c0_145] : memref<392x512xf32, #tpu.memory_space<vmem>>, vector<8x512xf32>
    tpu.vector_store %arg10[%c216_144, %c0_145], %166 {strides = array<i32>} : memref<392x512xf32, #tpu.memory_space<vmem>>, vector<8x512xf32>,
    %c493_i32_146 = arith.constant 493 : i32
    %168 = tpu.dynamic_rotate %111 by %c493_i32_146 dim 1 : vector<8x512xf32>, i32 -> vector<8x512xf32>
    %c224_147 = arith.constant 224 : index
    %c0_148 = arith.constant 0 : index
    %169 = vector.load %arg10[%c224_147, %c0_148] : memref<392x512xf32, #tpu.memory_space<vmem>>, vector<8x512xf32>
    tpu.vector_store %arg10[%c224_147, %c0_148], %168 {strides = array<i32>} : memref<392x512xf32, #tpu.memory_space<vmem>>, vector<8x512xf32>,
    %c492_i32_149 = arith.constant 492 : i32
    %170 = tpu.dynamic_rotate %111 by %c492_i32_149 dim 1 : vector<8x512xf32>, i32 -> vector<8x512xf32>
    %c232_150 = arith.constant 232 : index
    %c0_151 = arith.constant 0 : index
    %171 = vector.load %arg10[%c232_150, %c0_151] : memref<392x512xf32, #tpu.memory_space<vmem>>, vector<8x512xf32>
    tpu.vector_store %arg10[%c232_150, %c0_151], %170 {strides = array<i32>} : memref<392x512xf32, #tpu.memory_space<vmem>>, vector<8x512xf32>,
    %c491_i32_152 = arith.constant 491 : i32
    %172 = tpu.dynamic_rotate %111 by %c491_i32_152 dim 1 : vector<8x512xf32>, i32 -> vector<8x512xf32>
    %c240_153 = arith.constant 240 : index
    %c0_154 = arith.constant 0 : index
    %173 = vector.load %arg10[%c240_153, %c0_154] : memref<392x512xf32, #tpu.memory_space<vmem>>, vector<8x512xf32>
    tpu.vector_store %arg10[%c240_153, %c0_154], %172 {strides = array<i32>} : memref<392x512xf32, #tpu.memory_space<vmem>>, vector<8x512xf32>,
    %c490_i32_155 = arith.constant 490 : i32
    %174 = tpu.dynamic_rotate %111 by %c490_i32_155 dim 1 : vector<8x512xf32>, i32 -> vector<8x512xf32>
    %c248_156 = arith.constant 248 : index
    %c0_157 = arith.constant 0 : index
    %175 = vector.load %arg10[%c248_156, %c0_157] : memref<392x512xf32, #tpu.memory_space<vmem>>, vector<8x512xf32>
    tpu.vector_store %arg10[%c248_156, %c0_157], %174 {strides = array<i32>} : memref<392x512xf32, #tpu.memory_space<vmem>>, vector<8x512xf32>,
    %c489_i32_158 = arith.constant 489 : i32
    %176 = tpu.dynamic_rotate %111 by %c489_i32_158 dim 1 : vector<8x512xf32>, i32 -> vector<8x512xf32>
    %c256_159 = arith.constant 256 : index
    %c0_160 = arith.constant 0 : index
    %177 = vector.load %arg10[%c256_159, %c0_160] : memref<392x512xf32, #tpu.memory_space<vmem>>, vector<8x512xf32>
    tpu.vector_store %arg10[%c256_159, %c0_160], %176 {strides = array<i32>} : memref<392x512xf32, #tpu.memory_space<vmem>>, vector<8x512xf32>,
    %c488_i32_161 = arith.constant 488 : i32
    %178 = tpu.dynamic_rotate %111 by %c488_i32_161 dim 1 : vector<8x512xf32>, i32 -> vector<8x512xf32>
    %c264_162 = arith.constant 264 : index
    %c0_163 = arith.constant 0 : index
    %179 = vector.load %arg10[%c264_162, %c0_163] : memref<392x512xf32, #tpu.memory_space<vmem>>, vector<8x512xf32>
    tpu.vector_store %arg10[%c264_162, %c0_163], %178 {strides = array<i32>} : memref<392x512xf32, #tpu.memory_space<vmem>>, vector<8x512xf32>,
    %c487_i32_164 = arith.constant 487 : i32
    %180 = tpu.dynamic_rotate %111 by %c487_i32_164 dim 1 : vector<8x512xf32>, i32 -> vector<8x512xf32>
    %c272_165 = arith.constant 272 : index
    %c0_166 = arith.constant 0 : index
    %181 = vector.load %arg10[%c272_165, %c0_166] : memref<392x512xf32, #tpu.memory_space<vmem>>, vector<8x512xf32>
    tpu.vector_store %arg10[%c272_165, %c0_166], %180 {strides = array<i32>} : memref<392x512xf32, #tpu.memory_space<vmem>>, vector<8x512xf32>,
    %c471_i32_167 = arith.constant 471 : i32
    %182 = tpu.dynamic_rotate %111 by %c471_i32_167 dim 1 : vector<8x512xf32>, i32 -> vector<8x512xf32>
    %c280_168 = arith.constant 280 : index
    %c0_169 = arith.constant 0 : index
    %183 = vector.load %arg10[%c280_168, %c0_169] : memref<392x512xf32, #tpu.memory_space<vmem>>, vector<8x512xf32>
    tpu.vector_store %arg10[%c280_168, %c0_169], %182 {strides = array<i32>} : memref<392x512xf32, #tpu.memory_space<vmem>>, vector<8x512xf32>,
    %c470_i32_170 = arith.constant 470 : i32
    %184 = tpu.dynamic_rotate %111 by %c470_i32_170 dim 1 : vector<8x512xf32>, i32 -> vector<8x512xf32>
    %c288_171 = arith.constant 288 : index
    %c0_172 = arith.constant 0 : index
    %185 = vector.load %arg10[%c288_171, %c0_172] : memref<392x512xf32, #tpu.memory_space<vmem>>, vector<8x512xf32>
    tpu.vector_store %arg10[%c288_171, %c0_172], %184 {strides = array<i32>} : memref<392x512xf32, #tpu.memory_space<vmem>>, vector<8x512xf32>,
    %c469_i32_173 = arith.constant 469 : i32
    %186 = tpu.dynamic_rotate %111 by %c469_i32_173 dim 1 : vector<8x512xf32>, i32 -> vector<8x512xf32>
    %c296_174 = arith.constant 296 : index
    %c0_175 = arith.constant 0 : index
    %187 = vector.load %arg10[%c296_174, %c0_175] : memref<392x512xf32, #tpu.memory_space<vmem>>, vector<8x512xf32>
    tpu.vector_store %arg10[%c296_174, %c0_175], %186 {strides = array<i32>} : memref<392x512xf32, #tpu.memory_space<vmem>>, vector<8x512xf32>,
    %c468_i32_176 = arith.constant 468 : i32
    %188 = tpu.dynamic_rotate %111 by %c468_i32_176 dim 1 : vector<8x512xf32>, i32 -> vector<8x512xf32>
    %c304_177 = arith.constant 304 : index
    %c0_178 = arith.constant 0 : index
    %189 = vector.load %arg10[%c304_177, %c0_178] : memref<392x512xf32, #tpu.memory_space<vmem>>, vector<8x512xf32>
    tpu.vector_store %arg10[%c304_177, %c0_178], %188 {strides = array<i32>} : memref<392x512xf32, #tpu.memory_space<vmem>>, vector<8x512xf32>,
    %c467_i32_179 = arith.constant 467 : i32
    %190 = tpu.dynamic_rotate %111 by %c467_i32_179 dim 1 : vector<8x512xf32>, i32 -> vector<8x512xf32>
    %c312_180 = arith.constant 312 : index
    %c0_181 = arith.constant 0 : index
    %191 = vector.load %arg10[%c312_180, %c0_181] : memref<392x512xf32, #tpu.memory_space<vmem>>, vector<8x512xf32>
    tpu.vector_store %arg10[%c312_180, %c0_181], %190 {strides = array<i32>} : memref<392x512xf32, #tpu.memory_space<vmem>>, vector<8x512xf32>,
    %c466_i32_182 = arith.constant 466 : i32
    %192 = tpu.dynamic_rotate %111 by %c466_i32_182 dim 1 : vector<8x512xf32>, i32 -> vector<8x512xf32>
    %c320_183 = arith.constant 320 : index
    %c0_184 = arith.constant 0 : index
    %193 = vector.load %arg10[%c320_183, %c0_184] : memref<392x512xf32, #tpu.memory_space<vmem>>, vector<8x512xf32>
    tpu.vector_store %arg10[%c320_183, %c0_184], %192 {strides = array<i32>} : memref<392x512xf32, #tpu.memory_space<vmem>>, vector<8x512xf32>,
    %c465_i32_185 = arith.constant 465 : i32
    %194 = tpu.dynamic_rotate %111 by %c465_i32_185 dim 1 : vector<8x512xf32>, i32 -> vector<8x512xf32>
    %c328_186 = arith.constant 328 : index
    %c0_187 = arith.constant 0 : index
    %195 = vector.load %arg10[%c328_186, %c0_187] : memref<392x512xf32, #tpu.memory_space<vmem>>, vector<8x512xf32>
    tpu.vector_store %arg10[%c328_186, %c0_187], %194 {strides = array<i32>} : memref<392x512xf32, #tpu.memory_space<vmem>>, vector<8x512xf32>,
    %c449_i32_188 = arith.constant 449 : i32
    %196 = tpu.dynamic_rotate %111 by %c449_i32_188 dim 1 : vector<8x512xf32>, i32 -> vector<8x512xf32>
    %c336_189 = arith.constant 336 : index
    %c0_190 = arith.constant 0 : index
    %197 = vector.load %arg10[%c336_189, %c0_190] : memref<392x512xf32, #tpu.memory_space<vmem>>, vector<8x512xf32>
    tpu.vector_store %arg10[%c336_189, %c0_190], %196 {strides = array<i32>} : memref<392x512xf32, #tpu.memory_space<vmem>>, vector<8x512xf32>,
    %c448_i32_191 = arith.constant 448 : i32
    %198 = tpu.dynamic_rotate %111 by %c448_i32_191 dim 1 : vector<8x512xf32>, i32 -> vector<8x512xf32>
    %c344_192 = arith.constant 344 : index
    %c0_193 = arith.constant 0 : index
    %199 = vector.load %arg10[%c344_192, %c0_193] : memref<392x512xf32, #tpu.memory_space<vmem>>, vector<8x512xf32>
    tpu.vector_store %arg10[%c344_192, %c0_193], %198 {strides = array<i32>} : memref<392x512xf32, #tpu.memory_space<vmem>>, vector<8x512xf32>,
    %c447_i32_194 = arith.constant 447 : i32
    %200 = tpu.dynamic_rotate %111 by %c447_i32_194 dim 1 : vector<8x512xf32>, i32 -> vector<8x512xf32>
    %c352_195 = arith.constant 352 : index
    %c0_196 = arith.constant 0 : index
    %201 = vector.load %arg10[%c352_195, %c0_196] : memref<392x512xf32, #tpu.memory_space<vmem>>, vector<8x512xf32>
    tpu.vector_store %arg10[%c352_195, %c0_196], %200 {strides = array<i32>} : memref<392x512xf32, #tpu.memory_space<vmem>>, vector<8x512xf32>,
    %c446_i32_197 = arith.constant 446 : i32
    %202 = tpu.dynamic_rotate %111 by %c446_i32_197 dim 1 : vector<8x512xf32>, i32 -> vector<8x512xf32>
    %c360_198 = arith.constant 360 : index
    %c0_199 = arith.constant 0 : index
    %203 = vector.load %arg10[%c360_198, %c0_199] : memref<392x512xf32, #tpu.memory_space<vmem>>, vector<8x512xf32>
    tpu.vector_store %arg10[%c360_198, %c0_199], %202 {strides = array<i32>} : memref<392x512xf32, #tpu.memory_space<vmem>>, vector<8x512xf32>,
    %c445_i32_200 = arith.constant 445 : i32
    %204 = tpu.dynamic_rotate %111 by %c445_i32_200 dim 1 : vector<8x512xf32>, i32 -> vector<8x512xf32>
    %c368_201 = arith.constant 368 : index
    %c0_202 = arith.constant 0 : index
    %205 = vector.load %arg10[%c368_201, %c0_202] : memref<392x512xf32, #tpu.memory_space<vmem>>, vector<8x512xf32>
    tpu.vector_store %arg10[%c368_201, %c0_202], %204 {strides = array<i32>} : memref<392x512xf32, #tpu.memory_space<vmem>>, vector<8x512xf32>,
    %c444_i32_203 = arith.constant 444 : i32
    %206 = tpu.dynamic_rotate %111 by %c444_i32_203 dim 1 : vector<8x512xf32>, i32 -> vector<8x512xf32>
    %c376_204 = arith.constant 376 : index
    %c0_205 = arith.constant 0 : index
    %207 = vector.load %arg10[%c376_204, %c0_205] : memref<392x512xf32, #tpu.memory_space<vmem>>, vector<8x512xf32>
    tpu.vector_store %arg10[%c376_204, %c0_205], %206 {strides = array<i32>} : memref<392x512xf32, #tpu.memory_space<vmem>>, vector<8x512xf32>,
    %c443_i32_206 = arith.constant 443 : i32
    %208 = tpu.dynamic_rotate %111 by %c443_i32_206 dim 1 : vector<8x512xf32>, i32 -> vector<8x512xf32>
    %c384_207 = arith.constant 384 : index
    %c0_208 = arith.constant 0 : index
    %209 = vector.load %arg10[%c384_207, %c0_208] : memref<392x512xf32, #tpu.memory_space<vmem>>, vector<8x512xf32>
    tpu.vector_store %arg10[%c384_207, %c0_208], %208 {strides = array<i32>} : memref<392x512xf32, #tpu.memory_space<vmem>>, vector<8x512xf32>,
    %c0_209 = arith.constant 0 : index
    %c0_210 = arith.constant 0 : index
    %210 = vector.load %arg3[%c0_209, %c0_210] : memref<8x392xf32, #tpu.memory_space<vmem>>, vector<8x392xf32>
    %c0_211 = arith.constant 0 : index
    %c0_212 = arith.constant 0 : index
    %211 = vector.load %arg10[%c0_211, %c0_212] : memref<392x512xf32, #tpu.memory_space<vmem>>, vector<392x512xf32>
    %cst_213 = arith.constant dense<0.000000e+00> : vector<8x512xf32>
    %212 = tpu.matmul %210, %211, %cst_213 {dimension_numbers = #tpu.dot_dimension_numbers<[1], [0], [0], [1], [0, 0, 1, 1], [], []>} : vector<8x392xf32>, vector<392x512xf32>, vector<8x512xf32> -> vector<8x512xf32>
    %c0_214 = arith.constant 0 : index
    %c0_215 = arith.constant 0 : index
    %213 = vector.load %arg6[%c0_214, %c0_215] : memref<8x1xf32, #tpu.memory_space<vmem>>, vector<8x1xf32>
    %214 = vector.broadcast %213 : vector<8x1xf32> to vector<8x512xf32>
    %215 = arith.mulf %212, %214 : vector<8x512xf32>
    %c0_216 = arith.constant 0 : index
    %c0_217 = arith.constant 0 : index
    %216 = vector.load %arg7[%c0_216, %c0_217] : memref<8x1xf32, #tpu.memory_space<vmem>>, vector<8x1xf32>
    %217 = vector.broadcast %216 : vector<8x1xf32> to vector<8x512xf32>
    %218 = arith.addf %215, %217 : vector<8x512xf32>
    %219 = arith.negf %218 : vector<8x512xf32>
    %220 = math.exp %219 : vector<8x512xf32>
    %cst_218 = arith.constant 1.000000e+00 : f32
    %221 = vector.broadcast %cst_218 : f32 to vector<8x512xf32>
    %222 = arith.addf %221, %220 : vector<8x512xf32>
    %223 = arith.divf %221, %222 : vector<8x512xf32>
    %224 = arith.mulf %0, %223 : vector<8x512xf32>
    %c0_219 = arith.constant 0 : index
    %c0_220 = arith.constant 0 : index
    %225 = vector.load %arg9[%c0_219, %c0_220] : memref<8x512xf32, #tpu.memory_space<vmem>>, vector<8x512xf32>
    tpu.vector_store %arg9[%c0_219, %c0_220], %224 {strides = array<i32>} : memref<8x512xf32, #tpu.memory_space<vmem>>, vector<8x512xf32>,
    return
  }
  func.func @transform_0(%arg0: i32) -> (i32, i32) {
    %c0_i32 = arith.constant 0 : i32
    %c0_i32_0 = arith.constant 0 : i32
    return %arg0, %c0_i32 : i32, i32
  }
  func.func @transform_1(%arg0: i32) -> (i32, i32) {
    %c0_i32 = arith.constant 0 : i32
    %c0_i32_0 = arith.constant 0 : i32
    %c0_i32_1 = arith.constant 0 : i32
    return %c0_i32, %c0_i32_0 : i32, i32
  }
  func.func @transform_2(%arg0: i32) -> (i32, i32) {
    %c0_i32 = arith.constant 0 : i32
    %c0_i32_0 = arith.constant 0 : i32
    %c0_i32_1 = arith.constant 0 : i32
    return %c0_i32, %c0_i32_0 : i32, i32
  }
  func.func @transform_3(%arg0: i32) -> (i32, i32) {
    %c0_i32 = arith.constant 0 : i32
    %c0_i32_0 = arith.constant 0 : i32
    %c0_i32_1 = arith.constant 0 : i32
    return %c0_i32, %c0_i32_0 : i32, i32
  }
  func.func @transform_4(%arg0: i32) -> (i32, i32) {
    %c0_i32 = arith.constant 0 : i32
    %c0_i32_0 = arith.constant 0 : i32
    %c0_i32_1 = arith.constant 0 : i32
    return %c0_i32, %c0_i32_0 : i32, i32
  }
  func.func @transform_5(%arg0: i32) -> (i32, i32) {
    %c0_i32 = arith.constant 0 : i32
    %c0_i32_0 = arith.constant 0 : i32
    %c0_i32_1 = arith.constant 0 : i32
    return %c0_i32, %c0_i32_0 : i32, i32
  }
  func.func @transform_6(%arg0: i32) -> (i32, i32) {
    %c0_i32 = arith.constant 0 : i32
    %c0_i32_0 = arith.constant 0 : i32
    %c0_i32_1 = arith.constant 0 : i32
    return %c0_i32, %c0_i32_0 : i32, i32
  }
  func.func @transform_7(%arg0: i32) -> (i32, i32) {
    %c0_i32 = arith.constant 0 : i32
    %c0_i32_0 = arith.constant 0 : i32
    %c0_i32_1 = arith.constant 0 : i32
    return %c0_i32, %c0_i32_0 : i32, i32
  }
  func.func @transform_8(%arg0: i32) -> (i32, i32) {
    %c0_i32 = arith.constant 0 : i32
    %c0_i32_0 = arith.constant 0 : i32
    return %arg0, %c0_i32 : i32, i32
  }
}

</mosaic_0001>

<llo_original>
// kernel: spa_cnn_forward.1
$region0: #{spa_cnn_forward.1}
  #allocation0 [shape = 'u32[]', space=smem, size = 0x4, offset = 0x4, fixed_abs, tag = 'smem constant byte address 0x4 - core index']
  #allocation1 [shape = 'u32[72,128]{1,0:T(1,128)}', space=vmem, size = 0x9000, scoped, tag = 'internal scratch']
  #allocation2 [shape = 'f32[392,512]{1,0:T(8,128)}', space=vmem, size = 0xc4000, scoped, tag = 'scratch operand']
  %s0 = inlined_call_operand.vmem [shape: f32[16,512], index: 0, kind: input, shape index: {}]
  %s1 = inlined_call_operand.vmem [shape: f32[8,392], index: 1, kind: input, shape index: {}]
  %s2 = inlined_call_operand.vmem [shape: f32[8,392], index: 2, kind: input, shape index: {}]
  %s3 = inlined_call_operand.vmem [shape: f32[8,1], index: 3, kind: input, shape index: {}]
  %s4 = inlined_call_operand.vmem [shape: f32[8,1], index: 4, kind: input, shape index: {}]
  %s5 = inlined_call_operand.vmem [shape: f32[8,1], index: 5, kind: input, shape index: {}]
  %s6 = inlined_call_operand.vmem [shape: f32[8,1], index: 6, kind: input, shape index: {}]
  %s7 = inlined_call_operand.vmem [shape: f32[8,512], index: 7, kind: input, shape index: {}]
  %s8 = inlined_call_operand.vmem [shape: f32[16,512], index: 8, kind: output, shape index: {}]
  %s9 = sld [smem:[#allocation0]]
  $region65: #{spa_cnn_forward.1} parent=0
    _
  %s11 = ssub.s32 1, %s9
  %s12 = scalar_select 0, %s11, %s9
  loop: start=0, step=1, limit=4
  $region2: #{spa_cnn_forward.1} parent=0 // loop_pre_header
    _
  $region3: #{spa_cnn_forward.1} parent=0 // loop_header
    %s14 = sphi 0, %s18
    %p15 = scmp.ge.s32.totalorder %s14, 4
    %s24 = sphi 0, %s26
    %s27 = sphi 0, %s24
    %s28 = sphi 0, %s27
    %s44 = sphi 0, %s28
    %s48 = sphi 0, %s48
    %s50 = sphi 0, %s48
    %s51 = sphi 0, %s50
    %s65 = sphi 0, %s51
    %s69 = sphi 0, %s69
    %s71 = sphi 0, %s69
    %s72 = sphi 0, %s71
    %s86 = sphi 0, %s72
    %s90 = sphi 0, %s90
    %s92 = sphi 0, %s90
    %s93 = sphi 0, %s92
    %s107 = sphi 0, %s93
    %s111 = sphi 0, %s111
    %s113 = sphi 0, %s111
    %s114 = sphi 0, %s113
    %s128 = sphi 0, %s114
    %s132 = sphi 0, %s132
    %s134 = sphi 0, %s132
    %s135 = sphi 0, %s134
    %s149 = sphi 0, %s135
    %s153 = sphi 0, %s153
    %s155 = sphi 0, %s153
    %s156 = sphi 0, %s155
    %s170 = sphi 0, %s156
    %s174 = sphi 0, %s174
    %s176 = sphi 0, %s174
    %s177 = sphi 0, %s176
    %s191 = sphi 0, %s177
    %s197 = sphi 0, %s199
    %s200 = sphi 0, %s197
    %s201 = sphi 0, %s200
    %s217 = sphi 0, %s201
  $region4: #{spa_cnn_forward.1} parent=0 // loop_header_branch
    %17 = sbr.rel (%p15) target = $region8
  $region5: #{spa_cnn_forward.1} parent=0 // loop_body
    %s19 = ssub.s32 %s14, 1
    %s20 = ssub.s32 %s14, 2
    %s21 = sadd.s32 %s14, 1
    %s22 = ssub.s32 %s14, %s21
    %p23 = scmp.eq.s32.totalorder %s22, 0
    %s25 = sadd.s32 %s24, 1
    %s26 = scalar_select %p23, %s24, %s25
    %p29 = pneg %p23
    %p30 = scmp.eq.s32.totalorder %s14, 1
    %p31 = por %p29, %p30
    %p32 = scmp.ne.s32.totalorder %s24, %s27
    %p33 = scmp.eq.s32.totalorder %s14, 0
    %p34 = por %p32, %p33
    %p35 = scmp.ne.s32.totalorder %s24, %s27
    %p36 = scmp.eq.s32.totalorder %s19, 1
    %p37 = por %p35, %p36
    %p38 = scmp.ne.s32.totalorder %s27, %s28
    %p39 = scmp.eq.s32.totalorder %s19, 0
    %p40 = por %p38, %p39
    %p41 = scmp.ne.s32.totalorder %s27, %s28
    %p42 = scmp.eq.s32.totalorder %s20, 1
    %p43 = por %p41, %p42
    %p45 = scmp.ne.s32.totalorder %s28, %s44
    %p46 = scmp.eq.s32.totalorder %s20, 0
    %p47 = por %p45, %p46
    %s49 = sadd.s32 %s48, 1
    %p52 = scmp.eq.s32.totalorder %s14, 1
    %p53 = scmp.ne.s32.totalorder %s48, %s50
    %p54 = scmp.eq.s32.totalorder %s14, 0
    %p55 = por %p53, %p54
    %p56 = scmp.ne.s32.totalorder %s48, %s50
    %p57 = scmp.eq.s32.totalorder %s19, 1
    %p58 = por %p56, %p57
    %p59 = scmp.ne.s32.totalorder %s50, %s51
    %p60 = scmp.eq.s32.totalorder %s19, 0
    %p61 = por %p59, %p60
    %p62 = scmp.ne.s32.totalorder %s50, %s51
    %p63 = scmp.eq.s32.totalorder %s20, 1
    %p64 = por %p62, %p63
    %p66 = scmp.ne.s32.totalorder %s51, %s65
    %p67 = scmp.eq.s32.totalorder %s20, 0
    %p68 = por %p66, %p67
    %s70 = sadd.s32 %s69, 1
    %p73 = scmp.eq.s32.totalorder %s14, 1
    %p74 = scmp.ne.s32.totalorder %s69, %s71
    %p75 = scmp.eq.s32.totalorder %s14, 0
    %p76 = por %p74, %p75
    %p77 = scmp.ne.s32.totalorder %s69, %s71
    %p78 = scmp.eq.s32.totalorder %s19, 1
    %p79 = por %p77, %p78
    %p80 = scmp.ne.s32.totalorder %s71, %s72
    %p81 = scmp.eq.s32.totalorder %s19, 0
    %p82 = por %p80, %p81
    %p83 = scmp.ne.s32.totalorder %s71, %s72
    %p84 = scmp.eq.s32.totalorder %s20, 1
    %p85 = por %p83, %p84
    %p87 = scmp.ne.s32.totalorder %s72, %s86
    %p88 = scmp.eq.s32.totalorder %s20, 0
    %p89 = por %p87, %p88
    %s91 = sadd.s32 %s90, 1
    %p94 = scmp.eq.s32.totalorder %s14, 1
    %p95 = scmp.ne.s32.totalorder %s90, %s92
    %p96 = scmp.eq.s32.totalorder %s14, 0
    %p97 = por %p95, %p96
    %p98 = scmp.ne.s32.totalorder %s90, %s92
    %p99 = scmp.eq.s32.totalorder %s19, 1
    %p100 = por %p98, %p99
    %p101 = scmp.ne.s32.totalorder %s92, %s93
    %p102 = scmp.eq.s32.totalorder %s19, 0
    %p103 = por %p101, %p102
    %p104 = scmp.ne.s32.totalorder %s92, %s93
    %p105 = scmp.eq.s32.totalorder %s20, 1
    %p106 = por %p104, %p105
    %p108 = scmp.ne.s32.totalorder %s93, %s107
    %p109 = scmp.eq.s32.totalorder %s20, 0
    %p110 = por %p108, %p109
    %s112 = sadd.s32 %s111, 1
    %p115 = scmp.eq.s32.totalorder %s14, 1
    %p116 = scmp.ne.s32.totalorder %s111, %s113
    %p117 = scmp.eq.s32.totalorder %s14, 0
    %p118 = por %p116, %p117
    %p119 = scmp.ne.s32.totalorder %s111, %s113
    %p120 = scmp.eq.s32.totalorder %s19, 1
    %p121 = por %p119, %p120
    %p122 = scmp.ne.s32.totalorder %s113, %s114
    %p123 = scmp.eq.s32.totalorder %s19, 0
    %p124 = por %p122, %p123
    %p125 = scmp.ne.s32.totalorder %s113, %s114
    %p126 = scmp.eq.s32.totalorder %s20, 1
    %p127 = por %p125, %p126
    %p129 = scmp.ne.s32.totalorder %s114, %s128
    %p130 = scmp.eq.s32.totalorder %s20, 0
    %p131 = por %p129, %p130
    %s133 = sadd.s32 %s132, 1
    %p136 = scmp.eq.s32.totalorder %s14, 1
    %p137 = scmp.ne.s32.totalorder %s132, %s134
    %p138 = scmp.eq.s32.totalorder %s14, 0
    %p139 = por %p137, %p138
    %p140 = scmp.ne.s32.totalorder %s132, %s134
    %p141 = scmp.eq.s32.totalorder %s19, 1
    %p142 = por %p140, %p141
    %p143 = scmp.ne.s32.totalorder %s134, %s135
    %p144 = scmp.eq.s32.totalorder %s19, 0
    %p145 = por %p143, %p144
    %p146 = scmp.ne.s32.totalorder %s134, %s135
    %p147 = scmp.eq.s32.totalorder %s20, 1
    %p148 = por %p146, %p147
    %p150 = scmp.ne.s32.totalorder %s135, %s149
    %p151 = scmp.eq.s32.totalorder %s20, 0
    %p152 = por %p150, %p151
    %s154 = sadd.s32 %s153, 1
    %p157 = scmp.eq.s32.totalorder %s14, 1
    %p158 = scmp.ne.s32.totalorder %s153, %s155
    %p159 = scmp.eq.s32.totalorder %s14, 0
    %p160 = por %p158, %p159
    %p161 = scmp.ne.s32.totalorder %s153, %s155
    %p162 = scmp.eq.s32.totalorder %s19, 1
    %p163 = por %p161, %p162
    %p164 = scmp.ne.s32.totalorder %s155, %s156
    %p165 = scmp.eq.s32.totalorder %s19, 0
    %p166 = por %p164, %p165
    %p167 = scmp.ne.s32.totalorder %s155, %s156
    %p168 = scmp.eq.s32.totalorder %s20, 1
    %p169 = por %p167, %p168
    %p171 = scmp.ne.s32.totalorder %s156, %s170
    %p172 = scmp.eq.s32.totalorder %s20, 0
    %p173 = por %p171, %p172
    %s175 = sadd.s32 %s174, 1
    %p178 = scmp.eq.s32.totalorder %s14, 1
    %p179 = scmp.ne.s32.totalorder %s174, %s176
    %p180 = scmp.eq.s32.totalorder %s14, 0
    %p181 = por %p179, %p180
    %p182 = scmp.ne.s32.totalorder %s174, %s176
    %p183 = scmp.eq.s32.totalorder %s19, 1
    %p184 = por %p182, %p183
    %p185 = scmp.ne.s32.totalorder %s176, %s177
    %p186 = scmp.eq.s32.totalorder %s19, 0
    %p187 = por %p185, %p186
    %p188 = scmp.ne.s32.totalorder %s176, %s177
    %p189 = scmp.eq.s32.totalorder %s20, 1
    %p190 = por %p188, %p189
    %p192 = scmp.ne.s32.totalorder %s177, %s191
    %p193 = scmp.eq.s32.totalorder %s20, 0
    %p194 = por %p192, %p193
    %s195 = ssub.s32 %s14, %s21
    %p196 = scmp.eq.s32.totalorder %s195, 0
    %s198 = sadd.s32 %s197, 1
    %s199 = scalar_select %p196, %s197, %s198
    %p202 = pneg %p196
    %p203 = scmp.eq.s32.totalorder %s14, 1
    %p204 = por %p202, %p203
    %p205 = scmp.ne.s32.totalorder %s197, %s200
    %p206 = scmp.eq.s32.totalorder %s14, 0
    %p207 = por %p205, %p206
    %p208 = scmp.ne.s32.totalorder %s197, %s200
    %p209 = scmp.eq.s32.totalorder %s19, 1
    %p210 = por %p208, %p209
    %p211 = scmp.ne.s32.totalorder %s200, %s201
    %p212 = scmp.eq.s32.totalorder %s19, 0
    %p213 = por %p211, %p212
    %p214 = scmp.ne.s32.totalorder %s200, %s201
    %p215 = scmp.eq.s32.totalorder %s20, 1
    %p216 = por %p214, %p215
    %p218 = scmp.ne.s32.totalorder %s201, %s217
    %p219 = scmp.eq.s32.totalorder %s20, 0
    %p220 = por %p218, %p219
    %p221 = scmp.le.s32.totalorder 1, %s14
    %p222 = scmp.lt.s32.totalorder %s14, 3
    %p223 = pnand %p221, %p222
    %p224 = pneg %p223
    // Predicated region
    $region9: #{spa_cnn_forward.1} parent=5 // pred_check
      _
    $region10: #{spa_cnn_forward.1} parent=5 // pred_check_branch
      %226 = sbr.rel (%p223) target = $region12
    $region11: #{spa_cnn_forward.1} parent=5 // pred_region
      %s227 = ssub.s32 %s14, 1
      // Predicated region
      $region13: #{spa_cnn_forward.1} parent=11 // pred_check
        %p228 = pneg %p61
      $region14: #{spa_cnn_forward.1} parent=11 // pred_check_branch
        %230 = sbr.rel (%p228) target = $region16
      $region15: #{spa_cnn_forward.1} parent=11 // pred_region
        _
      $region16: #{spa_cnn_forward.1} parent=11 // pred_fallthru
        _
      // Predicated region
      $region17: #{spa_cnn_forward.1} parent=11 // pred_check
        %p231 = pneg %p82
      $region18: #{spa_cnn_forward.1} parent=11 // pred_check_branch
        %233 = sbr.rel (%p231) target = $region20
      $region19: #{spa_cnn_forward.1} parent=11 // pred_region
        _
      $region20: #{spa_cnn_forward.1} parent=11 // pred_fallthru
        _
      // Predicated region
      $region21: #{spa_cnn_forward.1} parent=11 // pred_check
        %p234 = pneg %p103
      $region22: #{spa_cnn_forward.1} parent=11 // pred_check_branch
        %236 = sbr.rel (%p234) target = $region24
      $region23: #{spa_cnn_forward.1} parent=11 // pred_region
        _
      $region24: #{spa_cnn_forward.1} parent=11 // pred_fallthru
        _
      // Predicated region
      $region25: #{spa_cnn_forward.1} parent=11 // pred_check
        %p237 = pneg %p124
      $region26: #{spa_cnn_forward.1} parent=11 // pred_check_branch
        %239 = sbr.rel (%p237) target = $region28
      $region27: #{spa_cnn_forward.1} parent=11 // pred_region
        _
      $region28: #{spa_cnn_forward.1} parent=11 // pred_fallthru
        _
      // Predicated region
      $region29: #{spa_cnn_forward.1} parent=11 // pred_check
        %p240 = pneg %p145
      $region30: #{spa_cnn_forward.1} parent=11 // pred_check_branch
        %242 = sbr.rel (%p240) target = $region32
      $region31: #{spa_cnn_forward.1} parent=11 // pred_region
        _
      $region32: #{spa_cnn_forward.1} parent=11 // pred_fallthru
        _
      // Predicated region
      $region33: #{spa_cnn_forward.1} parent=11 // pred_check
        %p243 = pneg %p166
      $region34: #{spa_cnn_forward.1} parent=11 // pred_check_branch
        %245 = sbr.rel (%p243) target = $region36
      $region35: #{spa_cnn_forward.1} parent=11 // pred_region
        _
      $region36: #{spa_cnn_forward.1} parent=11 // pred_fallthru
        _
      // Predicated region
      $region37: #{spa_cnn_forward.1} parent=11 // pred_check
        %p246 = pneg %p187
      $region38: #{spa_cnn_forward.1} parent=11 // pred_check_branch
        %248 = sbr.rel (%p246) target = $region40
      $region39: #{spa_cnn_forward.1} parent=11 // pred_region
        _
      $region40: #{spa_cnn_forward.1} parent=11 // pred_fallthru
        _
    $region12: #{spa_cnn_forward.1} parent=5 // pred_fallthru
      _
    %p249 = scmp.lt.s32.totalorder %s14, 2
    // Predicated region
    $region41: #{spa_cnn_forward.1} parent=5 // pred_check
      %p250 = pneg %p249
    $region42: #{spa_cnn_forward.1} parent=5 // pred_check_branch
      %252 = sbr.rel (%p250) target = $region44
    $region43: #{spa_cnn_forward.1} parent=5 // pred_region
      // Predicated region
      $region45: #{spa_cnn_forward.1} parent=43 // pred_check
        %p253 = pneg %p34
      $region46: #{spa_cnn_forward.1} parent=43 // pred_check_branch
        %255 = sbr.rel (%p253) target = $region48
      $region47: #{spa_cnn_forward.1} parent=43 // pred_region
        %p256 = scmp.lt.s32.totalorder %s14, 1
        %s257 = scalar_select %p256, %s14, 1
        %s258 = smul.addr %s257, 4
        %s259 = smul.addr %s258, 8
        %s260 = scalar_lea.vmem %s0, %s259
      $region48: #{spa_cnn_forward.1} parent=43 // pred_fallthru
        _
    $region44: #{spa_cnn_forward.1} parent=5 // pred_fallthru
      _
    %p261 = scmp.le.s32.totalorder 1, %s14
    %p262 = scmp.lt.s32.totalorder %s14, 3
    %p263 = pnand %p261, %p262
    %p264 = pneg %p263
    // Predicated region
    $region49: #{spa_cnn_forward.1} parent=5 // pred_check
      _
    $region50: #{spa_cnn_forward.1} parent=5 // pred_check_branch
      %266 = sbr.rel (%p263) target = $region52
    $region51: #{spa_cnn_forward.1} parent=5 // pred_region
      %s267 = ssub.s32 %s14, 1
      %p268 = scmp.lt.s32.totalorder %s19, 1
      %s269 = scalar_select %p268, %s19, 1
      %s270 = smul.addr %s269, 4
      %s271 = smul.addr %s270, 8
      %s272 = scalar_lea.vmem %s0, %s271
      %p273 = pneg %p40
      %p274 = pneg %p37
      %p275 = pneg %p61
      %p276 = pneg %p58
      %p277 = pneg %p82
      %p278 = pneg %p79
      %p279 = pneg %p103
      %p280 = pneg %p100
      %p281 = pneg %p124
      %p282 = pneg %p121
      %p283 = pneg %p145
      %p284 = pneg %p142
      %p285 = pneg %p166
      %p286 = pneg %p163
      %p287 = pneg %p187
      %p288 = pneg %p184
      %p289 = pneg %p213
      %p290 = pneg %p210
      %p291 = scmp.lt.s32.totalorder %s19, 1
      %s292 = scalar_select %p291, %s19, 1
      %s293 = smul.addr %s292, 4
      %s294 = smul.addr %s293, 8
      %s295 = scalar_lea.vmem %s8, %s294
      %p296 = scmp.lt.s32.totalorder %s19, 1
      %s297 = scalar_select %p296, %s19, 1
      %s298 = smul.addr %s297, 4
      %s299 = smul.addr %s298, 8
      %s300 = scalar_lea.vmem %s0, %s299
      %p301 = scmp.lt.s32.totalorder %s19, 1
      %s302 = scalar_select %p301, %s19, 1
      %s303 = smul.addr %s302, 4
      %s304 = smul.addr %s303, 8
      %s305 = scalar_lea.vmem %s8, %s304
      %v306 = vld [vmem:[%s300] sm:$0xff]
      %v307 = vld [vmem:[%s300 + $0x8] sm:$0xff]
      %v308 = vld [vmem:[%s300 + $0x10] sm:$0xff]
      %v309 = vld [vmem:[%s300 + $0x18] sm:$0xff]
      %310 = vrot.lane.b32.xlu0 %v306, 69
      %v311 = vpop.permute.xlu0 %310
      %312 = vrot.lane.b32.xlu0 %v307, 69
      %v313 = vpop.permute.xlu0 %312
      %314 = vrot.lane.b32.xlu0 %v308, 69
      %v315 = vpop.permute.xlu0 %314
      %316 = vrot.lane.b32.xlu0 %v309, 69
      %v317 = vpop.permute.xlu0 %316
      %v318 = vlaneseq
      %v319 = vand.u32 %v318, 127
      %vm320 = vcmp.lt.s32.totalorder %v319, 69
      %v321 = vsel %vm320, %v315, %v317
      %v322 = vsel %vm320, %v313, %v315
      %v323 = vsel %vm320, %v311, %v313
      %v324 = vsel %vm320, %v317, %v311
      %325 = vst [vmem:[#allocation2] sm:$0xff] %v324
      %326 = vst [vmem:[#allocation2 + $0x8] sm:$0xff] %v323
      %327 = vst [vmem:[#allocation2 + $0x10] sm:$0xff] %v322
      %328 = vst [vmem:[#allocation2 + $0x18] sm:$0xff] %v321
      %329 = vrot.lane.b32.xlu0 %v306, 68
      %v330 = vpop.permute.xlu0 %329
      %331 = vrot.lane.b32.xlu0 %v307, 68
      %v332 = vpop.permute.xlu0 %331
      %333 = vrot.lane.b32.xlu0 %v308, 68
      %v334 = vpop.permute.xlu0 %333
      %335 = vrot.lane.b32.xlu0 %v309, 68
      %v336 = vpop.permute.xlu0 %335
      %vm337 = vcmp.lt.s32.totalorder %v319, 68
      %v338 = vsel %vm337, %v334, %v336
      %v339 = vsel %vm337, %v332, %v334
      %v340 = vsel %vm337, %v330, %v332
      %v341 = vsel %vm337, %v336, %v330
      %342 = vst [vmem:[#allocation2 + $0x20] sm:$0xff] %v341
      %343 = vst [vmem:[#allocation2 + $0x28] sm:$0xff] %v340
      %344 = vst [vmem:[#allocation2 + $0x30] sm:$0xff] %v339
      %345 = vst [vmem:[#allocation2 + $0x38] sm:$0xff] %v338
      %346 = vrot.lane.b32.xlu0 %v306, 67
      %v347 = vpop.permute.xlu0 %346
      %348 = vrot.lane.b32.xlu0 %v307, 67
      %v349 = vpop.permute.xlu0 %348
      %350 = vrot.lane.b32.xlu0 %v308, 67
      %v351 = vpop.permute.xlu0 %350
      %352 = vrot.lane.b32.xlu0 %v309, 67
      %v353 = vpop.permute.xlu0 %352
      %vm354 = vcmp.lt.s32.totalorder %v319, 67
      %v355 = vsel %vm354, %v351, %v353
      %v356 = vsel %vm354, %v349, %v351
      %v357 = vsel %vm354, %v347, %v349
      %v358 = vsel %vm354, %v353, %v347
      %359 = vst [vmem:[#allocation2 + $0x40] sm:$0xff] %v358
      %360 = vst [vmem:[#allocation2 + $0x48] sm:$0xff] %v357
      %361 = vst [vmem:[#allocation2 + $0x50] sm:$0xff] %v356
      %362 = vst [vmem:[#allocation2 + $0x58] sm:$0xff] %v355
      %363 = vrot.lane.b32.xlu0 %v306, 66
      %v364 = vpop.permute.xlu0 %363
      %365 = vrot.lane.b32.xlu0 %v307, 66
      %v366 = vpop.permute.xlu0 %365
      %367 = vrot.lane.b32.xlu0 %v308, 66
      %v368 = vpop.permute.xlu0 %367
      %369 = vrot.lane.b32.xlu0 %v309, 66
      %v370 = vpop.permute.xlu0 %369
      %vm371 = vcmp.lt.s32.totalorder %v319, 66
      %v372 = vsel %vm371, %v368, %v370
      %v373 = vsel %vm371, %v366, %v368
      %v374 = vsel %vm371, %v364, %v366
      %v375 = vsel %vm371, %v370, %v364
      %376 = vst [vmem:[#allocation2 + $0x60] sm:$0xff] %v375
      %377 = vst [vmem:[#allocation2 + $0x68] sm:$0xff] %v374
      %378 = vst [vmem:[#allocation2 + $0x70] sm:$0xff] %v373
      %379 = vst [vmem:[#allocation2 + $0x78] sm:$0xff] %v372
      %380 = vrot.lane.b32.xlu0 %v306, 65
      %v381 = vpop.permute.xlu0 %380
      %382 = vrot.lane.b32.xlu0 %v307, 65
      %v383 = vpop.permute.xlu0 %382
      %384 = vrot.lane.b32.xlu0 %v308, 65
      %v385 = vpop.permute.xlu0 %384
      %386 = vrot.lane.b32.xlu0 %v309, 65
      %v387 = vpop.permute.xlu0 %386
      %vm388 = vcmp.lt.s32.totalorder %v319, 65
      %v389 = vsel %vm388, %v385, %v387
      %v390 = vsel %vm388, %v383, %v385
      %v391 = vsel %vm388, %v381, %v383
      %v392 = vsel %vm388, %v387, %v381
      %393 = vst [vmem:[#allocation2 + $0x80] sm:$0xff] %v392
      %394 = vst [vmem:[#allocation2 + $0x88] sm:$0xff] %v391
      %395 = vst [vmem:[#allocation2 + $0x90] sm:$0xff] %v390
      %396 = vst [vmem:[#allocation2 + $0x98] sm:$0xff] %v389
      %397 = vrot.lane.b32.xlu0 %v306, 64
      %v398 = vpop.permute.xlu0 %397
      %399 = vrot.lane.b32.xlu0 %v307, 64
      %v400 = vpop.permute.xlu0 %399
      %401 = vrot.lane.b32.xlu0 %v308, 64
      %v402 = vpop.permute.xlu0 %401
      %403 = vrot.lane.b32.xlu0 %v309, 64
      %v404 = vpop.permute.xlu0 %403
      %vm405 = vcmp.lt.s32.totalorder %v319, 64
      %v406 = vsel %vm405, %v402, %v404
      %v407 = vsel %vm405, %v400, %v402
      %v408 = vsel %vm405, %v398, %v400
      %v409 = vsel %vm405, %v404, %v398
      %410 = vst [vmem:[#allocation2 + $0xa0] sm:$0xff] %v409
      %411 = vst [vmem:[#allocation2 + $0xa8] sm:$0xff] %v408
      %412 = vst [vmem:[#allocation2 + $0xb0] sm:$0xff] %v407
      %413 = vst [vmem:[#allocation2 + $0xb8] sm:$0xff] %v406
      %414 = vrot.lane.b32.xlu0 %v306, 63
      %v415 = vpop.permute.xlu0 %414
      %416 = vrot.lane.b32.xlu0 %v307, 63
      %v417 = vpop.permute.xlu0 %416
      %418 = vrot.lane.b32.xlu0 %v308, 63
      %v419 = vpop.permute.xlu0 %418
      %420 = vrot.lane.b32.xlu0 %v309, 63
      %v421 = vpop.permute.xlu0 %420
      %vm422 = vcmp.lt.s32.totalorder %v319, 63
      %v423 = vsel %vm422, %v419, %v421
      %v424 = vsel %vm422, %v417, %v419
      %v425 = vsel %vm422, %v415, %v417
      %v426 = vsel %vm422, %v421, %v415
      %427 = vst [vmem:[#allocation2 + $0xc0] sm:$0xff] %v426
      %428 = vst [vmem:[#allocation2 + $0xc8] sm:$0xff] %v425
      %429 = vst [vmem:[#allocation2 + $0xd0] sm:$0xff] %v424
      %430 = vst [vmem:[#allocation2 + $0xd8] sm:$0xff] %v423
      %431 = vrot.lane.b32.xlu0 %v306, 47
      %v432 = vpop.permute.xlu0 %431
      %433 = vrot.lane.b32.xlu0 %v307, 47
      %v434 = vpop.permute.xlu0 %433
      %435 = vrot.lane.b32.xlu0 %v308, 47
      %v436 = vpop.permute.xlu0 %435
      %437 = vrot.lane.b32.xlu0 %v309, 47
      %v438 = vpop.permute.xlu0 %437
      %vm439 = vcmp.lt.s32.totalorder %v319, 47
      %v440 = vsel %vm439, %v436, %v438
      %v441 = vsel %vm439, %v434, %v436
      %v442 = vsel %vm439, %v432, %v434
      %v443 = vsel %vm439, %v438, %v432
      %444 = vst [vmem:[#allocation2 + $0xe0] sm:$0xff] %v443
      %445 = vst [vmem:[#allocation2 + $0xe8] sm:$0xff] %v442
      %446 = vst [vmem:[#allocation2 + $0xf0] sm:$0xff] %v441
      %447 = vst [vmem:[#allocation2 + $0xf8] sm:$0xff] %v440
      %448 = vrot.lane.b32.xlu0 %v306, 46
      %v449 = vpop.permute.xlu0 %448
      %450 = vrot.lane.b32.xlu0 %v307, 46
      %v451 = vpop.permute.xlu0 %450
      %452 = vrot.lane.b32.xlu0 %v308, 46
      %v453 = vpop.permute.xlu0 %452
      %454 = vrot.lane.b32.xlu0 %v309, 46
      %v455 = vpop.permute.xlu0 %454
      %vm456 = vcmp.lt.s32.totalorder %v319, 46
      %v457 = vsel %vm456, %v453, %v455
      %v458 = vsel %vm456, %v451, %v453
      %v459 = vsel %vm456, %v449, %v451
      %v460 = vsel %vm456, %v455, %v449
      %461 = vst [vmem:[#allocation2 + $0x100] sm:$0xff] %v460
      %462 = vst [vmem:[#allocation2 + $0x108] sm:$0xff] %v459
      %463 = vst [vmem:[#allocation2 + $0x110] sm:$0xff] %v458
      %464 = vst [vmem:[#allocation2 + $0x118] sm:$0xff] %v457
      %465 = vrot.lane.b32.xlu0 %v306, 45
      %v466 = vpop.permute.xlu0 %465
      %467 = vrot.lane.b32.xlu0 %v307, 45
      %v468 = vpop.permute.xlu0 %467
      %469 = vrot.lane.b32.xlu0 %v308, 45
      %v470 = vpop.permute.xlu0 %469
      %471 = vrot.lane.b32.xlu0 %v309, 45
      %v472 = vpop.permute.xlu0 %471
      %vm473 = vcmp.lt.s32.totalorder %v319, 45
      %v474 = vsel %vm473, %v470, %v472
      %v475 = vsel %vm473, %v468, %v470
      %v476 = vsel %vm473, %v466, %v468
      %v477 = vsel %vm473, %v472, %v466
      %478 = vst [vmem:[#allocation2 + $0x120] sm:$0xff] %v477
      %479 = vst [vmem:[#allocation2 + $0x128] sm:$0xff] %v476
      %480 = vst [vmem:[#allocation2 + $0x130] sm:$0xff] %v475
      %481 = vst [vmem:[#allocation2 + $0x138] sm:$0xff] %v474
      %482 = vrot.lane.b32.xlu0 %v306, 44
      %v483 = vpop.permute.xlu0 %482
      %484 = vrot.lane.b32.xlu0 %v307, 44
      %v485 = vpop.permute.xlu0 %484
      %486 = vrot.lane.b32.xlu0 %v308, 44
      %v487 = vpop.permute.xlu0 %486
      %488 = vrot.lane.b32.xlu0 %v309, 44
      %v489 = vpop.permute.xlu0 %488
      %vm490 = vcmp.lt.s32.totalorder %v319, 44
      %v491 = vsel %vm490, %v487, %v489
      %v492 = vsel %vm490, %v485, %v487
      %v493 = vsel %vm490, %v483, %v485
      %v494 = vsel %vm490, %v489, %v483
      %495 = vst [vmem:[#allocation2 + $0x140] sm:$0xff] %v494
      %496 = vst [vmem:[#allocation2 + $0x148] sm:$0xff] %v493
      %497 = vst [vmem:[#allocation2 + $0x150] sm:$0xff] %v492
      %498 = vst [vmem:[#allocation2 + $0x158] sm:$0xff] %v491
      %499 = vrot.lane.b32.xlu0 %v306, 43
      %v500 = vpop.permute.xlu0 %499
      %501 = vrot.lane.b32.xlu0 %v307, 43
      %v502 = vpop.permute.xlu0 %501
      %503 = vrot.lane.b32.xlu0 %v308, 43
      %v504 = vpop.permute.xlu0 %503
      %505 = vrot.lane.b32.xlu0 %v309, 43
      %v506 = vpop.permute.xlu0 %505
      %vm507 = vcmp.lt.s32.totalorder %v319, 43
      %v508 = vsel %vm507, %v504, %v506
      %v509 = vsel %vm507, %v502, %v504
      %v510 = vsel %vm507, %v500, %v502
      %v511 = vsel %vm507, %v506, %v500
      %512 = vst [vmem:[#allocation2 + $0x160] sm:$0xff] %v511
      %513 = vst [vmem:[#allocation2 + $0x168] sm:$0xff] %v510
      %514 = vst [vmem:[#allocation2 + $0x170] sm:$0xff] %v509
      %515 = vst [vmem:[#allocation2 + $0x178] sm:$0xff] %v508
      %516 = vrot.lane.b32.xlu0 %v306, 42
      %v517 = vpop.permute.xlu0 %516
      %518 = vrot.lane.b32.xlu0 %v307, 42
      %v519 = vpop.permute.xlu0 %518
      %520 = vrot.lane.b32.xlu0 %v308, 42
      %v521 = vpop.permute.xlu0 %520
      %522 = vrot.lane.b32.xlu0 %v309, 42
      %v523 = vpop.permute.xlu0 %522
      %vm524 = vcmp.lt.s32.totalorder %v319, 42
      %v525 = vsel %vm524, %v521, %v523
      %v526 = vsel %vm524, %v519, %v521
      %v527 = vsel %vm524, %v517, %v519
      %v528 = vsel %vm524, %v523, %v517
      %529 = vst [vmem:[#allocation2 + $0x180] sm:$0xff] %v528
      %530 = vst [vmem:[#allocation2 + $0x188] sm:$0xff] %v527
      %531 = vst [vmem:[#allocation2 + $0x190] sm:$0xff] %v526
      %532 = vst [vmem:[#allocation2 + $0x198] sm:$0xff] %v525
      %533 = vrot.lane.b32.xlu0 %v306, 41
      %v534 = vpop.permute.xlu0 %533
      %535 = vrot.lane.b32.xlu0 %v307, 41
      %v536 = vpop.permute.xlu0 %535
      %537 = vrot.lane.b32.xlu0 %v308, 41
      %v538 = vpop.permute.xlu0 %537
      %539 = vrot.lane.b32.xlu0 %v309, 41
      %v540 = vpop.permute.xlu0 %539
      %vm541 = vcmp.lt.s32.totalorder %v319, 41
      %v542 = vsel %vm541, %v538, %v540
      %v543 = vsel %vm541, %v536, %v538
      %v544 = vsel %vm541, %v534, %v536
      %v545 = vsel %vm541, %v540, %v534
      %546 = vst [vmem:[#allocation2 + $0x1a0] sm:$0xff] %v545
      %547 = vst [vmem:[#allocation2 + $0x1a8] sm:$0xff] %v544
      %548 = vst [vmem:[#allocation2 + $0x1b0] sm:$0xff] %v543
      %549 = vst [vmem:[#allocation2 + $0x1b8] sm:$0xff] %v542
      %550 = vrot.lane.b32.xlu0 %v306, 25
      %v551 = vpop.permute.xlu0 %550
      %552 = vrot.lane.b32.xlu0 %v307, 25
      %v553 = vpop.permute.xlu0 %552
      %554 = vrot.lane.b32.xlu0 %v308, 25
      %v555 = vpop.permute.xlu0 %554
      %556 = vrot.lane.b32.xlu0 %v309, 25
      %v557 = vpop.permute.xlu0 %556
      %vm558 = vcmp.lt.s32.totalorder %v319, 25
      %v559 = vsel %vm558, %v555, %v557
      %v560 = vsel %vm558, %v553, %v555
      %v561 = vsel %vm558, %v551, %v553
      %v562 = vsel %vm558, %v557, %v551
      %563 = vst [vmem:[#allocation2 + $0x1c0] sm:$0xff] %v562
      %564 = vst [vmem:[#allocation2 + $0x1c8] sm:$0xff] %v561
      %565 = vst [vmem:[#allocation2 + $0x1d0] sm:$0xff] %v560
      %566 = vst [vmem:[#allocation2 + $0x1d8] sm:$0xff] %v559
      %567 = vrot.lane.b32.xlu0 %v306, 24
      %v568 = vpop.permute.xlu0 %567
      %569 = vrot.lane.b32.xlu0 %v307, 24
      %v570 = vpop.permute.xlu0 %569
      %571 = vrot.lane.b32.xlu0 %v308, 24
      %v572 = vpop.permute.xlu0 %571
      %573 = vrot.lane.b32.xlu0 %v309, 24
      %v574 = vpop.permute.xlu0 %573
      %vm575 = vcmp.lt.s32.totalorder %v319, 24
      %v576 = vsel %vm575, %v572, %v574
      %v577 = vsel %vm575, %v570, %v572
      %v578 = vsel %vm575, %v568, %v570
      %v579 = vsel %vm575, %v574, %v568
      %580 = vst [vmem:[#allocation2 + $0x1e0] sm:$0xff] %v579
      %581 = vst [vmem:[#allocation2 + $0x1e8] sm:$0xff] %v578
      %582 = vst [vmem:[#allocation2 + $0x1f0] sm:$0xff] %v577
      %583 = vst [vmem:[#allocation2 + $0x1f8] sm:$0xff] %v576
      %584 = vrot.lane.b32.xlu0 %v306, 23
      %v585 = vpop.permute.xlu0 %584
      %586 = vrot.lane.b32.xlu0 %v307, 23
      %v587 = vpop.permute.xlu0 %586
      %588 = vrot.lane.b32.xlu0 %v308, 23
      %v589 = vpop.permute.xlu0 %588
      %590 = vrot.lane.b32.xlu0 %v309, 23
      %v591 = vpop.permute.xlu0 %590
      %vm592 = vcmp.lt.s32.totalorder %v319, 23
      %v593 = vsel %vm592, %v589, %v591
      %v594 = vsel %vm592, %v587, %v589
      %v595 = vsel %vm592, %v585, %v587
      %v596 = vsel %vm592, %v591, %v585
      %597 = vst [vmem:[#allocation2 + $0x200] sm:$0xff] %v596
      %598 = vst [vmem:[#allocation2 + $0x208] sm:$0xff] %v595
      %599 = vst [vmem:[#allocation2 + $0x210] sm:$0xff] %v594
      %600 = vst [vmem:[#allocation2 + $0x218] sm:$0xff] %v593
      %601 = vrot.lane.b32.xlu0 %v306, 22
      %v602 = vpop.permute.xlu0 %601
      %603 = vrot.lane.b32.xlu0 %v307, 22
      %v604 = vpop.permute.xlu0 %603
      %605 = vrot.lane.b32.xlu0 %v308, 22
      %v606 = vpop.permute.xlu0 %605
      %607 = vrot.lane.b32.xlu0 %v309, 22
      %v608 = vpop.permute.xlu0 %607
      %vm609 = vcmp.lt.s32.totalorder %v319, 22
      %v610 = vsel %vm609, %v606, %v608
      %v611 = vsel %vm609, %v604, %v606
      %v612 = vsel %vm609, %v602, %v604
      %v613 = vsel %vm609, %v608, %v602
      %614 = vst [vmem:[#allocation2 + $0x220] sm:$0xff] %v613
      %615 = vst [vmem:[#allocation2 + $0x228] sm:$0xff] %v612
      %616 = vst [vmem:[#allocation2 + $0x230] sm:$0xff] %v611
      %617 = vst [vmem:[#allocation2 + $0x238] sm:$0xff] %v610
      %618 = vrot.lane.b32.xlu0 %v306, 21
      %v619 = vpop.permute.xlu0 %618
      %620 = vrot.lane.b32.xlu0 %v307, 21
      %v621 = vpop.permute.xlu0 %620
      %622 = vrot.lane.b32.xlu0 %v308, 21
      %v623 = vpop.permute.xlu0 %622
      %624 = vrot.lane.b32.xlu0 %v309, 21
      %v625 = vpop.permute.xlu0 %624
      %vm626 = vcmp.lt.s32.totalorder %v319, 21
      %v627 = vsel %vm626, %v623, %v625
      %v628 = vsel %vm626, %v621, %v623
      %v629 = vsel %vm626, %v619, %v621
      %v630 = vsel %vm626, %v625, %v619
      %631 = vst [vmem:[#allocation2 + $0x240] sm:$0xff] %v630
      %632 = vst [vmem:[#allocation2 + $0x248] sm:$0xff] %v629
      %633 = vst [vmem:[#allocation2 + $0x250] sm:$0xff] %v628
      %634 = vst [vmem:[#allocation2 + $0x258] sm:$0xff] %v627
      %635 = vrot.lane.b32.xlu0 %v306, 20
      %v636 = vpop.permute.xlu0 %635
      %637 = vrot.lane.b32.xlu0 %v307, 20
      %v638 = vpop.permute.xlu0 %637
      %639 = vrot.lane.b32.xlu0 %v308, 20
      %v640 = vpop.permute.xlu0 %639
      %641 = vrot.lane.b32.xlu0 %v309, 20
      %v642 = vpop.permute.xlu0 %641
      %vm643 = vcmp.lt.s32.totalorder %v319, 20
      %v644 = vsel %vm643, %v640, %v642
      %v645 = vsel %vm643, %v638, %v640
      %v646 = vsel %vm643, %v636, %v638
      %v647 = vsel %vm643, %v642, %v636
      %648 = vst [vmem:[#allocation2 + $0x260] sm:$0xff] %v647
      %649 = vst [vmem:[#allocation2 + $0x268] sm:$0xff] %v646
      %650 = vst [vmem:[#allocation2 + $0x270] sm:$0xff] %v645
      %651 = vst [vmem:[#allocation2 + $0x278] sm:$0xff] %v644
      %652 = vrot.lane.b32.xlu0 %v306, 19
      %v653 = vpop.permute.xlu0 %652
      %654 = vrot.lane.b32.xlu0 %v307, 19
      %v655 = vpop.permute.xlu0 %654
      %656 = vrot.lane.b32.xlu0 %v308, 19
      %v657 = vpop.permute.xlu0 %656
      %658 = vrot.lane.b32.xlu0 %v309, 19
      %v659 = vpop.permute.xlu0 %658
      %vm660 = vcmp.lt.s32.totalorder %v319, 19
      %v661 = vsel %vm660, %v657, %v659
      %v662 = vsel %vm660, %v655, %v657
      %v663 = vsel %vm660, %v653, %v655
      %v664 = vsel %vm660, %v659, %v653
      %665 = vst [vmem:[#allocation2 + $0x280] sm:$0xff] %v664
      %666 = vst [vmem:[#allocation2 + $0x288] sm:$0xff] %v663
      %667 = vst [vmem:[#allocation2 + $0x290] sm:$0xff] %v662
      %668 = vst [vmem:[#allocation2 + $0x298] sm:$0xff] %v661
      %669 = vrot.lane.b32.xlu0 %v306, 3
      %v670 = vpop.permute.xlu0 %669
      %671 = vrot.lane.b32.xlu0 %v307, 3
      %v672 = vpop.permute.xlu0 %671
      %673 = vrot.lane.b32.xlu0 %v308, 3
      %v674 = vpop.permute.xlu0 %673
      %675 = vrot.lane.b32.xlu0 %v309, 3
      %v676 = vpop.permute.xlu0 %675
      %vm677 = vcmp.lt.s32.totalorder %v319, 3
      %v678 = vsel %vm677, %v674, %v676
      %v679 = vsel %vm677, %v672, %v674
      %v680 = vsel %vm677, %v670, %v672
      %v681 = vsel %vm677, %v676, %v670
      %682 = vst [vmem:[#allocation2 + $0x2a0] sm:$0xff] %v681
      %683 = vst [vmem:[#allocation2 + $0x2a8] sm:$0xff] %v680
      %684 = vst [vmem:[#allocation2 + $0x2b0] sm:$0xff] %v679
      %685 = vst [vmem:[#allocation2 + $0x2b8] sm:$0xff] %v678
      %686 = vrot.lane.b32.xlu0 %v306, 2
      %v687 = vpop.permute.xlu0 %686
      %688 = vrot.lane.b32.xlu0 %v307, 2
      %v689 = vpop.permute.xlu0 %688
      %690 = vrot.lane.b32.xlu0 %v308, 2
      %v691 = vpop.permute.xlu0 %690
      %692 = vrot.lane.b32.xlu0 %v309, 2
      %v693 = vpop.permute.xlu0 %692
      %vm694 = vcmp.lt.s32.totalorder %v319, 2
      %v695 = vsel %vm694, %v691, %v693
      %v696 = vsel %vm694, %v689, %v691
      %v697 = vsel %vm694, %v687, %v689
      %v698 = vsel %vm694, %v693, %v687
      %699 = vst [vmem:[#allocation2 + $0x2c0] sm:$0xff] %v698
      %700 = vst [vmem:[#allocation2 + $0x2c8] sm:$0xff] %v697
      %701 = vst [vmem:[#allocation2 + $0x2d0] sm:$0xff] %v696
      %702 = vst [vmem:[#allocation2 + $0x2d8] sm:$0xff] %v695
      %703 = vrot.lane.b32.xlu0 %v306, 1
      %v704 = vpop.permute.xlu0 %703
      %705 = vrot.lane.b32.xlu0 %v307, 1
      %v706 = vpop.permute.xlu0 %705
      %707 = vrot.lane.b32.xlu0 %v308, 1
      %v708 = vpop.permute.xlu0 %707
      %709 = vrot.lane.b32.xlu0 %v309, 1
      %v710 = vpop.permute.xlu0 %709
      %vm711 = vcmp.lt.s32.totalorder %v319, 1
      %v712 = vsel %vm711, %v708, %v710
      %v713 = vsel %vm711, %v706, %v708
      %v714 = vsel %vm711, %v704, %v706
      %v715 = vsel %vm711, %v710, %v704
      %716 = vst [vmem:[#allocation2 + $0x2e0] sm:$0xff] %v715
      %717 = vst [vmem:[#allocation2 + $0x2e8] sm:$0xff] %v714
      %718 = vst [vmem:[#allocation2 + $0x2f0] sm:$0xff] %v713
      %719 = vst [vmem:[#allocation2 + $0x2f8] sm:$0xff] %v712
      %720 = vst [vmem:[#allocation2 + $0x300] sm:$0xff] %v306
      %721 = vst [vmem:[#allocation2 + $0x308] sm:$0xff] %v307
      %722 = vst [vmem:[#allocation2 + $0x310] sm:$0xff] %v308
      %723 = vst [vmem:[#allocation2 + $0x318] sm:$0xff] %v309
      %724 = vrot.lane.b32.xlu0 %v306, 127
      %v725 = vpop.permute.xlu0 %724
      %726 = vrot.lane.b32.xlu0 %v307, 127
      %v727 = vpop.permute.xlu0 %726
      %728 = vrot.lane.b32.xlu0 %v308, 127
      %v729 = vpop.permute.xlu0 %728
      %730 = vrot.lane.b32.xlu0 %v309, 127
      %v731 = vpop.permute.xlu0 %730
      %vm732 = vcmp.lt.s32.totalorder %v319, 127
      %v733 = vsel %vm732, %v729, %v731
      %v734 = vsel %vm732, %v727, %v729
      %v735 = vsel %vm732, %v725, %v727
      %v736 = vsel %vm732, %v731, %v725
      %737 = vst [vmem:[#allocation2 + $0x320] sm:$0xff] %v735
      %738 = vst [vmem:[#allocation2 + $0x328] sm:$0xff] %v734
      %739 = vst [vmem:[#allocation2 + $0x330] sm:$0xff] %v733
      %740 = vst [vmem:[#allocation2 + $0x338] sm:$0xff] %v736
      %741 = vrot.lane.b32.xlu0 %v306, 126
      %v742 = vpop.permute.xlu0 %741
      %743 = vrot.lane.b32.xlu0 %v307, 126
      %v744 = vpop.permute.xlu0 %743
      %745 = vrot.lane.b32.xlu0 %v308, 126
      %v746 = vpop.permute.xlu0 %745
      %747 = vrot.lane.b32.xlu0 %v309, 126
      %v748 = vpop.permute.xlu0 %747
      %vm749 = vcmp.lt.s32.totalorder %v319, 126
      %v750 = vsel %vm749, %v746, %v748
      %v751 = vsel %vm749, %v744, %v746
      %v752 = vsel %vm749, %v742, %v744
      %v753 = vsel %vm749, %v748, %v742
      %754 = vst [vmem:[#allocation2 + $0x340] sm:$0xff] %v752
      %755 = vst [vmem:[#allocation2 + $0x348] sm:$0xff] %v751
      %756 = vst [vmem:[#allocation2 + $0x350] sm:$0xff] %v750
      %757 = vst [vmem:[#allocation2 + $0x358] sm:$0xff] %v753
      %758 = vrot.lane.b32.xlu0 %v306, 125
      %v759 = vpop.permute.xlu0 %758
      %760 = vrot.lane.b32.xlu0 %v307, 125
      %v761 = vpop.permute.xlu0 %760
      %762 = vrot.lane.b32.xlu0 %v308, 125
      %v763 = vpop.permute.xlu0 %762
      %764 = vrot.lane.b32.xlu0 %v309, 125
      %v765 = vpop.permute.xlu0 %764
      %vm766 = vcmp.lt.s32.totalorder %v319, 125
      %v767 = vsel %vm766, %v763, %v765
      %v768 = vsel %vm766, %v761, %v763
      %v769 = vsel %vm766, %v759, %v761
      %v770 = vsel %vm766, %v765, %v759
      %771 = vst [vmem:[#allocation2 + $0x360] sm:$0xff] %v769
      %772 = vst [vmem:[#allocation2 + $0x368] sm:$0xff] %v768
      %773 = vst [vmem:[#allocation2 + $0x370] sm:$0xff] %v767
      %774 = vst [vmem:[#allocation2 + $0x378] sm:$0xff] %v770
      %775 = vrot.lane.b32.xlu0 %v306, 109
      %v776 = vpop.permute.xlu0 %775
      %777 = vrot.lane.b32.xlu0 %v307, 109
      %v778 = vpop.permute.xlu0 %777
      %779 = vrot.lane.b32.xlu0 %v308, 109
      %v780 = vpop.permute.xlu0 %779
      %781 = vrot.lane.b32.xlu0 %v309, 109
      %v782 = vpop.permute.xlu0 %781
      %vm783 = vcmp.lt.s32.totalorder %v319, 109
      %v784 = vsel %vm783, %v780, %v782
      %v785 = vsel %vm783, %v778, %v780
      %v786 = vsel %vm783, %v776, %v778
      %v787 = vsel %vm783, %v782, %v776
      %788 = vst [vmem:[#allocation2 + $0x380] sm:$0xff] %v786
      %789 = vst [vmem:[#allocation2 + $0x388] sm:$0xff] %v785
      %790 = vst [vmem:[#allocation2 + $0x390] sm:$0xff] %v784
      %791 = vst [vmem:[#allocation2 + $0x398] sm:$0xff] %v787
      %792 = vrot.lane.b32.xlu0 %v306, 108
      %v793 = vpop.permute.xlu0 %792
      %794 = vrot.lane.b32.xlu0 %v307, 108
      %v795 = vpop.permute.xlu0 %794
      %796 = vrot.lane.b32.xlu0 %v308, 108
      %v797 = vpop.permute.xlu0 %796
      %798 = vrot.lane.b32.xlu0 %v309, 108
      %v799 = vpop.permute.xlu0 %798
      %vm800 = vcmp.lt.s32.totalorder %v319, 108
      %v801 = vsel %vm800, %v797, %v799
      %v802 = vsel %vm800, %v795, %v797
      %v803 = vsel %vm800, %v793, %v795
      %v804 = vsel %vm800, %v799, %v793
      %805 = vst [vmem:[#allocation2 + $0x3a0] sm:$0xff] %v803
      %806 = vst [vmem:[#allocation2 + $0x3a8] sm:$0xff] %v802
      %807 = vst [vmem:[#allocation2 + $0x3b0] sm:$0xff] %v801
      %808 = vst [vmem:[#allocation2 + $0x3b8] sm:$0xff] %v804
      %809 = vrot.lane.b32.xlu0 %v306, 107
      %v810 = vpop.permute.xlu0 %809
      %811 = vrot.lane.b32.xlu0 %v307, 107
      %v812 = vpop.permute.xlu0 %811
      %813 = vrot.lane.b32.xlu0 %v308, 107
      %v814 = vpop.permute.xlu0 %813
      %815 = vrot.lane.b32.xlu0 %v309, 107
      %v816 = vpop.permute.xlu0 %815
      %vm817 = vcmp.lt.s32.totalorder %v319, 107
      %v818 = vsel %vm817, %v814, %v816
      %v819 = vsel %vm817, %v812, %v814
      %v820 = vsel %vm817, %v810, %v812
      %v821 = vsel %vm817, %v816, %v810
      %822 = vst [vmem:[#allocation2 + $0x3c0] sm:$0xff] %v820
      %823 = vst [vmem:[#allocation2 + $0x3c8] sm:$0xff] %v819
      %824 = vst [vmem:[#allocation2 + $0x3d0] sm:$0xff] %v818
      %825 = vst [vmem:[#allocation2 + $0x3d8] sm:$0xff] %v821
      %826 = vrot.lane.b32.xlu0 %v306, 106
      %v827 = vpop.permute.xlu0 %826
      %828 = vrot.lane.b32.xlu0 %v307, 106
      %v829 = vpop.permute.xlu0 %828
      %830 = vrot.lane.b32.xlu0 %v308, 106
      %v831 = vpop.permute.xlu0 %830
      %832 = vrot.lane.b32.xlu0 %v309, 106
      %v833 = vpop.permute.xlu0 %832
      %vm834 = vcmp.lt.s32.totalorder %v319, 106
      %v835 = vsel %vm834, %v831, %v833
      %v836 = vsel %vm834, %v829, %v831
      %v837 = vsel %vm834, %v827, %v829
      %v838 = vsel %vm834, %v833, %v827
      %839 = vst [vmem:[#allocation2 + $0x3e0] sm:$0xff] %v837
      %840 = vst [vmem:[#allocation2 + $0x3e8] sm:$0xff] %v836
      %841 = vst [vmem:[#allocation2 + $0x3f0] sm:$0xff] %v835
      %842 = vst [vmem:[#allocation2 + $0x3f8] sm:$0xff] %v838
      %843 = vrot.lane.b32.xlu0 %v306, 105
      %v844 = vpop.permute.xlu0 %843
      %845 = vrot.lane.b32.xlu0 %v307, 105
      %v846 = vpop.permute.xlu0 %845
      %847 = vrot.lane.b32.xlu0 %v308, 105
      %v848 = vpop.permute.xlu0 %847
      %849 = vrot.lane.b32.xlu0 %v309, 105
      %v850 = vpop.permute.xlu0 %849
      %vm851 = vcmp.lt.s32.totalorder %v319, 105
      %v852 = vsel %vm851, %v848, %v850
      %v853 = vsel %vm851, %v846, %v848
      %v854 = vsel %vm851, %v844, %v846
      %v855 = vsel %vm851, %v850, %v844
      %856 = vst [vmem:[#allocation2 + $0x400] sm:$0xff] %v854
      %857 = vst [vmem:[#allocation2 + $0x408] sm:$0xff] %v853
      %858 = vst [vmem:[#allocation2 + $0x410] sm:$0xff] %v852
      %859 = vst [vmem:[#allocation2 + $0x418] sm:$0xff] %v855
      %860 = vrot.lane.b32.xlu0 %v306, 104
      %v861 = vpop.permute.xlu0 %860
      %862 = vrot.lane.b32.xlu0 %v307, 104
      %v863 = vpop.permute.xlu0 %862
      %864 = vrot.lane.b32.xlu0 %v308, 104
      %v865 = vpop.permute.xlu0 %864
      %866 = vrot.lane.b32.xlu0 %v309, 104
      %v867 = vpop.permute.xlu0 %866
      %vm868 = vcmp.lt.s32.totalorder %v319, 104
      %v869 = vsel %vm868, %v865, %v867
      %v870 = vsel %vm868, %v863, %v865
      %v871 = vsel %vm868, %v861, %v863
      %v872 = vsel %vm868, %v867, %v861
      %873 = vst [vmem:[#allocation2 + $0x420] sm:$0xff] %v871
      %874 = vst [vmem:[#allocation2 + $0x428] sm:$0xff] %v870
      %875 = vst [vmem:[#allocation2 + $0x430] sm:$0xff] %v869
      %876 = vst [vmem:[#allocation2 + $0x438] sm:$0xff] %v872
      %877 = vrot.lane.b32.xlu0 %v306, 103
      %v878 = vpop.permute.xlu0 %877
      %879 = vrot.lane.b32.xlu0 %v307, 103
      %v880 = vpop.permute.xlu0 %879
      %881 = vrot.lane.b32.xlu0 %v308, 103
      %v882 = vpop.permute.xlu0 %881
      %883 = vrot.lane.b32.xlu0 %v309, 103
      %v884 = vpop.permute.xlu0 %883
      %vm885 = vcmp.lt.s32.totalorder %v319, 103
      %v886 = vsel %vm885, %v882, %v884
      %v887 = vsel %vm885, %v880, %v882
      %v888 = vsel %vm885, %v878, %v880
      %v889 = vsel %vm885, %v884, %v878
      %890 = vst [vmem:[#allocation2 + $0x440] sm:$0xff] %v888
      %891 = vst [vmem:[#allocation2 + $0x448] sm:$0xff] %v887
      %892 = vst [vmem:[#allocation2 + $0x450] sm:$0xff] %v886
      %893 = vst [vmem:[#allocation2 + $0x458] sm:$0xff] %v889
      %894 = vrot.lane.b32.xlu0 %v306, 87
      %v895 = vpop.permute.xlu0 %894
      %896 = vrot.lane.b32.xlu0 %v307, 87
      %v897 = vpop.permute.xlu0 %896
      %898 = vrot.lane.b32.xlu0 %v308, 87
      %v899 = vpop.permute.xlu0 %898
      %900 = vrot.lane.b32.xlu0 %v309, 87
      %v901 = vpop.permute.xlu0 %900
      %vm902 = vcmp.lt.s32.totalorder %v319, 87
      %v903 = vsel %vm902, %v899, %v901
      %v904 = vsel %vm902, %v897, %v899
      %v905 = vsel %vm902, %v895, %v897
      %v906 = vsel %vm902, %v901, %v895
      %907 = vst [vmem:[#allocation2 + $0x460] sm:$0xff] %v905
      %908 = vst [vmem:[#allocation2 + $0x468] sm:$0xff] %v904
      %909 = vst [vmem:[#allocation2 + $0x470] sm:$0xff] %v903
      %910 = vst [vmem:[#allocation2 + $0x478] sm:$0xff] %v906
      %911 = vrot.lane.b32.xlu0 %v306, 86
      %v912 = vpop.permute.xlu0 %911
      %913 = vrot.lane.b32.xlu0 %v307, 86
      %v914 = vpop.permute.xlu0 %913
      %915 = vrot.lane.b32.xlu0 %v308, 86
      %v916 = vpop.permute.xlu0 %915
      %917 = vrot.lane.b32.xlu0 %v309, 86
      %v918 = vpop.permute.xlu0 %917
      %vm919 = vcmp.lt.s32.totalorder %v319, 86
      %v920 = vsel %vm919, %v916, %v918
      %v921 = vsel %vm919, %v914, %v916
      %v922 = vsel %vm919, %v912, %v914
      %v923 = vsel %vm919, %v918, %v912
      %924 = vst [vmem:[#allocation2 + $0x480] sm:$0xff] %v922
      %925 = vst [vmem:[#allocation2 + $0x488] sm:$0xff] %v921
      %926 = vst [vmem:[#allocation2 + $0x490] sm:$0xff] %v920
      %927 = vst [vmem:[#allocation2 + $0x498] sm:$0xff] %v923
      %928 = vrot.lane.b32.xlu0 %v306, 85
      %v929 = vpop.permute.xlu0 %928
      %930 = vrot.lane.b32.xlu0 %v307, 85
      %v931 = vpop.permute.xlu0 %930
      %932 = vrot.lane.b32.xlu0 %v308, 85
      %v933 = vpop.permute.xlu0 %932
      %934 = vrot.lane.b32.xlu0 %v309, 85
      %v935 = vpop.permute.xlu0 %934
      %vm936 = vcmp.lt.s32.totalorder %v319, 85
      %v937 = vsel %vm936, %v933, %v935
      %v938 = vsel %vm936, %v931, %v933
      %v939 = vsel %vm936, %v929, %v931
      %v940 = vsel %vm936, %v935, %v929
      %941 = vst [vmem:[#allocation2 + $0x4a0] sm:$0xff] %v939
      %942 = vst [vmem:[#allocation2 + $0x4a8] sm:$0xff] %v938
      %943 = vst [vmem:[#allocation2 + $0x4b0] sm:$0xff] %v937
      %944 = vst [vmem:[#allocation2 + $0x4b8] sm:$0xff] %v940
      %945 = vrot.lane.b32.xlu0 %v306, 84
      %v946 = vpop.permute.xlu0 %945
      %947 = vrot.lane.b32.xlu0 %v307, 84
      %v948 = vpop.permute.xlu0 %947
      %949 = vrot.lane.b32.xlu0 %v308, 84
      %v950 = vpop.permute.xlu0 %949
      %951 = vrot.lane.b32.xlu0 %v309, 84
      %v952 = vpop.permute.xlu0 %951
      %vm953 = vcmp.lt.s32.totalorder %v319, 84
      %v954 = vsel %vm953, %v950, %v952
      %v955 = vsel %vm953, %v948, %v950
      %v956 = vsel %vm953, %v946, %v948
      %v957 = vsel %vm953, %v952, %v946
      %958 = vst [vmem:[#allocation2 + $0x4c0] sm:$0xff] %v956
      %959 = vst [vmem:[#allocation2 + $0x4c8] sm:$0xff] %v955
      %960 = vst [vmem:[#allocation2 + $0x4d0] sm:$0xff] %v954
      %961 = vst [vmem:[#allocation2 + $0x4d8] sm:$0xff] %v957
      %962 = vrot.lane.b32.xlu0 %v306, 83
      %v963 = vpop.permute.xlu0 %962
      %964 = vrot.lane.b32.xlu0 %v307, 83
      %v965 = vpop.permute.xlu0 %964
      %966 = vrot.lane.b32.xlu0 %v308, 83
      %v967 = vpop.permute.xlu0 %966
      %968 = vrot.lane.b32.xlu0 %v309, 83
      %v969 = vpop.permute.xlu0 %968
      %vm970 = vcmp.lt.s32.totalorder %v319, 83
      %v971 = vsel %vm970, %v967, %v969
      %v972 = vsel %vm970, %v965, %v967
      %v973 = vsel %vm970, %v963, %v965
      %v974 = vsel %vm970, %v969, %v963
      %975 = vst [vmem:[#allocation2 + $0x4e0] sm:$0xff] %v973
      %976 = vst [vmem:[#allocation2 + $0x4e8] sm:$0xff] %v972
      %977 = vst [vmem:[#allocation2 + $0x4f0] sm:$0xff] %v971
      %978 = vst [vmem:[#allocation2 + $0x4f8] sm:$0xff] %v974
      %979 = vrot.lane.b32.xlu0 %v306, 82
      %v980 = vpop.permute.xlu0 %979
      %981 = vrot.lane.b32.xlu0 %v307, 82
      %v982 = vpop.permute.xlu0 %981
      %983 = vrot.lane.b32.xlu0 %v308, 82
      %v984 = vpop.permute.xlu0 %983
      %985 = vrot.lane.b32.xlu0 %v309, 82
      %v986 = vpop.permute.xlu0 %985
      %vm987 = vcmp.lt.s32.totalorder %v319, 82
      %v988 = vsel %vm987, %v984, %v986
      %v989 = vsel %vm987, %v982, %v984
      %v990 = vsel %vm987, %v980, %v982
      %v991 = vsel %vm987, %v986, %v980
      %992 = vst [vmem:[#allocation2 + $0x500] sm:$0xff] %v990
      %993 = vst [vmem:[#allocation2 + $0x508] sm:$0xff] %v989
      %994 = vst [vmem:[#allocation2 + $0x510] sm:$0xff] %v988
      %995 = vst [vmem:[#allocation2 + $0x518] sm:$0xff] %v991
      %996 = vrot.lane.b32.xlu0 %v306, 81
      %v997 = vpop.permute.xlu0 %996
      %998 = vrot.lane.b32.xlu0 %v307, 81
      %v999 = vpop.permute.xlu0 %998
      %1000 = vrot.lane.b32.xlu0 %v308, 81
      %v1001 = vpop.permute.xlu0 %1000
      %1002 = vrot.lane.b32.xlu0 %v309, 81
      %v1003 = vpop.permute.xlu0 %1002
      %vm1004 = vcmp.lt.s32.totalorder %v319, 81
      %v1005 = vsel %vm1004, %v1001, %v1003
      %v1006 = vsel %vm1004, %v999, %v1001
      %v1007 = vsel %vm1004, %v997, %v999
      %v1008 = vsel %vm1004, %v1003, %v997
      %1009 = vst [vmem:[#allocation2 + $0x520] sm:$0xff] %v1007
      %1010 = vst [vmem:[#allocation2 + $0x528] sm:$0xff] %v1006
      %1011 = vst [vmem:[#allocation2 + $0x530] sm:$0xff] %v1005
      %1012 = vst [vmem:[#allocation2 + $0x538] sm:$0xff] %v1008
      %1013 = vst [vmem:[#allocation2 + $0x540] sm:$0xff] %v391
      %1014 = vst [vmem:[#allocation2 + $0x548] sm:$0xff] %v390
      %1015 = vst [vmem:[#allocation2 + $0x550] sm:$0xff] %v389
      %1016 = vst [vmem:[#allocation2 + $0x558] sm:$0xff] %v392
      %1017 = vst [vmem:[#allocation2 + $0x560] sm:$0xff] %v408
      %1018 = vst [vmem:[#allocation2 + $0x568] sm:$0xff] %v407
      %1019 = vst [vmem:[#allocation2 + $0x570] sm:$0xff] %v406
      %1020 = vst [vmem:[#allocation2 + $0x578] sm:$0xff] %v409
      %1021 = vst [vmem:[#allocation2 + $0x580] sm:$0xff] %v425
      %1022 = vst [vmem:[#allocation2 + $0x588] sm:$0xff] %v424
      %1023 = vst [vmem:[#allocation2 + $0x590] sm:$0xff] %v423
      %1024 = vst [vmem:[#allocation2 + $0x598] sm:$0xff] %v426
      %1025 = vrot.lane.b32.xlu0 %v306, 62
      %v1026 = vpop.permute.xlu0 %1025
      %1027 = vrot.lane.b32.xlu0 %v307, 62
      %v1028 = vpop.permute.xlu0 %1027
      %1029 = vrot.lane.b32.xlu0 %v308, 62
      %v1030 = vpop.permute.xlu0 %1029
      %1031 = vrot.lane.b32.xlu0 %v309, 62
      %v1032 = vpop.permute.xlu0 %1031
      %vm1033 = vcmp.lt.s32.totalorder %v319, 62
      %v1034 = vsel %vm1033, %v1030, %v1032
      %v1035 = vsel %vm1033, %v1028, %v1030
      %v1036 = vsel %vm1033, %v1026, %v1028
      %v1037 = vsel %vm1033, %v1032, %v1026
      %1038 = vst [vmem:[#allocation2 + $0x5a0] sm:$0xff] %v1036
      %1039 = vst [vmem:[#allocation2 + $0x5a8] sm:$0xff] %v1035
      %1040 = vst [vmem:[#allocation2 + $0x5b0] sm:$0xff] %v1034
      %1041 = vst [vmem:[#allocation2 + $0x5b8] sm:$0xff] %v1037
      %1042 = vrot.lane.b32.xlu0 %v306, 61
      %v1043 = vpop.permute.xlu0 %1042
      %1044 = vrot.lane.b32.xlu0 %v307, 61
      %v1045 = vpop.permute.xlu0 %1044
      %1046 = vrot.lane.b32.xlu0 %v308, 61
      %v1047 = vpop.permute.xlu0 %1046
      %1048 = vrot.lane.b32.xlu0 %v309, 61
      %v1049 = vpop.permute.xlu0 %1048
      %vm1050 = vcmp.lt.s32.totalorder %v319, 61
      %v1051 = vsel %vm1050, %v1047, %v1049
      %v1052 = vsel %vm1050, %v1045, %v1047
      %v1053 = vsel %vm1050, %v1043, %v1045
      %v1054 = vsel %vm1050, %v1049, %v1043
      %1055 = vst [vmem:[#allocation2 + $0x5c0] sm:$0xff] %v1053
      %1056 = vst [vmem:[#allocation2 + $0x5c8] sm:$0xff] %v1052
      %1057 = vst [vmem:[#allocation2 + $0x5d0] sm:$0xff] %v1051
      %1058 = vst [vmem:[#allocation2 + $0x5d8] sm:$0xff] %v1054
      %1059 = vrot.lane.b32.xlu0 %v306, 60
      %v1060 = vpop.permute.xlu0 %1059
      %1061 = vrot.lane.b32.xlu0 %v307, 60
      %v1062 = vpop.permute.xlu0 %1061
      %1063 = vrot.lane.b32.xlu0 %v308, 60
      %v1064 = vpop.permute.xlu0 %1063
      %1065 = vrot.lane.b32.xlu0 %v309, 60
      %v1066 = vpop.permute.xlu0 %1065
      %vm1067 = vcmp.lt.s32.totalorder %v319, 60
      %v1068 = vsel %vm1067, %v1064, %v1066
      %v1069 = vsel %vm1067, %v1062, %v1064
      %v1070 = vsel %vm1067, %v1060, %v1062
      %v1071 = vsel %vm1067, %v1066, %v1060
      %1072 = vst [vmem:[#allocation2 + $0x5e0] sm:$0xff] %v1070
      %1073 = vst [vmem:[#allocation2 + $0x5e8] sm:$0xff] %v1069
      %1074 = vst [vmem:[#allocation2 + $0x5f0] sm:$0xff] %v1068
      %1075 = vst [vmem:[#allocation2 + $0x5f8] sm:$0xff] %v1071
      %1076 = vrot.lane.b32.xlu0 %v306, 59
      %v1077 = vpop.permute.xlu0 %1076
      %1078 = vrot.lane.b32.xlu0 %v307, 59
      %v1079 = vpop.permute.xlu0 %1078
      %1080 = vrot.lane.b32.xlu0 %v308, 59
      %v1081 = vpop.permute.xlu0 %1080
      %1082 = vrot.lane.b32.xlu0 %v309, 59
      %v1083 = vpop.permute.xlu0 %1082
      %vm1084 = vcmp.lt.s32.totalorder %v319, 59
      %v1085 = vsel %vm1084, %v1081, %v1083
      %v1086 = vsel %vm1084, %v1079, %v1081
      %v1087 = vsel %vm1084, %v1077, %v1079
      %v1088 = vsel %vm1084, %v1083, %v1077
      %1089 = vst [vmem:[#allocation2 + $0x600] sm:$0xff] %v1087
      %1090 = vst [vmem:[#allocation2 + $0x608] sm:$0xff] %v1086
      %1091 = vst [vmem:[#allocation2 + $0x610] sm:$0xff] %v1085
      %1092 = vst [vmem:[#allocation2 + $0x618] sm:$0xff] %v1088
      %v1093 = vld [vmem:[%s1] sm:$0xff]
      %v1094 = vld [vmem:[%s1 + $0x8] sm:$0xff]
      %v1095 = vld [vmem:[%s1 + $0x10] sm:$0xff]
      %v1096 = vld [vmem:[%s1 + $0x18] sm:$0xff]
      %v1097 = vld [vmem:[#allocation2] sm:$0xff]
      %v1098 = vld [vmem:[#allocation2 + $0x8] sm:$0xff]
      %v1099 = vld [vmem:[#allocation2 + $0x10] sm:$0xff]
      %v1100 = vld [vmem:[#allocation2 + $0x18] sm:$0xff]
      %v1101 = vld [vmem:[#allocation2 + $0x20] sm:$0xff]
      %v1102 = vld [vmem:[#allocation2 + $0x28] sm:$0xff]
      %v1103 = vld [vmem:[#allocation2 + $0x30] sm:$0xff]
      %v1104 = vld [vmem:[#allocation2 + $0x38] sm:$0xff]
      %v1105 = vld [vmem:[#allocation2 + $0x40] sm:$0xff]
      %v1106 = vld [vmem:[#allocation2 + $0x48] sm:$0xff]
      %v1107 = vld [vmem:[#allocation2 + $0x50] sm:$0xff]
      %v1108 = vld [vmem:[#allocation2 + $0x58] sm:$0xff]
      %v1109 = vld [vmem:[#allocation2 + $0x60] sm:$0xff]
      %v1110 = vld [vmem:[#allocation2 + $0x68] sm:$0xff]
      %v1111 = vld [vmem:[#allocation2 + $0x70] sm:$0xff]
      %v1112 = vld [vmem:[#allocation2 + $0x78] sm:$0xff]
      %v1113 = vld [vmem:[#allocation2 + $0x80] sm:$0xff]
      %v1114 = vld [vmem:[#allocation2 + $0x88] sm:$0xff]
      %v1115 = vld [vmem:[#allocation2 + $0x90] sm:$0xff]
      %v1116 = vld [vmem:[#allocation2 + $0x98] sm:$0xff]
      %v1117 = vld [vmem:[#allocation2 + $0xa0] sm:$0xff]
      %v1118 = vld [vmem:[#allocation2 + $0xa8] sm:$0xff]
      %v1119 = vld [vmem:[#allocation2 + $0xb0] sm:$0xff]
      %v1120 = vld [vmem:[#allocation2 + $0xb8] sm:$0xff]
      %v1121 = vld [vmem:[#allocation2 + $0xc0] sm:$0xff]
      %v1122 = vld [vmem:[#allocation2 + $0xc8] sm:$0xff]
      %v1123 = vld [vmem:[#allocation2 + $0xd0] sm:$0xff]
      %v1124 = vld [vmem:[#allocation2 + $0xd8] sm:$0xff]
      %v1125 = vld [vmem:[#allocation2 + $0xe0] sm:$0xff]
      %v1126 = vld [vmem:[#allocation2 + $0xe8] sm:$0xff]
      %v1127 = vld [vmem:[#allocation2 + $0xf0] sm:$0xff]
      %v1128 = vld [vmem:[#allocation2 + $0xf8] sm:$0xff]
      %v1129 = vld [vmem:[#allocation2 + $0x100] sm:$0xff]
      %v1130 = vld [vmem:[#allocation2 + $0x108] sm:$0xff]
      %v1131 = vld [vmem:[#allocation2 + $0x110] sm:$0xff]
      %v1132 = vld [vmem:[#allocation2 + $0x118] sm:$0xff]
      %v1133 = vld [vmem:[#allocation2 + $0x120] sm:$0xff]
      %v1134 = vld [vmem:[#allocation2 + $0x128] sm:$0xff]
      %v1135 = vld [vmem:[#allocation2 + $0x130] sm:$0xff]
      %v1136 = vld [vmem:[#allocation2 + $0x138] sm:$0xff]
      %v1137 = vld [vmem:[#allocation2 + $0x140] sm:$0xff]
      %v1138 = vld [vmem:[#allocation2 + $0x148] sm:$0xff]
      %v1139 = vld [vmem:[#allocation2 + $0x150] sm:$0xff]
      %v1140 = vld [vmem:[#allocation2 + $0x158] sm:$0xff]
      %v1141 = vld [vmem:[#allocation2 + $0x160] sm:$0xff]
      %v1142 = vld [vmem:[#allocation2 + $0x168] sm:$0xff]
      %v1143 = vld [vmem:[#allocation2 + $0x170] sm:$0xff]
      %v1144 = vld [vmem:[#allocation2 + $0x178] sm:$0xff]
      %v1145 = vld [vmem:[#allocation2 + $0x180] sm:$0xff]
      %v1146 = vld [vmem:[#allocation2 + $0x188] sm:$0xff]
      %v1147 = vld [vmem:[#allocation2 + $0x190] sm:$0xff]
      %v1148 = vld [vmem:[#allocation2 + $0x198] sm:$0xff]
      %v1149 = vld [vmem:[#allocation2 + $0x1a0] sm:$0xff]
      %v1150 = vld [vmem:[#allocation2 + $0x1a8] sm:$0xff]
      %v1151 = vld [vmem:[#allocation2 + $0x1b0] sm:$0xff]
      %v1152 = vld [vmem:[#allocation2 + $0x1b8] sm:$0xff]
      %v1153 = vld [vmem:[#allocation2 + $0x1c0] sm:$0xff]
      %v1154 = vld [vmem:[#allocation2 + $0x1c8] sm:$0xff]
      %v1155 = vld [vmem:[#allocation2 + $0x1d0] sm:$0xff]
      %v1156 = vld [vmem:[#allocation2 + $0x1d8] sm:$0xff]
      %v1157 = vld [vmem:[#allocation2 + $0x1e0] sm:$0xff]
      %v1158 = vld [vmem:[#allocation2 + $0x1e8] sm:$0xff]
      %v1159 = vld [vmem:[#allocation2 + $0x1f0] sm:$0xff]
      %v1160 = vld [vmem:[#allocation2 + $0x1f8] sm:$0xff]
      %v1161 = vld [vmem:[#allocation2 + $0x200] sm:$0xff]
      %v1162 = vld [vmem:[#allocation2 + $0x208] sm:$0xff]
      %v1163 = vld [vmem:[#allocation2 + $0x210] sm:$0xff]
      %v1164 = vld [vmem:[#allocation2 + $0x218] sm:$0xff]
      %v1165 = vld [vmem:[#allocation2 + $0x220] sm:$0xff]
      %v1166 = vld [vmem:[#allocation2 + $0x228] sm:$0xff]
      %v1167 = vld [vmem:[#allocation2 + $0x230] sm:$0xff]
      %v1168 = vld [vmem:[#allocation2 + $0x238] sm:$0xff]
      %v1169 = vld [vmem:[#allocation2 + $0x240] sm:$0xff]
      %v1170 = vld [vmem:[#allocation2 + $0x248] sm:$0xff]
      %v1171 = vld [vmem:[#allocation2 + $0x250] sm:$0xff]
      %v1172 = vld [vmem:[#allocation2 + $0x258] sm:$0xff]
      %v1173 = vld [vmem:[#allocation2 + $0x260] sm:$0xff]
      %v1174 = vld [vmem:[#allocation2 + $0x268] sm:$0xff]
      %v1175 = vld [vmem:[#allocation2 + $0x270] sm:$0xff]
      %v1176 = vld [vmem:[#allocation2 + $0x278] sm:$0xff]
      %v1177 = vld [vmem:[#allocation2 + $0x280] sm:$0xff]
      %v1178 = vld [vmem:[#allocation2 + $0x288] sm:$0xff]
      %v1179 = vld [vmem:[#allocation2 + $0x290] sm:$0xff]
      %v1180 = vld [vmem:[#allocation2 + $0x298] sm:$0xff]
      %v1181 = vld [vmem:[#allocation2 + $0x2a0] sm:$0xff]
      %v1182 = vld [vmem:[#allocation2 + $0x2a8] sm:$0xff]
      %v1183 = vld [vmem:[#allocation2 + $0x2b0] sm:$0xff]
      %v1184 = vld [vmem:[#allocation2 + $0x2b8] sm:$0xff]
      %v1185 = vld [vmem:[#allocation2 + $0x2c0] sm:$0xff]
      %v1186 = vld [vmem:[#allocation2 + $0x2c8] sm:$0xff]
      %v1187 = vld [vmem:[#allocation2 + $0x2d0] sm:$0xff]
      %v1188 = vld [vmem:[#allocation2 + $0x2d8] sm:$0xff]
      %v1189 = vld [vmem:[#allocation2 + $0x2e0] sm:$0xff]
      %v1190 = vld [vmem:[#allocation2 + $0x2e8] sm:$0xff]
      %v1191 = vld [vmem:[#allocation2 + $0x2f0] sm:$0xff]
      %v1192 = vld [vmem:[#allocation2 + $0x2f8] sm:$0xff]
      %v1193 = vld [vmem:[#allocation2 + $0x300] sm:$0xff]
      %v1194 = vld [vmem:[#allocation2 + $0x308] sm:$0xff]
      %v1195 = vld [vmem:[#allocation2 + $0x310] sm:$0xff]
      %v1196 = vld [vmem:[#allocation2 + $0x318] sm:$0xff]
      %v1197 = vld [vmem:[#allocation2 + $0x320] sm:$0xff]
      %v1198 = vld [vmem:[#allocation2 + $0x328] sm:$0xff]
      %v1199 = vld [vmem:[#allocation2 + $0x330] sm:$0xff]
      %v1200 = vld [vmem:[#allocation2 + $0x338] sm:$0xff]
      %v1201 = vld [vmem:[#allocation2 + $0x340] sm:$0xff]
      %v1202 = vld [vmem:[#allocation2 + $0x348] sm:$0xff]
      %v1203 = vld [vmem:[#allocation2 + $0x350] sm:$0xff]
      %v1204 = vld [vmem:[#allocation2 + $0x358] sm:$0xff]
      %v1205 = vld [vmem:[#allocation2 + $0x360] sm:$0xff]
      %v1206 = vld [vmem:[#allocation2 + $0x368] sm:$0xff]
      %v1207 = vld [vmem:[#allocation2 + $0x370] sm:$0xff]
      %v1208 = vld [vmem:[#allocation2 + $0x378] sm:$0xff]
      %v1209 = vld [vmem:[#allocation2 + $0x380] sm:$0xff]
      %v1210 = vld [vmem:[#allocation2 + $0x388] sm:$0xff]
      %v1211 = vld [vmem:[#allocation2 + $0x390] sm:$0xff]
      %v1212 = vld [vmem:[#allocation2 + $0x398] sm:$0xff]
      %v1213 = vld [vmem:[#allocation2 + $0x3a0] sm:$0xff]
      %v1214 = vld [vmem:[#allocation2 + $0x3a8] sm:$0xff]
      %v1215 = vld [vmem:[#allocation2 + $0x3b0] sm:$0xff]
      %v1216 = vld [vmem:[#allocation2 + $0x3b8] sm:$0xff]
      %v1217 = vld [vmem:[#allocation2 + $0x3c0] sm:$0xff]
      %v1218 = vld [vmem:[#allocation2 + $0x3c8] sm:$0xff]
      %v1219 = vld [vmem:[#allocation2 + $0x3d0] sm:$0xff]
      %v1220 = vld [vmem:[#allocation2 + $0x3d8] sm:$0xff]
      %v1221 = vld [vmem:[#allocation2 + $0x3e0] sm:$0xff]
      %v1222 = vld [vmem:[#allocation2 + $0x3e8] sm:$0xff]
      %v1223 = vld [vmem:[#allocation2 + $0x3f0] sm:$0xff]
      %v1224 = vld [vmem:[#allocation2 + $0x3f8] sm:$0xff]
      %v1225 = vld [vmem:[#allocation2 + $0x400] sm:$0xff]
      %v1226 = vld [vmem:[#allocation2 + $0x408] sm:$0xff]
      %v1227 = vld [vmem:[#allocation2 + $0x410] sm:$0xff]
      %v1228 = vld [vmem:[#allocation2 + $0x418] sm:$0xff]
      %v1229 = vld [vmem:[#allocation2 + $0x420] sm:$0xff]
      %v1230 = vld [vmem:[#allocation2 + $0x428] sm:$0xff]
      %v1231 = vld [vmem:[#allocation2 + $0x430] sm:$0xff]
      %v1232 = vld [vmem:[#allocation2 + $0x438] sm:$0xff]
      %v1233 = vld [vmem:[#allocation2 + $0x440] sm:$0xff]
      %v1234 = vld [vmem:[#allocation2 + $0x448] sm:$0xff]
      %v1235 = vld [vmem:[#allocation2 + $0x450] sm:$0xff]
      %v1236 = vld [vmem:[#allocation2 + $0x458] sm:$0xff]
      %v1237 = vld [vmem:[#allocation2 + $0x460] sm:$0xff]
      %v1238 = vld [vmem:[#allocation2 + $0x468] sm:$0xff]
      %v1239 = vld [vmem:[#allocation2 + $0x470] sm:$0xff]
      %v1240 = vld [vmem:[#allocation2 + $0x478] sm:$0xff]
      %v1241 = vld [vmem:[#allocation2 + $0x480] sm:$0xff]
      %v1242 = vld [vmem:[#allocation2 + $0x488] sm:$0xff]
      %v1243 = vld [vmem:[#allocation2 + $0x490] sm:$0xff]
      %v1244 = vld [vmem:[#allocation2 + $0x498] sm:$0xff]
      %v1245 = vld [vmem:[#allocation2 + $0x4a0] sm:$0xff]
      %v1246 = vld [vmem:[#allocation2 + $0x4a8] sm:$0xff]
      %v1247 = vld [vmem:[#allocation2 + $0x4b0] sm:$0xff]
      %v1248 = vld [vmem:[#allocation2 + $0x4b8] sm:$0xff]
      %v1249 = vld [vmem:[#allocation2 + $0x4c0] sm:$0xff]
      %v1250 = vld [vmem:[#allocation2 + $0x4c8] sm:$0xff]
      %v1251 = vld [vmem:[#allocation2 + $0x4d0] sm:$0xff]
      %v1252 = vld [vmem:[#allocation2 + $0x4d8] sm:$0xff]
      %v1253 = vld [vmem:[#allocation2 + $0x4e0] sm:$0xff]
      %v1254 = vld [vmem:[#allocation2 + $0x4e8] sm:$0xff]
      %v1255 = vld [vmem:[#allocation2 + $0x4f0] sm:$0xff]
      %v1256 = vld [vmem:[#allocation2 + $0x4f8] sm:$0xff]
      %v1257 = vld [vmem:[#allocation2 + $0x500] sm:$0xff]
      %v1258 = vld [vmem:[#allocation2 + $0x508] sm:$0xff]
      %v1259 = vld [vmem:[#allocation2 + $0x510] sm:$0xff]
      %v1260 = vld [vmem:[#allocation2 + $0x518] sm:$0xff]
      %v1261 = vld [vmem:[#allocation2 + $0x520] sm:$0xff]
      %v1262 = vld [vmem:[#allocation2 + $0x528] sm:$0xff]
      %v1263 = vld [vmem:[#allocation2 + $0x530] sm:$0xff]
      %v1264 = vld [vmem:[#allocation2 + $0x538] sm:$0xff]
      %v1265 = vld [vmem:[#allocation2 + $0x540] sm:$0xff]
      %v1266 = vld [vmem:[#allocation2 + $0x548] sm:$0xff]
      %v1267 = vld [vmem:[#allocation2 + $0x550] sm:$0xff]
      %v1268 = vld [vmem:[#allocation2 + $0x558] sm:$0xff]
      %v1269 = vld [vmem:[#allocation2 + $0x560] sm:$0xff]
      %v1270 = vld [vmem:[#allocation2 + $0x568] sm:$0xff]
      %v1271 = vld [vmem:[#allocation2 + $0x570] sm:$0xff]
      %v1272 = vld [vmem:[#allocation2 + $0x578] sm:$0xff]
      %v1273 = vld [vmem:[#allocation2 + $0x580] sm:$0xff]
      %v1274 = vld [vmem:[#allocation2 + $0x588] sm:$0xff]
      %v1275 = vld [vmem:[#allocation2 + $0x590] sm:$0xff]
      %v1276 = vld [vmem:[#allocation2 + $0x598] sm:$0xff]
      %v1277 = vld [vmem:[#allocation2 + $0x5a0] sm:$0xff]
      %v1278 = vld [vmem:[#allocation2 + $0x5a8] sm:$0xff]
      %v1279 = vld [vmem:[#allocation2 + $0x5b0] sm:$0xff]
      %v1280 = vld [vmem:[#allocation2 + $0x5b8] sm:$0xff]
      %v1281 = vld [vmem:[#allocation2 + $0x5c0] sm:$0xff]
      %v1282 = vld [vmem:[#allocation2 + $0x5c8] sm:$0xff]
      %v1283 = vld [vmem:[#allocation2 + $0x5d0] sm:$0xff]
      %v1284 = vld [vmem:[#allocation2 + $0x5d8] sm:$0xff]
      %v1285 = vld [vmem:[#allocation2 + $0x5e0] sm:$0xff]
      %v1286 = vld [vmem:[#allocation2 + $0x5e8] sm:$0xff]
      %v1287 = vld [vmem:[#allocation2 + $0x5f0] sm:$0xff]
      %v1288 = vld [vmem:[#allocation2 + $0x5f8] sm:$0xff]
      %v1289 = vld [vmem:[#allocation2 + $0x600] sm:$0xff]
      %v1290 = vld [vmem:[#allocation2 + $0x608] sm:$0xff]
      %v1291 = vld [vmem:[#allocation2 + $0x610] sm:$0xff]
      %v1292 = vld [vmem:[#allocation2 + $0x618] sm:$0xff]
      %vm1293 = vcmask 64512
      %v1295 = vsel %vm1293, %v1096, 0
      %1297 = vmatpush.msra.mxu0 %v1157
      %1298 = vmatpush.msra.mxu0 %v1153
      %1299 = vmatpush.msra.mxu0 %v1149
      %1300 = vmatpush.msra.mxu0 %v1145
      %1301 = vmatpush.msra.mxu0 %v1141
      %1302 = vmatpush.msra.mxu0 %v1137
      %1303 = vmatpush.msra.mxu0 %v1133
      %1304 = vmatpush.msra.mxu0 %v1129
      %1305 = vmatpush.msra.mxu0 %v1125
      %1306 = vmatpush.msra.mxu0 %v1121
      %1307 = vmatpush.msra.mxu0 %v1117
      %1308 = vmatpush.msra.mxu0 %v1113
      %1309 = vmatpush.msra.mxu0 %v1109
      %1310 = vmatpush.msra.mxu0 %v1105
      %1311 = vmatpush.msra.mxu0 %v1101
      %1312 = vmatpush.msra.mxu0 %v1097
      %1313 = vmatmul.f32.gmra.mxu0 %v1093
      %v1314 = vpop.f32.mrf.mxu0
      %v1315 = vadd.f32 0.0, %v1314
      %1316 = vdwg.mxu0
      %1317 = vmatpush.msra.mxu0 %v1221
      %1318 = vmatpush.msra.mxu0 %v1217
      %1319 = vmatpush.msra.mxu0 %v1213
      %1320 = vmatpush.msra.mxu0 %v1209
      %1321 = vmatpush.msra.mxu0 %v1205
      %1322 = vmatpush.msra.mxu0 %v1201
      %1323 = vmatpush.msra.mxu0 %v1197
      %1324 = vmatpush.msra.mxu0 %v1193
      %1325 = vmatpush.msra.mxu0 %v1189
      %1326 = vmatpush.msra.mxu0 %v1185
      %1327 = vmatpush.msra.mxu0 %v1181
      %1328 = vmatpush.msra.mxu0 %v1177
      %1329 = vmatpush.msra.mxu0 %v1173
      %1330 = vmatpush.msra.mxu0 %v1169
      %1331 = vmatpush.msra.mxu0 %v1165
      %1332 = vmatpush.msra.mxu0 %v1161
      %1333 = vmatmul.f32.gmra.mxu0 %v1094
      %v1334 = vpop.f32.mrf.mxu0
      %v1335 = vadd.f32 %v1315, %v1334
      %1336 = vdwg.mxu0
      %1337 = vmatpush.msra.mxu0 %v1285
      %1338 = vmatpush.msra.mxu0 %v1281
      %1339 = vmatpush.msra.mxu0 %v1277
      %1340 = vmatpush.msra.mxu0 %v1273
      %1341 = vmatpush.msra.mxu0 %v1269
      %1342 = vmatpush.msra.mxu0 %v1265
      %1343 = vmatpush.msra.mxu0 %v1261
      %1344 = vmatpush.msra.mxu0 %v1257
      %1345 = vmatpush.msra.mxu0 %v1253
      %1346 = vmatpush.msra.mxu0 %v1249
      %1347 = vmatpush.msra.mxu0 %v1245
      %1348 = vmatpush.msra.mxu0 %v1241
      %1349 = vmatpush.msra.mxu0 %v1237
      %1350 = vmatpush.msra.mxu0 %v1233
      %1351 = vmatpush.msra.mxu0 %v1229
      %1352 = vmatpush.msra.mxu0 %v1225
      %1353 = vmatmul.f32.gmra.mxu0 %v1095
      %v1354 = vpop.f32.mrf.mxu0
      %v1355 = vadd.f32 %v1335, %v1354
      %1356 = vdwg.mxu0
      %1357 = vmatpush.msra.mxu0 0.0
      %1358 = vmatpush.msra.mxu0 0.0
      %1359 = vmatpush.msra.mxu0 0.0
      %1360 = vmatpush.msra.mxu0 0.0
      %1361 = vmatpush.msra.mxu0 0.0
      %1362 = vmatpush.msra.mxu0 0.0
      %1363 = vmatpush.msra.mxu0 0.0
      %1364 = vmatpush.msra.mxu0 0.0
      %1365 = vmatpush.msra.mxu0 0.0
      %1366 = vmatpush.msra.mxu0 0.0
      %1367 = vmatpush.msra.mxu0 0.0
      %1368 = vmatpush.msra.mxu0 0.0
      %1369 = vmatpush.msra.mxu0 0.0
      %1370 = vmatpush.msra.mxu0 0.0
      %1371 = vmatpush.msra.mxu0 0.0
      %1372 = vmatpush.msra.mxu0 %v1289
      %1373 = vmatmul.f32.gmra.mxu0 %v1295
      %v1374 = vpop.f32.mrf.mxu0
      %v1375 = vadd.f32 %v1355, %v1374
      %1376 = vdwg.mxu0
      %1377 = vmatpush.msra.mxu0 %v1158
      %1378 = vmatpush.msra.mxu0 %v1154
      %1379 = vmatpush.msra.mxu0 %v1150
      %1380 = vmatpush.msra.mxu0 %v1146
      %1381 = vmatpush.msra.mxu0 %v1142
      %1382 = vmatpush.msra.mxu0 %v1138
      %1383 = vmatpush.msra.mxu0 %v1134
      %1384 = vmatpush.msra.mxu0 %v1130
      %1385 = vmatpush.msra.mxu0 %v1126
      %1386 = vmatpush.msra.mxu0 %v1122
      %1387 = vmatpush.msra.mxu0 %v1118
      %1388 = vmatpush.msra.mxu0 %v1114
      %1389 = vmatpush.msra.mxu0 %v1110
      %1390 = vmatpush.msra.mxu0 %v1106
      %1391 = vmatpush.msra.mxu0 %v1102
      %1392 = vmatpush.msra.mxu0 %v1098
      %1393 = vmatmul.f32.gmra.mxu0 %v1093
      %v1394 = vpop.f32.mrf.mxu0
      %v1395 = vadd.f32 0.0, %v1394
      %1396 = vdwg.mxu0
      %1397 = vmatpush.msra.mxu0 %v1222
      %1398 = vmatpush.msra.mxu0 %v1218
      %1399 = vmatpush.msra.mxu0 %v1214
      %1400 = vmatpush.msra.mxu0 %v1210
      %1401 = vmatpush.msra.mxu0 %v1206
      %1402 = vmatpush.msra.mxu0 %v1202
      %1403 = vmatpush.msra.mxu0 %v1198
      %1404 = vmatpush.msra.mxu0 %v1194
      %1405 = vmatpush.msra.mxu0 %v1190
      %1406 = vmatpush.msra.mxu0 %v1186
      %1407 = vmatpush.msra.mxu0 %v1182
      %1408 = vmatpush.msra.mxu0 %v1178
      %1409 = vmatpush.msra.mxu0 %v1174
      %1410 = vmatpush.msra.mxu0 %v1170
      %1411 = vmatpush.msra.mxu0 %v1166
      %1412 = vmatpush.msra.mxu0 %v1162
      %1413 = vmatmul.f32.gmra.mxu0 %v1094
      %v1414 = vpop.f32.mrf.mxu0
      %v1415 = vadd.f32 %v1395, %v1414
      %1416 = vdwg.mxu0
      %1417 = vmatpush.msra.mxu0 %v1286
      %1418 = vmatpush.msra.mxu0 %v1282
      %1419 = vmatpush.msra.mxu0 %v1278
      %1420 = vmatpush.msra.mxu0 %v1274
      %1421 = vmatpush.msra.mxu0 %v1270
      %1422 = vmatpush.msra.mxu0 %v1266
      %1423 = vmatpush.msra.mxu0 %v1262
      %1424 = vmatpush.msra.mxu0 %v1258
      %1425 = vmatpush.msra.mxu0 %v1254
      %1426 = vmatpush.msra.mxu0 %v1250
      %1427 = vmatpush.msra.mxu0 %v1246
      %1428 = vmatpush.msra.mxu0 %v1242
      %1429 = vmatpush.msra.mxu0 %v1238
      %1430 = vmatpush.msra.mxu0 %v1234
      %1431 = vmatpush.msra.mxu0 %v1230
      %1432 = vmatpush.msra.mxu0 %v1226
      %1433 = vmatmul.f32.gmra.mxu0 %v1095
      %v1434 = vpop.f32.mrf.mxu0
      %v1435 = vadd.f32 %v1415, %v1434
      %1436 = vdwg.mxu0
      %1437 = vmatpush.msra.mxu0 0.0
      %1438 = vmatpush.msra.mxu0 0.0
      %1439 = vmatpush.msra.mxu0 0.0
      %1440 = vmatpush.msra.mxu0 0.0
      %1441 = vmatpush.msra.mxu0 0.0
      %1442 = vmatpush.msra.mxu0 0.0
      %1443 = vmatpush.msra.mxu0 0.0
      %1444 = vmatpush.msra.mxu0 0.0
      %1445 = vmatpush.msra.mxu0 0.0
      %1446 = vmatpush.msra.mxu0 0.0
      %1447 = vmatpush.msra.mxu0 0.0
      %1448 = vmatpush.msra.mxu0 0.0
      %1449 = vmatpush.msra.mxu0 0.0
      %1450 = vmatpush.msra.mxu0 0.0
      %1451 = vmatpush.msra.mxu0 0.0
      %1452 = vmatpush.msra.mxu0 %v1290
      %1453 = vmatmul.f32.gmra.mxu0 %v1295
      %v1454 = vpop.f32.mrf.mxu0
      %v1455 = vadd.f32 %v1435, %v1454
      %1456 = vdwg.mxu0
      %1457 = vmatpush.msra.mxu0 %v1159
      %1458 = vmatpush.msra.mxu0 %v1155
      %1459 = vmatpush.msra.mxu0 %v1151
      %1460 = vmatpush.msra.mxu0 %v1147
      %1461 = vmatpush.msra.mxu0 %v1143
      %1462 = vmatpush.msra.mxu0 %v1139
      %1463 = vmatpush.msra.mxu0 %v1135
      %1464 = vmatpush.msra.mxu0 %v1131
      %1465 = vmatpush.msra.mxu0 %v1127
      %1466 = vmatpush.msra.mxu0 %v1123
      %1467 = vmatpush.msra.mxu0 %v1119
      %1468 = vmatpush.msra.mxu0 %v1115
      %1469 = vmatpush.msra.mxu0 %v1111
      %1470 = vmatpush.msra.mxu0 %v1107
      %1471 = vmatpush.msra.mxu0 %v1103
      %1472 = vmatpush.msra.mxu0 %v1099
      %1473 = vmatmul.f32.gmra.mxu0 %v1093
      %v1474 = vpop.f32.mrf.mxu0
      %v1475 = vadd.f32 0.0, %v1474
      %1476 = vdwg.mxu0
      %1477 = vmatpush.msra.mxu0 %v1223
      %1478 = vmatpush.msra.mxu0 %v1219
      %1479 = vmatpush.msra.mxu0 %v1215
      %1480 = vmatpush.msra.mxu0 %v1211
      %1481 = vmatpush.msra.mxu0 %v1207
      %1482 = vmatpush.msra.mxu0 %v1203
      %1483 = vmatpush.msra.mxu0 %v1199
      %1484 = vmatpush.msra.mxu0 %v1195
      %1485 = vmatpush.msra.mxu0 %v1191
      %1486 = vmatpush.msra.mxu0 %v1187
      %1487 = vmatpush.msra.mxu0 %v1183
      %1488 = vmatpush.msra.mxu0 %v1179
      %1489 = vmatpush.msra.mxu0 %v1175
      %1490 = vmatpush.msra.mxu0 %v1171
      %1491 = vmatpush.msra.mxu0 %v1167
      %1492 = vmatpush.msra.mxu0 %v1163
      %1493 = vmatmul.f32.gmra.mxu0 %v1094
      %v1494 = vpop.f32.mrf.mxu0
      %v1495 = vadd.f32 %v1475, %v1494
      %1496 = vdwg.mxu0
      %1497 = vmatpush.msra.mxu0 %v1287
      %1498 = vmatpush.msra.mxu0 %v1283
      %1499 = vmatpush.msra.mxu0 %v1279
      %1500 = vmatpush.msra.mxu0 %v1275
      %1501 = vmatpush.msra.mxu0 %v1271
      %1502 = vmatpush.msra.mxu0 %v1267
      %1503 = vmatpush.msra.mxu0 %v1263
      %1504 = vmatpush.msra.mxu0 %v1259
      %1505 = vmatpush.msra.mxu0 %v1255
      %1506 = vmatpush.msra.mxu0 %v1251
      %1507 = vmatpush.msra.mxu0 %v1247
      %1508 = vmatpush.msra.mxu0 %v1243
      %1509 = vmatpush.msra.mxu0 %v1239
      %1510 = vmatpush.msra.mxu0 %v1235
      %1511 = vmatpush.msra.mxu0 %v1231
      %1512 = vmatpush.msra.mxu0 %v1227
      %1513 = vmatmul.f32.gmra.mxu0 %v1095
      %v1514 = vpop.f32.mrf.mxu0
      %v1515 = vadd.f32 %v1495, %v1514
      %1516 = vdwg.mxu0
      %1517 = vmatpush.msra.mxu0 0.0
      %1518 = vmatpush.msra.mxu0 0.0
      %1519 = vmatpush.msra.mxu0 0.0
      %1520 = vmatpush.msra.mxu0 0.0
      %1521 = vmatpush.msra.mxu0 0.0
      %1522 = vmatpush.msra.mxu0 0.0
      %1523 = vmatpush.msra.mxu0 0.0
      %1524 = vmatpush.msra.mxu0 0.0
      %1525 = vmatpush.msra.mxu0 0.0
      %1526 = vmatpush.msra.mxu0 0.0
      %1527 = vmatpush.msra.mxu0 0.0
      %1528 = vmatpush.msra.mxu0 0.0
      %1529 = vmatpush.msra.mxu0 0.0
      %1530 = vmatpush.msra.mxu0 0.0
      %1531 = vmatpush.msra.mxu0 0.0
      %1532 = vmatpush.msra.mxu0 %v1291
      %1533 = vmatmul.f32.gmra.mxu0 %v1295
      %v1534 = vpop.f32.mrf.mxu0
      %v1535 = vadd.f32 %v1515, %v1534
      %1536 = vdwg.mxu0
      %1537 = vmatpush.msra.mxu0 %v1160
      %1538 = vmatpush.msra.mxu0 %v1156
      %1539 = vmatpush.msra.mxu0 %v1152
      %1540 = vmatpush.msra.mxu0 %v1148
      %1541 = vmatpush.msra.mxu0 %v1144
      %1542 = vmatpush.msra.mxu0 %v1140
      %1543 = vmatpush.msra.mxu0 %v1136
      %1544 = vmatpush.msra.mxu0 %v1132
      %1545 = vmatpush.msra.mxu0 %v1128
      %1546 = vmatpush.msra.mxu0 %v1124
      %1547 = vmatpush.msra.mxu0 %v1120
      %1548 = vmatpush.msra.mxu0 %v1116
      %1549 = vmatpush.msra.mxu0 %v1112
      %1550 = vmatpush.msra.mxu0 %v1108
      %1551 = vmatpush.msra.mxu0 %v1104
      %1552 = vmatpush.msra.mxu0 %v1100
      %1553 = vmatmul.f32.gmra.mxu0 %v1093
      %v1554 = vpop.f32.mrf.mxu0
      %v1555 = vadd.f32 0.0, %v1554
      %1556 = vdwg.mxu0
      %1557 = vmatpush.msra.mxu0 %v1224
      %1558 = vmatpush.msra.mxu0 %v1220
      %1559 = vmatpush.msra.mxu0 %v1216
      %1560 = vmatpush.msra.mxu0 %v1212
      %1561 = vmatpush.msra.mxu0 %v1208
      %1562 = vmatpush.msra.mxu0 %v1204
      %1563 = vmatpush.msra.mxu0 %v1200
      %1564 = vmatpush.msra.mxu0 %v1196
      %1565 = vmatpush.msra.mxu0 %v1192
      %1566 = vmatpush.msra.mxu0 %v1188
      %1567 = vmatpush.msra.mxu0 %v1184
      %1568 = vmatpush.msra.mxu0 %v1180
      %1569 = vmatpush.msra.mxu0 %v1176
      %1570 = vmatpush.msra.mxu0 %v1172
      %1571 = vmatpush.msra.mxu0 %v1168
      %1572 = vmatpush.msra.mxu0 %v1164
      %1573 = vmatmul.f32.gmra.mxu0 %v1094
      %v1574 = vpop.f32.mrf.mxu0
      %v1575 = vadd.f32 %v1555, %v1574
      %1576 = vdwg.mxu0
      %1577 = vmatpush.msra.mxu0 %v1288
      %1578 = vmatpush.msra.mxu0 %v1284
      %1579 = vmatpush.msra.mxu0 %v1280
      %1580 = vmatpush.msra.mxu0 %v1276
      %1581 = vmatpush.msra.mxu0 %v1272
      %1582 = vmatpush.msra.mxu0 %v1268
      %1583 = vmatpush.msra.mxu0 %v1264
      %1584 = vmatpush.msra.mxu0 %v1260
      %1585 = vmatpush.msra.mxu0 %v1256
      %1586 = vmatpush.msra.mxu0 %v1252
      %1587 = vmatpush.msra.mxu0 %v1248
      %1588 = vmatpush.msra.mxu0 %v1244
      %1589 = vmatpush.msra.mxu0 %v1240
      %1590 = vmatpush.msra.mxu0 %v1236
      %1591 = vmatpush.msra.mxu0 %v1232
      %1592 = vmatpush.msra.mxu0 %v1228
      %1593 = vmatmul.f32.gmra.mxu0 %v1095
      %v1594 = vpop.f32.mrf.mxu0
      %v1595 = vadd.f32 %v1575, %v1594
      %1596 = vdwg.mxu0
      %1597 = vmatpush.msra.mxu0 0.0
      %1598 = vmatpush.msra.mxu0 0.0
      %1599 = vmatpush.msra.mxu0 0.0
      %1600 = vmatpush.msra.mxu0 0.0
      %1601 = vmatpush.msra.mxu0 0.0
      %1602 = vmatpush.msra.mxu0 0.0
      %1603 = vmatpush.msra.mxu0 0.0
      %1604 = vmatpush.msra.mxu0 0.0
      %1605 = vmatpush.msra.mxu0 0.0
      %1606 = vmatpush.msra.mxu0 0.0
      %1607 = vmatpush.msra.mxu0 0.0
      %1608 = vmatpush.msra.mxu0 0.0
      %1609 = vmatpush.msra.mxu0 0.0
      %1610 = vmatpush.msra.mxu0 0.0
      %1611 = vmatpush.msra.mxu0 0.0
      %1612 = vmatpush.msra.mxu0 %v1292
      %1613 = vmatmul.f32.gmra.mxu0 %v1295
      %v1614 = vpop.f32.mrf.mxu0
      %v1615 = vadd.f32 %v1595, %v1614
      %1616 = vdwg.mxu0
      %v1617 = vld [vmem:[%s3] sm:$0xff]
      %1619 = vset.pattern.permute.xlu0 0
      %1620 = vperm.xlu0 %1619, %v1617
      %v1621 = vpop.permute.xlu0 %1620
      %v1623 = vmul.f32 %v1375, %v1621
      %v1624 = vmul.f32 %v1455, %v1621
      %v1625 = vmul.f32 %v1535, %v1621
      %v1626 = vmul.f32 %v1615, %v1621
      %v1627 = vld [vmem:[%s4] sm:$0xff]
      %1629 = vset.pattern.permute.xlu0 0
      %1630 = vperm.xlu0 %1629, %v1627
      %v1631 = vpop.permute.xlu0 %1630
      %v1633 = vadd.f32 %v1623, %v1631
      %v1634 = vadd.f32 %v1624, %v1631
      %v1635 = vadd.f32 %v1625, %v1631
      %v1636 = vadd.f32 %v1626, %v1631
      %v1637 = vmax.f32 %v1633, 0.0
      %v1638 = vmax.f32 %v1634, 0.0
      %v1639 = vmax.f32 %v1635, 0.0
      %v1640 = vmax.f32 %v1636, 0.0
      %v1641 = vld [vmem:[%s7] sm:$0xff]
      %v1642 = vld [vmem:[%s7 + $0x8] sm:$0xff]
      %v1643 = vld [vmem:[%s7 + $0x10] sm:$0xff]
      %v1644 = vld [vmem:[%s7 + $0x18] sm:$0xff]
      %v1645 = vmul.f32 %v1637, %v1641
      %v1646 = vmul.f32 %v1638, %v1642
      %v1647 = vmul.f32 %v1639, %v1643
      %v1648 = vmul.f32 %v1640, %v1644
      %1649 = vrot.lane.b32.xlu0 %v1645, 69
      %v1650 = vpop.permute.xlu0 %1649
      %1651 = vrot.lane.b32.xlu0 %v1646, 69
      %v1652 = vpop.permute.xlu0 %1651
      %1653 = vrot.lane.b32.xlu0 %v1647, 69
      %v1654 = vpop.permute.xlu0 %1653
      %1655 = vrot.lane.b32.xlu0 %v1648, 69
      %v1656 = vpop.permute.xlu0 %1655
      %v1657 = vsel %vm320, %v1654, %v1656
      %v1658 = vsel %vm320, %v1652, %v1654
      %v1659 = vsel %vm320, %v1650, %v1652
      %v1660 = vsel %vm320, %v1656, %v1650
      %1661 = vst [vmem:[#allocation2] sm:$0xff] %v1660
      %1662 = vst [vmem:[#allocation2 + $0x8] sm:$0xff] %v1659
      %1663 = vst [vmem:[#allocation2 + $0x10] sm:$0xff] %v1658
      %1664 = vst [vmem:[#allocation2 + $0x18] sm:$0xff] %v1657
      %1665 = vrot.lane.b32.xlu0 %v1645, 68
      %v1666 = vpop.permute.xlu0 %1665
      %1667 = vrot.lane.b32.xlu0 %v1646, 68
      %v1668 = vpop.permute.xlu0 %1667
      %1669 = vrot.lane.b32.xlu0 %v1647, 68
      %v1670 = vpop.permute.xlu0 %1669
      %1671 = vrot.lane.b32.xlu0 %v1648, 68
      %v1672 = vpop.permute.xlu0 %1671
      %v1673 = vsel %vm337, %v1670, %v1672
      %v1674 = vsel %vm337, %v1668, %v1670
      %v1675 = vsel %vm337, %v1666, %v1668
      %v1676 = vsel %vm337, %v1672, %v1666
      %1677 = vst [vmem:[#allocation2 + $0x20] sm:$0xff] %v1676
      %1678 = vst [vmem:[#allocation2 + $0x28] sm:$0xff] %v1675
      %1679 = vst [vmem:[#allocation2 + $0x30] sm:$0xff] %v1674
      %1680 = vst [vmem:[#allocation2 + $0x38] sm:$0xff] %v1673
      %1681 = vrot.lane.b32.xlu0 %v1645, 67
      %v1682 = vpop.permute.xlu0 %1681
      %1683 = vrot.lane.b32.xlu0 %v1646, 67
      %v1684 = vpop.permute.xlu0 %1683
      %1685 = vrot.lane.b32.xlu0 %v1647, 67
      %v1686 = vpop.permute.xlu0 %1685
      %1687 = vrot.lane.b32.xlu0 %v1648, 67
      %v1688 = vpop.permute.xlu0 %1687
      %v1689 = vsel %vm354, %v1686, %v1688
      %v1690 = vsel %vm354, %v1684, %v1686
      %v1691 = vsel %vm354, %v1682, %v1684
      %v1692 = vsel %vm354, %v1688, %v1682
      %1693 = vst [vmem:[#allocation2 + $0x40] sm:$0xff] %v1692
      %1694 = vst [vmem:[#allocation2 + $0x48] sm:$0xff] %v1691
      %1695 = vst [vmem:[#allocation2 + $0x50] sm:$0xff] %v1690
      %1696 = vst [vmem:[#allocation2 + $0x58] sm:$0xff] %v1689
      %1697 = vrot.lane.b32.xlu0 %v1645, 66
      %v1698 = vpop.permute.xlu0 %1697
      %1699 = vrot.lane.b32.xlu0 %v1646, 66
      %v1700 = vpop.permute.xlu0 %1699
      %1701 = vrot.lane.b32.xlu0 %v1647, 66
      %v1702 = vpop.permute.xlu0 %1701
      %1703 = vrot.lane.b32.xlu0 %v1648, 66
      %v1704 = vpop.permute.xlu0 %1703
      %v1705 = vsel %vm371, %v1702, %v1704
      %v1706 = vsel %vm371, %v1700, %v1702
      %v1707 = vsel %vm371, %v1698, %v1700
      %v1708 = vsel %vm371, %v1704, %v1698
      %1709 = vst [vmem:[#allocation2 + $0x60] sm:$0xff] %v1708
      %1710 = vst [vmem:[#allocation2 + $0x68] sm:$0xff] %v1707
      %1711 = vst [vmem:[#allocation2 + $0x70] sm:$0xff] %v1706
      %1712 = vst [vmem:[#allocation2 + $0x78] sm:$0xff] %v1705
      %1713 = vrot.lane.b32.xlu0 %v1645, 65
      %v1714 = vpop.permute.xlu0 %1713
      %1715 = vrot.lane.b32.xlu0 %v1646, 65
      %v1716 = vpop.permute.xlu0 %1715
      %1717 = vrot.lane.b32.xlu0 %v1647, 65
      %v1718 = vpop.permute.xlu0 %1717
      %1719 = vrot.lane.b32.xlu0 %v1648, 65
      %v1720 = vpop.permute.xlu0 %1719
      %v1721 = vsel %vm388, %v1718, %v1720
      %v1722 = vsel %vm388, %v1716, %v1718
      %v1723 = vsel %vm388, %v1714, %v1716
      %v1724 = vsel %vm388, %v1720, %v1714
      %1725 = vst [vmem:[#allocation2 + $0x80] sm:$0xff] %v1724
      %1726 = vst [vmem:[#allocation2 + $0x88] sm:$0xff] %v1723
      %1727 = vst [vmem:[#allocation2 + $0x90] sm:$0xff] %v1722
      %1728 = vst [vmem:[#allocation2 + $0x98] sm:$0xff] %v1721
      %1729 = vrot.lane.b32.xlu0 %v1645, 64
      %v1730 = vpop.permute.xlu0 %1729
      %1731 = vrot.lane.b32.xlu0 %v1646, 64
      %v1732 = vpop.permute.xlu0 %1731
      %1733 = vrot.lane.b32.xlu0 %v1647, 64
      %v1734 = vpop.permute.xlu0 %1733
      %1735 = vrot.lane.b32.xlu0 %v1648, 64
      %v1736 = vpop.permute.xlu0 %1735
      %v1737 = vsel %vm405, %v1734, %v1736
      %v1738 = vsel %vm405, %v1732, %v1734
      %v1739 = vsel %vm405, %v1730, %v1732
      %v1740 = vsel %vm405, %v1736, %v1730
      %1741 = vst [vmem:[#allocation2 + $0xa0] sm:$0xff] %v1740
      %1742 = vst [vmem:[#allocation2 + $0xa8] sm:$0xff] %v1739
      %1743 = vst [vmem:[#allocation2 + $0xb0] sm:$0xff] %v1738
      %1744 = vst [vmem:[#allocation2 + $0xb8] sm:$0xff] %v1737
      %1745 = vrot.lane.b32.xlu0 %v1645, 63
      %v1746 = vpop.permute.xlu0 %1745
      %1747 = vrot.lane.b32.xlu0 %v1646, 63
      %v1748 = vpop.permute.xlu0 %1747
      %1749 = vrot.lane.b32.xlu0 %v1647, 63
      %v1750 = vpop.permute.xlu0 %1749
      %1751 = vrot.lane.b32.xlu0 %v1648, 63
      %v1752 = vpop.permute.xlu0 %1751
      %v1753 = vsel %vm422, %v1750, %v1752
      %v1754 = vsel %vm422, %v1748, %v1750
      %v1755 = vsel %vm422, %v1746, %v1748
      %v1756 = vsel %vm422, %v1752, %v1746
      %1757 = vst [vmem:[#allocation2 + $0xc0] sm:$0xff] %v1756
      %1758 = vst [vmem:[#allocation2 + $0xc8] sm:$0xff] %v1755
      %1759 = vst [vmem:[#allocation2 + $0xd0] sm:$0xff] %v1754
      %1760 = vst [vmem:[#allocation2 + $0xd8] sm:$0xff] %v1753
      %1761 = vrot.lane.b32.xlu0 %v1645, 47
      %v1762 = vpop.permute.xlu0 %1761
      %1763 = vrot.lane.b32.xlu0 %v1646, 47
      %v1764 = vpop.permute.xlu0 %1763
      %1765 = vrot.lane.b32.xlu0 %v1647, 47
      %v1766 = vpop.permute.xlu0 %1765
      %1767 = vrot.lane.b32.xlu0 %v1648, 47
      %v1768 = vpop.permute.xlu0 %1767
      %v1769 = vsel %vm439, %v1766, %v1768
      %v1770 = vsel %vm439, %v1764, %v1766
      %v1771 = vsel %vm439, %v1762, %v1764
      %v1772 = vsel %vm439, %v1768, %v1762
      %1773 = vst [vmem:[#allocation2 + $0xe0] sm:$0xff] %v1772
      %1774 = vst [vmem:[#allocation2 + $0xe8] sm:$0xff] %v1771
      %1775 = vst [vmem:[#allocation2 + $0xf0] sm:$0xff] %v1770
      %1776 = vst [vmem:[#allocation2 + $0xf8] sm:$0xff] %v1769
      %1777 = vrot.lane.b32.xlu0 %v1645, 46
      %v1778 = vpop.permute.xlu0 %1777
      %1779 = vrot.lane.b32.xlu0 %v1646, 46
      %v1780 = vpop.permute.xlu0 %1779
      %1781 = vrot.lane.b32.xlu0 %v1647, 46
      %v1782 = vpop.permute.xlu0 %1781
      %1783 = vrot.lane.b32.xlu0 %v1648, 46
      %v1784 = vpop.permute.xlu0 %1783
      %v1785 = vsel %vm456, %v1782, %v1784
      %v1786 = vsel %vm456, %v1780, %v1782
      %v1787 = vsel %vm456, %v1778, %v1780
      %v1788 = vsel %vm456, %v1784, %v1778
      %1789 = vst [vmem:[#allocation2 + $0x100] sm:$0xff] %v1788
      %1790 = vst [vmem:[#allocation2 + $0x108] sm:$0xff] %v1787
      %1791 = vst [vmem:[#allocation2 + $0x110] sm:$0xff] %v1786
      %1792 = vst [vmem:[#allocation2 + $0x118] sm:$0xff] %v1785
      %1793 = vrot.lane.b32.xlu0 %v1645, 45
      %v1794 = vpop.permute.xlu0 %1793
      %1795 = vrot.lane.b32.xlu0 %v1646, 45
      %v1796 = vpop.permute.xlu0 %1795
      %1797 = vrot.lane.b32.xlu0 %v1647, 45
      %v1798 = vpop.permute.xlu0 %1797
      %1799 = vrot.lane.b32.xlu0 %v1648, 45
      %v1800 = vpop.permute.xlu0 %1799
      %v1801 = vsel %vm473, %v1798, %v1800
      %v1802 = vsel %vm473, %v1796, %v1798
      %v1803 = vsel %vm473, %v1794, %v1796
      %v1804 = vsel %vm473, %v1800, %v1794
      %1805 = vst [vmem:[#allocation2 + $0x120] sm:$0xff] %v1804
      %1806 = vst [vmem:[#allocation2 + $0x128] sm:$0xff] %v1803
      %1807 = vst [vmem:[#allocation2 + $0x130] sm:$0xff] %v1802
      %1808 = vst [vmem:[#allocation2 + $0x138] sm:$0xff] %v1801
      %1809 = vrot.lane.b32.xlu0 %v1645, 44
      %v1810 = vpop.permute.xlu0 %1809
      %1811 = vrot.lane.b32.xlu0 %v1646, 44
      %v1812 = vpop.permute.xlu0 %1811
      %1813 = vrot.lane.b32.xlu0 %v1647, 44
      %v1814 = vpop.permute.xlu0 %1813
      %1815 = vrot.lane.b32.xlu0 %v1648, 44
      %v1816 = vpop.permute.xlu0 %1815
      %v1817 = vsel %vm490, %v1814, %v1816
      %v1818 = vsel %vm490, %v1812, %v1814
      %v1819 = vsel %vm490, %v1810, %v1812
      %v1820 = vsel %vm490, %v1816, %v1810
      %1821 = vst [vmem:[#allocation2 + $0x140] sm:$0xff] %v1820
      %1822 = vst [vmem:[#allocation2 + $0x148] sm:$0xff] %v1819
      %1823 = vst [vmem:[#allocation2 + $0x150] sm:$0xff] %v1818
      %1824 = vst [vmem:[#allocation2 + $0x158] sm:$0xff] %v1817
      %1825 = vrot.lane.b32.xlu0 %v1645, 43
      %v1826 = vpop.permute.xlu0 %1825
      %1827 = vrot.lane.b32.xlu0 %v1646, 43
      %v1828 = vpop.permute.xlu0 %1827
      %1829 = vrot.lane.b32.xlu0 %v1647, 43
      %v1830 = vpop.permute.xlu0 %1829
      %1831 = vrot.lane.b32.xlu0 %v1648, 43
      %v1832 = vpop.permute.xlu0 %1831
      %v1833 = vsel %vm507, %v1830, %v1832
      %v1834 = vsel %vm507, %v1828, %v1830
      %v1835 = vsel %vm507, %v1826, %v1828
      %v1836 = vsel %vm507, %v1832, %v1826
      %1837 = vst [vmem:[#allocation2 + $0x160] sm:$0xff] %v1836
      %1838 = vst [vmem:[#allocation2 + $0x168] sm:$0xff] %v1835
      %1839 = vst [vmem:[#allocation2 + $0x170] sm:$0xff] %v1834
      %1840 = vst [vmem:[#allocation2 + $0x178] sm:$0xff] %v1833
      %1841 = vrot.lane.b32.xlu0 %v1645, 42
      %v1842 = vpop.permute.xlu0 %1841
      %1843 = vrot.lane.b32.xlu0 %v1646, 42
      %v1844 = vpop.permute.xlu0 %1843
      %1845 = vrot.lane.b32.xlu0 %v1647, 42
      %v1846 = vpop.permute.xlu0 %1845
      %1847 = vrot.lane.b32.xlu0 %v1648, 42
      %v1848 = vpop.permute.xlu0 %1847
      %v1849 = vsel %vm524, %v1846, %v1848
      %v1850 = vsel %vm524, %v1844, %v1846
      %v1851 = vsel %vm524, %v1842, %v1844
      %v1852 = vsel %vm524, %v1848, %v1842
      %1853 = vst [vmem:[#allocation2 + $0x180] sm:$0xff] %v1852
      %1854 = vst [vmem:[#allocation2 + $0x188] sm:$0xff] %v1851
      %1855 = vst [vmem:[#allocation2 + $0x190] sm:$0xff] %v1850
      %1856 = vst [vmem:[#allocation2 + $0x198] sm:$0xff] %v1849
      %1857 = vrot.lane.b32.xlu0 %v1645, 41
      %v1858 = vpop.permute.xlu0 %1857
      %1859 = vrot.lane.b32.xlu0 %v1646, 41
      %v1860 = vpop.permute.xlu0 %1859
      %1861 = vrot.lane.b32.xlu0 %v1647, 41
      %v1862 = vpop.permute.xlu0 %1861
      %1863 = vrot.lane.b32.xlu0 %v1648, 41
      %v1864 = vpop.permute.xlu0 %1863
      %v1865 = vsel %vm541, %v1862, %v1864
      %v1866 = vsel %vm541, %v1860, %v1862
      %v1867 = vsel %vm541, %v1858, %v1860
      %v1868 = vsel %vm541, %v1864, %v1858
      %1869 = vst [vmem:[#allocation2 + $0x1a0] sm:$0xff] %v1868
      %1870 = vst [vmem:[#allocation2 + $0x1a8] sm:$0xff] %v1867
      %1871 = vst [vmem:[#allocation2 + $0x1b0] sm:$0xff] %v1866
      %1872 = vst [vmem:[#allocation2 + $0x1b8] sm:$0xff] %v1865
      %1873 = vrot.lane.b32.xlu0 %v1645, 25
      %v1874 = vpop.permute.xlu0 %1873
      %1875 = vrot.lane.b32.xlu0 %v1646, 25
      %v1876 = vpop.permute.xlu0 %1875
      %1877 = vrot.lane.b32.xlu0 %v1647, 25
      %v1878 = vpop.permute.xlu0 %1877
      %1879 = vrot.lane.b32.xlu0 %v1648, 25
      %v1880 = vpop.permute.xlu0 %1879
      %v1881 = vsel %vm558, %v1878, %v1880
      %v1882 = vsel %vm558, %v1876, %v1878
      %v1883 = vsel %vm558, %v1874, %v1876
      %v1884 = vsel %vm558, %v1880, %v1874
      %1885 = vst [vmem:[#allocation2 + $0x1c0] sm:$0xff] %v1884
      %1886 = vst [vmem:[#allocation2 + $0x1c8] sm:$0xff] %v1883
      %1887 = vst [vmem:[#allocation2 + $0x1d0] sm:$0xff] %v1882
      %1888 = vst [vmem:[#allocation2 + $0x1d8] sm:$0xff] %v1881
      %1889 = vrot.lane.b32.xlu0 %v1645, 24
      %v1890 = vpop.permute.xlu0 %1889
      %1891 = vrot.lane.b32.xlu0 %v1646, 24
      %v1892 = vpop.permute.xlu0 %1891
      %1893 = vrot.lane.b32.xlu0 %v1647, 24
      %v1894 = vpop.permute.xlu0 %1893
      %1895 = vrot.lane.b32.xlu0 %v1648, 24
      %v1896 = vpop.permute.xlu0 %1895
      %v1897 = vsel %vm575, %v1894, %v1896
      %v1898 = vsel %vm575, %v1892, %v1894
      %v1899 = vsel %vm575, %v1890, %v1892
      %v1900 = vsel %vm575, %v1896, %v1890
      %1901 = vst [vmem:[#allocation2 + $0x1e0] sm:$0xff] %v1900
      %1902 = vst [vmem:[#allocation2 + $0x1e8] sm:$0xff] %v1899
      %1903 = vst [vmem:[#allocation2 + $0x1f0] sm:$0xff] %v1898
      %1904 = vst [vmem:[#allocation2 + $0x1f8] sm:$0xff] %v1897
      %1905 = vrot.lane.b32.xlu0 %v1645, 23
      %v1906 = vpop.permute.xlu0 %1905
      %1907 = vrot.lane.b32.xlu0 %v1646, 23
      %v1908 = vpop.permute.xlu0 %1907
      %1909 = vrot.lane.b32.xlu0 %v1647, 23
      %v1910 = vpop.permute.xlu0 %1909
      %1911 = vrot.lane.b32.xlu0 %v1648, 23
      %v1912 = vpop.permute.xlu0 %1911
      %v1913 = vsel %vm592, %v1910, %v1912
      %v1914 = vsel %vm592, %v1908, %v1910
      %v1915 = vsel %vm592, %v1906, %v1908
      %v1916 = vsel %vm592, %v1912, %v1906
      %1917 = vst [vmem:[#allocation2 + $0x200] sm:$0xff] %v1916
      %1918 = vst [vmem:[#allocation2 + $0x208] sm:$0xff] %v1915
      %1919 = vst [vmem:[#allocation2 + $0x210] sm:$0xff] %v1914
      %1920 = vst [vmem:[#allocation2 + $0x218] sm:$0xff] %v1913
      %1921 = vrot.lane.b32.xlu0 %v1645, 22
      %v1922 = vpop.permute.xlu0 %1921
      %1923 = vrot.lane.b32.xlu0 %v1646, 22
      %v1924 = vpop.permute.xlu0 %1923
      %1925 = vrot.lane.b32.xlu0 %v1647, 22
      %v1926 = vpop.permute.xlu0 %1925
      %1927 = vrot.lane.b32.xlu0 %v1648, 22
      %v1928 = vpop.permute.xlu0 %1927
      %v1929 = vsel %vm609, %v1926, %v1928
      %v1930 = vsel %vm609, %v1924, %v1926
      %v1931 = vsel %vm609, %v1922, %v1924
      %v1932 = vsel %vm609, %v1928, %v1922
      %1933 = vst [vmem:[#allocation2 + $0x220] sm:$0xff] %v1932
      %1934 = vst [vmem:[#allocation2 + $0x228] sm:$0xff] %v1931
      %1935 = vst [vmem:[#allocation2 + $0x230] sm:$0xff] %v1930
      %1936 = vst [vmem:[#allocation2 + $0x238] sm:$0xff] %v1929
      %1937 = vrot.lane.b32.xlu0 %v1645, 21
      %v1938 = vpop.permute.xlu0 %1937
      %1939 = vrot.lane.b32.xlu0 %v1646, 21
      %v1940 = vpop.permute.xlu0 %1939
      %1941 = vrot.lane.b32.xlu0 %v1647, 21
      %v1942 = vpop.permute.xlu0 %1941
      %1943 = vrot.lane.b32.xlu0 %v1648, 21
      %v1944 = vpop.permute.xlu0 %1943
      %v1945 = vsel %vm626, %v1942, %v1944
      %v1946 = vsel %vm626, %v1940, %v1942
      %v1947 = vsel %vm626, %v1938, %v1940
      %v1948 = vsel %vm626, %v1944, %v1938
      %1949 = vst [vmem:[#allocation2 + $0x240] sm:$0xff] %v1948
      %1950 = vst [vmem:[#allocation2 + $0x248] sm:$0xff] %v1947
      %1951 = vst [vmem:[#allocation2 + $0x250] sm:$0xff] %v1946
      %1952 = vst [vmem:[#allocation2 + $0x258] sm:$0xff] %v1945
      %1953 = vrot.lane.b32.xlu0 %v1645, 20
      %v1954 = vpop.permute.xlu0 %1953
      %1955 = vrot.lane.b32.xlu0 %v1646, 20
      %v1956 = vpop.permute.xlu0 %1955
      %1957 = vrot.lane.b32.xlu0 %v1647, 20
      %v1958 = vpop.permute.xlu0 %1957
      %1959 = vrot.lane.b32.xlu0 %v1648, 20
      %v1960 = vpop.permute.xlu0 %1959
      %v1961 = vsel %vm643, %v1958, %v1960
      %v1962 = vsel %vm643, %v1956, %v1958
      %v1963 = vsel %vm643, %v1954, %v1956
      %v1964 = vsel %vm643, %v1960, %v1954
      %1965 = vst [vmem:[#allocation2 + $0x260] sm:$0xff] %v1964
      %1966 = vst [vmem:[#allocation2 + $0x268] sm:$0xff] %v1963
      %1967 = vst [vmem:[#allocation2 + $0x270] sm:$0xff] %v1962
      %1968 = vst [vmem:[#allocation2 + $0x278] sm:$0xff] %v1961
      %1969 = vrot.lane.b32.xlu0 %v1645, 19
      %v1970 = vpop.permute.xlu0 %1969
      %1971 = vrot.lane.b32.xlu0 %v1646, 19
      %v1972 = vpop.permute.xlu0 %1971
      %1973 = vrot.lane.b32.xlu0 %v1647, 19
      %v1974 = vpop.permute.xlu0 %1973
      %1975 = vrot.lane.b32.xlu0 %v1648, 19
      %v1976 = vpop.permute.xlu0 %1975
      %v1977 = vsel %vm660, %v1974, %v1976
      %v1978 = vsel %vm660, %v1972, %v1974
      %v1979 = vsel %vm660, %v1970, %v1972
      %v1980 = vsel %vm660, %v1976, %v1970
      %1981 = vst [vmem:[#allocation2 + $0x280] sm:$0xff] %v1980
      %1982 = vst [vmem:[#allocation2 + $0x288] sm:$0xff] %v1979
      %1983 = vst [vmem:[#allocation2 + $0x290] sm:$0xff] %v1978
      %1984 = vst [vmem:[#allocation2 + $0x298] sm:$0xff] %v1977
      %1985 = vrot.lane.b32.xlu0 %v1645, 3
      %v1986 = vpop.permute.xlu0 %1985
      %1987 = vrot.lane.b32.xlu0 %v1646, 3
      %v1988 = vpop.permute.xlu0 %1987
      %1989 = vrot.lane.b32.xlu0 %v1647, 3
      %v1990 = vpop.permute.xlu0 %1989
      %1991 = vrot.lane.b32.xlu0 %v1648, 3
      %v1992 = vpop.permute.xlu0 %1991
      %v1993 = vsel %vm677, %v1990, %v1992
      %v1994 = vsel %vm677, %v1988, %v1990
      %v1995 = vsel %vm677, %v1986, %v1988
      %v1996 = vsel %vm677, %v1992, %v1986
      %1997 = vst [vmem:[#allocation2 + $0x2a0] sm:$0xff] %v1996
      %1998 = vst [vmem:[#allocation2 + $0x2a8] sm:$0xff] %v1995
      %1999 = vst [vmem:[#allocation2 + $0x2b0] sm:$0xff] %v1994
      %2000 = vst [vmem:[#allocation2 + $0x2b8] sm:$0xff] %v1993
      %2001 = vrot.lane.b32.xlu0 %v1645, 2
      %v2002 = vpop.permute.xlu0 %2001
      %2003 = vrot.lane.b32.xlu0 %v1646, 2
      %v2004 = vpop.permute.xlu0 %2003
      %2005 = vrot.lane.b32.xlu0 %v1647, 2
      %v2006 = vpop.permute.xlu0 %2005
      %2007 = vrot.lane.b32.xlu0 %v1648, 2
      %v2008 = vpop.permute.xlu0 %2007
      %v2009 = vsel %vm694, %v2006, %v2008
      %v2010 = vsel %vm694, %v2004, %v2006
      %v2011 = vsel %vm694, %v2002, %v2004
      %v2012 = vsel %vm694, %v2008, %v2002
      %2013 = vst [vmem:[#allocation2 + $0x2c0] sm:$0xff] %v2012
      %2014 = vst [vmem:[#allocation2 + $0x2c8] sm:$0xff] %v2011
      %2015 = vst [vmem:[#allocation2 + $0x2d0] sm:$0xff] %v2010
      %2016 = vst [vmem:[#allocation2 + $0x2d8] sm:$0xff] %v2009
      %2017 = vrot.lane.b32.xlu0 %v1645, 1
      %v2018 = vpop.permute.xlu0 %2017
      %2019 = vrot.lane.b32.xlu0 %v1646, 1
      %v2020 = vpop.permute.xlu0 %2019
      %2021 = vrot.lane.b32.xlu0 %v1647, 1
      %v2022 = vpop.permute.xlu0 %2021
      %2023 = vrot.lane.b32.xlu0 %v1648, 1
      %v2024 = vpop.permute.xlu0 %2023
      %v2025 = vsel %vm711, %v2022, %v2024
      %v2026 = vsel %vm711, %v2020, %v2022
      %v2027 = vsel %vm711, %v2018, %v2020
      %v2028 = vsel %vm711, %v2024, %v2018
      %2029 = vst [vmem:[#allocation2 + $0x2e0] sm:$0xff] %v2028
      %2030 = vst [vmem:[#allocation2 + $0x2e8] sm:$0xff] %v2027
      %2031 = vst [vmem:[#allocation2 + $0x2f0] sm:$0xff] %v2026
      %2032 = vst [vmem:[#allocation2 + $0x2f8] sm:$0xff] %v2025
      %2033 = vst [vmem:[#allocation2 + $0x300] sm:$0xff] %v1645
      %2034 = vst [vmem:[#allocation2 + $0x308] sm:$0xff] %v1646
      %2035 = vst [vmem:[#allocation2 + $0x310] sm:$0xff] %v1647
      %2036 = vst [vmem:[#allocation2 + $0x318] sm:$0xff] %v1648
      %2037 = vrot.lane.b32.xlu0 %v1645, 127
      %v2038 = vpop.permute.xlu0 %2037
      %2039 = vrot.lane.b32.xlu0 %v1646, 127
      %v2040 = vpop.permute.xlu0 %2039
      %2041 = vrot.lane.b32.xlu0 %v1647, 127
      %v2042 = vpop.permute.xlu0 %2041
      %2043 = vrot.lane.b32.xlu0 %v1648, 127
      %v2044 = vpop.permute.xlu0 %2043
      %v2045 = vsel %vm732, %v2042, %v2044
      %v2046 = vsel %vm732, %v2040, %v2042
      %v2047 = vsel %vm732, %v2038, %v2040
      %v2048 = vsel %vm732, %v2044, %v2038
      %2049 = vst [vmem:[#allocation2 + $0x320] sm:$0xff] %v2047
      %2050 = vst [vmem:[#allocation2 + $0x328] sm:$0xff] %v2046
      %2051 = vst [vmem:[#allocation2 + $0x330] sm:$0xff] %v2045
      %2052 = vst [vmem:[#allocation2 + $0x338] sm:$0xff] %v2048
      %2053 = vrot.lane.b32.xlu0 %v1645, 126
      %v2054 = vpop.permute.xlu0 %2053
      %2055 = vrot.lane.b32.xlu0 %v1646, 126
      %v2056 = vpop.permute.xlu0 %2055
      %2057 = vrot.lane.b32.xlu0 %v1647, 126
      %v2058 = vpop.permute.xlu0 %2057
      %2059 = vrot.lane.b32.xlu0 %v1648, 126
      %v2060 = vpop.permute.xlu0 %2059
      %v2061 = vsel %vm749, %v2058, %v2060
      %v2062 = vsel %vm749, %v2056, %v2058
      %v2063 = vsel %vm749, %v2054, %v2056
      %v2064 = vsel %vm749, %v2060, %v2054
      %2065 = vst [vmem:[#allocation2 + $0x340] sm:$0xff] %v2063
      %2066 = vst [vmem:[#allocation2 + $0x348] sm:$0xff] %v2062
      %2067 = vst [vmem:[#allocation2 + $0x350] sm:$0xff] %v2061
      %2068 = vst [vmem:[#allocation2 + $0x358] sm:$0xff] %v2064
      %2069 = vrot.lane.b32.xlu0 %v1645, 125
      %v2070 = vpop.permute.xlu0 %2069
      %2071 = vrot.lane.b32.xlu0 %v1646, 125
      %v2072 = vpop.permute.xlu0 %2071
      %2073 = vrot.lane.b32.xlu0 %v1647, 125
      %v2074 = vpop.permute.xlu0 %2073
      %2075 = vrot.lane.b32.xlu0 %v1648, 125
      %v2076 = vpop.permute.xlu0 %2075
      %v2077 = vsel %vm766, %v2074, %v2076
      %v2078 = vsel %vm766, %v2072, %v2074
      %v2079 = vsel %vm766, %v2070, %v2072
      %v2080 = vsel %vm766, %v2076, %v2070
      %2081 = vst [vmem:[#allocation2 + $0x360] sm:$0xff] %v2079
      %2082 = vst [vmem:[#allocation2 + $0x368] sm:$0xff] %v2078
      %2083 = vst [vmem:[#allocation2 + $0x370] sm:$0xff] %v2077
      %2084 = vst [vmem:[#allocation2 + $0x378] sm:$0xff] %v2080
      %2085 = vrot.lane.b32.xlu0 %v1645, 109
      %v2086 = vpop.permute.xlu0 %2085
      %2087 = vrot.lane.b32.xlu0 %v1646, 109
      %v2088 = vpop.permute.xlu0 %2087
      %2089 = vrot.lane.b32.xlu0 %v1647, 109
      %v2090 = vpop.permute.xlu0 %2089
      %2091 = vrot.lane.b32.xlu0 %v1648, 109
      %v2092 = vpop.permute.xlu0 %2091
      %v2093 = vsel %vm783, %v2090, %v2092
      %v2094 = vsel %vm783, %v2088, %v2090
      %v2095 = vsel %vm783, %v2086, %v2088
      %v2096 = vsel %vm783, %v2092, %v2086
      %2097 = vst [vmem:[#allocation2 + $0x380] sm:$0xff] %v2095
      %2098 = vst [vmem:[#allocation2 + $0x388] sm:$0xff] %v2094
      %2099 = vst [vmem:[#allocation2 + $0x390] sm:$0xff] %v2093
      %2100 = vst [vmem:[#allocation2 + $0x398] sm:$0xff] %v2096
      %2101 = vrot.lane.b32.xlu0 %v1645, 108
      %v2102 = vpop.permute.xlu0 %2101
      %2103 = vrot.lane.b32.xlu0 %v1646, 108
      %v2104 = vpop.permute.xlu0 %2103
      %2105 = vrot.lane.b32.xlu0 %v1647, 108
      %v2106 = vpop.permute.xlu0 %2105
      %2107 = vrot.lane.b32.xlu0 %v1648, 108
      %v2108 = vpop.permute.xlu0 %2107
      %v2109 = vsel %vm800, %v2106, %v2108
      %v2110 = vsel %vm800, %v2104, %v2106
      %v2111 = vsel %vm800, %v2102, %v2104
      %v2112 = vsel %vm800, %v2108, %v2102
      %2113 = vst [vmem:[#allocation2 + $0x3a0] sm:$0xff] %v2111
      %2114 = vst [vmem:[#allocation2 + $0x3a8] sm:$0xff] %v2110
      %2115 = vst [vmem:[#allocation2 + $0x3b0] sm:$0xff] %v2109
      %2116 = vst [vmem:[#allocation2 + $0x3b8] sm:$0xff] %v2112
      %2117 = vrot.lane.b32.xlu0 %v1645, 107
      %v2118 = vpop.permute.xlu0 %2117
      %2119 = vrot.lane.b32.xlu0 %v1646, 107
      %v2120 = vpop.permute.xlu0 %2119
      %2121 = vrot.lane.b32.xlu0 %v1647, 107
      %v2122 = vpop.permute.xlu0 %2121
      %2123 = vrot.lane.b32.xlu0 %v1648, 107
      %v2124 = vpop.permute.xlu0 %2123
      %v2125 = vsel %vm817, %v2122, %v2124
      %v2126 = vsel %vm817, %v2120, %v2122
      %v2127 = vsel %vm817, %v2118, %v2120
      %v2128 = vsel %vm817, %v2124, %v2118
      %2129 = vst [vmem:[#allocation2 + $0x3c0] sm:$0xff] %v2127
      %2130 = vst [vmem:[#allocation2 + $0x3c8] sm:$0xff] %v2126
      %2131 = vst [vmem:[#allocation2 + $0x3d0] sm:$0xff] %v2125
      %2132 = vst [vmem:[#allocation2 + $0x3d8] sm:$0xff] %v2128
      %2133 = vrot.lane.b32.xlu0 %v1645, 106
      %v2134 = vpop.permute.xlu0 %2133
      %2135 = vrot.lane.b32.xlu0 %v1646, 106
      %v2136 = vpop.permute.xlu0 %2135
      %2137 = vrot.lane.b32.xlu0 %v1647, 106
      %v2138 = vpop.permute.xlu0 %2137
      %2139 = vrot.lane.b32.xlu0 %v1648, 106
      %v2140 = vpop.permute.xlu0 %2139
      %v2141 = vsel %vm834, %v2138, %v2140
      %v2142 = vsel %vm834, %v2136, %v2138
      %v2143 = vsel %vm834, %v2134, %v2136
      %v2144 = vsel %vm834, %v2140, %v2134
      %2145 = vst [vmem:[#allocation2 + $0x3e0] sm:$0xff] %v2143
      %2146 = vst [vmem:[#allocation2 + $0x3e8] sm:$0xff] %v2142
      %2147 = vst [vmem:[#allocation2 + $0x3f0] sm:$0xff] %v2141
      %2148 = vst [vmem:[#allocation2 + $0x3f8] sm:$0xff] %v2144
      %2149 = vrot.lane.b32.xlu0 %v1645, 105
      %v2150 = vpop.permute.xlu0 %2149
      %2151 = vrot.lane.b32.xlu0 %v1646, 105
      %v2152 = vpop.permute.xlu0 %2151
      %2153 = vrot.lane.b32.xlu0 %v1647, 105
      %v2154 = vpop.permute.xlu0 %2153
      %2155 = vrot.lane.b32.xlu0 %v1648, 105
      %v2156 = vpop.permute.xlu0 %2155
      %v2157 = vsel %vm851, %v2154, %v2156
      %v2158 = vsel %vm851, %v2152, %v2154
      %v2159 = vsel %vm851, %v2150, %v2152
      %v2160 = vsel %vm851, %v2156, %v2150
      %2161 = vst [vmem:[#allocation2 + $0x400] sm:$0xff] %v2159
      %2162 = vst [vmem:[#allocation2 + $0x408] sm:$0xff] %v2158
      %2163 = vst [vmem:[#allocation2 + $0x410] sm:$0xff] %v2157
      %2164 = vst [vmem:[#allocation2 + $0x418] sm:$0xff] %v2160
      %2165 = vrot.lane.b32.xlu0 %v1645, 104
      %v2166 = vpop.permute.xlu0 %2165
      %2167 = vrot.lane.b32.xlu0 %v1646, 104
      %v2168 = vpop.permute.xlu0 %2167
      %2169 = vrot.lane.b32.xlu0 %v1647, 104
      %v2170 = vpop.permute.xlu0 %2169
      %2171 = vrot.lane.b32.xlu0 %v1648, 104
      %v2172 = vpop.permute.xlu0 %2171
      %v2173 = vsel %vm868, %v2170, %v2172
      %v2174 = vsel %vm868, %v2168, %v2170
      %v2175 = vsel %vm868, %v2166, %v2168
      %v2176 = vsel %vm868, %v2172, %v2166
      %2177 = vst [vmem:[#allocation2 + $0x420] sm:$0xff] %v2175
      %2178 = vst [vmem:[#allocation2 + $0x428] sm:$0xff] %v2174
      %2179 = vst [vmem:[#allocation2 + $0x430] sm:$0xff] %v2173
      %2180 = vst [vmem:[#allocation2 + $0x438] sm:$0xff] %v2176
      %2181 = vrot.lane.b32.xlu0 %v1645, 103
      %v2182 = vpop.permute.xlu0 %2181
      %2183 = vrot.lane.b32.xlu0 %v1646, 103
      %v2184 = vpop.permute.xlu0 %2183
      %2185 = vrot.lane.b32.xlu0 %v1647, 103
      %v2186 = vpop.permute.xlu0 %2185
      %2187 = vrot.lane.b32.xlu0 %v1648, 103
      %v2188 = vpop.permute.xlu0 %2187
      %v2189 = vsel %vm885, %v2186, %v2188
      %v2190 = vsel %vm885, %v2184, %v2186
      %v2191 = vsel %vm885, %v2182, %v2184
      %v2192 = vsel %vm885, %v2188, %v2182
      %2193 = vst [vmem:[#allocation2 + $0x440] sm:$0xff] %v2191
      %2194 = vst [vmem:[#allocation2 + $0x448] sm:$0xff] %v2190
      %2195 = vst [vmem:[#allocation2 + $0x450] sm:$0xff] %v2189
      %2196 = vst [vmem:[#allocation2 + $0x458] sm:$0xff] %v2192
      %2197 = vrot.lane.b32.xlu0 %v1645, 87
      %v2198 = vpop.permute.xlu0 %2197
      %2199 = vrot.lane.b32.xlu0 %v1646, 87
      %v2200 = vpop.permute.xlu0 %2199
      %2201 = vrot.lane.b32.xlu0 %v1647, 87
      %v2202 = vpop.permute.xlu0 %2201
      %2203 = vrot.lane.b32.xlu0 %v1648, 87
      %v2204 = vpop.permute.xlu0 %2203
      %v2205 = vsel %vm902, %v2202, %v2204
      %v2206 = vsel %vm902, %v2200, %v2202
      %v2207 = vsel %vm902, %v2198, %v2200
      %v2208 = vsel %vm902, %v2204, %v2198
      %2209 = vst [vmem:[#allocation2 + $0x460] sm:$0xff] %v2207
      %2210 = vst [vmem:[#allocation2 + $0x468] sm:$0xff] %v2206
      %2211 = vst [vmem:[#allocation2 + $0x470] sm:$0xff] %v2205
      %2212 = vst [vmem:[#allocation2 + $0x478] sm:$0xff] %v2208
      %2213 = vrot.lane.b32.xlu0 %v1645, 86
      %v2214 = vpop.permute.xlu0 %2213
      %2215 = vrot.lane.b32.xlu0 %v1646, 86
      %v2216 = vpop.permute.xlu0 %2215
      %2217 = vrot.lane.b32.xlu0 %v1647, 86
      %v2218 = vpop.permute.xlu0 %2217
      %2219 = vrot.lane.b32.xlu0 %v1648, 86
      %v2220 = vpop.permute.xlu0 %2219
      %v2221 = vsel %vm919, %v2218, %v2220
      %v2222 = vsel %vm919, %v2216, %v2218
      %v2223 = vsel %vm919, %v2214, %v2216
      %v2224 = vsel %vm919, %v2220, %v2214
      %2225 = vst [vmem:[#allocation2 + $0x480] sm:$0xff] %v2223
      %2226 = vst [vmem:[#allocation2 + $0x488] sm:$0xff] %v2222
      %2227 = vst [vmem:[#allocation2 + $0x490] sm:$0xff] %v2221
      %2228 = vst [vmem:[#allocation2 + $0x498] sm:$0xff] %v2224
      %2229 = vrot.lane.b32.xlu0 %v1645, 85
      %v2230 = vpop.permute.xlu0 %2229
      %2231 = vrot.lane.b32.xlu0 %v1646, 85
      %v2232 = vpop.permute.xlu0 %2231
      %2233 = vrot.lane.b32.xlu0 %v1647, 85
      %v2234 = vpop.permute.xlu0 %2233
      %2235 = vrot.lane.b32.xlu0 %v1648, 85
      %v2236 = vpop.permute.xlu0 %2235
      %v2237 = vsel %vm936, %v2234, %v2236
      %v2238 = vsel %vm936, %v2232, %v2234
      %v2239 = vsel %vm936, %v2230, %v2232
      %v2240 = vsel %vm936, %v2236, %v2230
      %2241 = vst [vmem:[#allocation2 + $0x4a0] sm:$0xff] %v2239
      %2242 = vst [vmem:[#allocation2 + $0x4a8] sm:$0xff] %v2238
      %2243 = vst [vmem:[#allocation2 + $0x4b0] sm:$0xff] %v2237
      %2244 = vst [vmem:[#allocation2 + $0x4b8] sm:$0xff] %v2240
      %2245 = vrot.lane.b32.xlu0 %v1645, 84
      %v2246 = vpop.permute.xlu0 %2245
      %2247 = vrot.lane.b32.xlu0 %v1646, 84
      %v2248 = vpop.permute.xlu0 %2247
      %2249 = vrot.lane.b32.xlu0 %v1647, 84
      %v2250 = vpop.permute.xlu0 %2249
      %2251 = vrot.lane.b32.xlu0 %v1648, 84
      %v2252 = vpop.permute.xlu0 %2251
      %v2253 = vsel %vm953, %v2250, %v2252
      %v2254 = vsel %vm953, %v2248, %v2250
      %v2255 = vsel %vm953, %v2246, %v2248
      %v2256 = vsel %vm953, %v2252, %v2246
      %2257 = vst [vmem:[#allocation2 + $0x4c0] sm:$0xff] %v2255
      %2258 = vst [vmem:[#allocation2 + $0x4c8] sm:$0xff] %v2254
      %2259 = vst [vmem:[#allocation2 + $0x4d0] sm:$0xff] %v2253
      %2260 = vst [vmem:[#allocation2 + $0x4d8] sm:$0xff] %v2256
      %2261 = vrot.lane.b32.xlu0 %v1645, 83
      %v2262 = vpop.permute.xlu0 %2261
      %2263 = vrot.lane.b32.xlu0 %v1646, 83
      %v2264 = vpop.permute.xlu0 %2263
      %2265 = vrot.lane.b32.xlu0 %v1647, 83
      %v2266 = vpop.permute.xlu0 %2265
      %2267 = vrot.lane.b32.xlu0 %v1648, 83
      %v2268 = vpop.permute.xlu0 %2267
      %v2269 = vsel %vm970, %v2266, %v2268
      %v2270 = vsel %vm970, %v2264, %v2266
      %v2271 = vsel %vm970, %v2262, %v2264
      %v2272 = vsel %vm970, %v2268, %v2262
      %2273 = vst [vmem:[#allocation2 + $0x4e0] sm:$0xff] %v2271
      %2274 = vst [vmem:[#allocation2 + $0x4e8] sm:$0xff] %v2270
      %2275 = vst [vmem:[#allocation2 + $0x4f0] sm:$0xff] %v2269
      %2276 = vst [vmem:[#allocation2 + $0x4f8] sm:$0xff] %v2272
      %2277 = vrot.lane.b32.xlu0 %v1645, 82
      %v2278 = vpop.permute.xlu0 %2277
      %2279 = vrot.lane.b32.xlu0 %v1646, 82
      %v2280 = vpop.permute.xlu0 %2279
      %2281 = vrot.lane.b32.xlu0 %v1647, 82
      %v2282 = vpop.permute.xlu0 %2281
      %2283 = vrot.lane.b32.xlu0 %v1648, 82
      %v2284 = vpop.permute.xlu0 %2283
      %v2285 = vsel %vm987, %v2282, %v2284
      %v2286 = vsel %vm987, %v2280, %v2282
      %v2287 = vsel %vm987, %v2278, %v2280
      %v2288 = vsel %vm987, %v2284, %v2278
      %2289 = vst [vmem:[#allocation2 + $0x500] sm:$0xff] %v2287
      %2290 = vst [vmem:[#allocation2 + $0x508] sm:$0xff] %v2286
      %2291 = vst [vmem:[#allocation2 + $0x510] sm:$0xff] %v2285
      %2292 = vst [vmem:[#allocation2 + $0x518] sm:$0xff] %v2288
      %2293 = vrot.lane.b32.xlu0 %v1645, 81
      %v2294 = vpop.permute.xlu0 %2293
      %2295 = vrot.lane.b32.xlu0 %v1646, 81
      %v2296 = vpop.permute.xlu0 %2295
      %2297 = vrot.lane.b32.xlu0 %v1647, 81
      %v2298 = vpop.permute.xlu0 %2297
      %2299 = vrot.lane.b32.xlu0 %v1648, 81
      %v2300 = vpop.permute.xlu0 %2299
      %v2301 = vsel %vm1004, %v2298, %v2300
      %v2302 = vsel %vm1004, %v2296, %v2298
      %v2303 = vsel %vm1004, %v2294, %v2296
      %v2304 = vsel %vm1004, %v2300, %v2294
      %2305 = vst [vmem:[#allocation2 + $0x520] sm:$0xff] %v2303
      %2306 = vst [vmem:[#allocation2 + $0x528] sm:$0xff] %v2302
      %2307 = vst [vmem:[#allocation2 + $0x530] sm:$0xff] %v2301
      %2308 = vst [vmem:[#allocation2 + $0x538] sm:$0xff] %v2304
      %2309 = vst [vmem:[#allocation2 + $0x540] sm:$0xff] %v1723
      %2310 = vst [vmem:[#allocation2 + $0x548] sm:$0xff] %v1722
      %2311 = vst [vmem:[#allocation2 + $0x550] sm:$0xff] %v1721
      %2312 = vst [vmem:[#allocation2 + $0x558] sm:$0xff] %v1724
      %2313 = vst [vmem:[#allocation2 + $0x560] sm:$0xff] %v1739
      %2314 = vst [vmem:[#allocation2 + $0x568] sm:$0xff] %v1738
      %2315 = vst [vmem:[#allocation2 + $0x570] sm:$0xff] %v1737
      %2316 = vst [vmem:[#allocation2 + $0x578] sm:$0xff] %v1740
      %2317 = vst [vmem:[#allocation2 + $0x580] sm:$0xff] %v1755
      %2318 = vst [vmem:[#allocation2 + $0x588] sm:$0xff] %v1754
      %2319 = vst [vmem:[#allocation2 + $0x590] sm:$0xff] %v1753
      %2320 = vst [vmem:[#allocation2 + $0x598] sm:$0xff] %v1756
      %2321 = vrot.lane.b32.xlu0 %v1645, 62
      %v2322 = vpop.permute.xlu0 %2321
      %2323 = vrot.lane.b32.xlu0 %v1646, 62
      %v2324 = vpop.permute.xlu0 %2323
      %2325 = vrot.lane.b32.xlu0 %v1647, 62
      %v2326 = vpop.permute.xlu0 %2325
      %2327 = vrot.lane.b32.xlu0 %v1648, 62
      %v2328 = vpop.permute.xlu0 %2327
      %v2329 = vsel %vm1033, %v2326, %v2328
      %v2330 = vsel %vm1033, %v2324, %v2326
      %v2331 = vsel %vm1033, %v2322, %v2324
      %v2332 = vsel %vm1033, %v2328, %v2322
      %2333 = vst [vmem:[#allocation2 + $0x5a0] sm:$0xff] %v2331
      %2334 = vst [vmem:[#allocation2 + $0x5a8] sm:$0xff] %v2330
      %2335 = vst [vmem:[#allocation2 + $0x5b0] sm:$0xff] %v2329
      %2336 = vst [vmem:[#allocation2 + $0x5b8] sm:$0xff] %v2332
      %2337 = vrot.lane.b32.xlu0 %v1645, 61
      %v2338 = vpop.permute.xlu0 %2337
      %2339 = vrot.lane.b32.xlu0 %v1646, 61
      %v2340 = vpop.permute.xlu0 %2339
      %2341 = vrot.lane.b32.xlu0 %v1647, 61
      %v2342 = vpop.permute.xlu0 %2341
      %2343 = vrot.lane.b32.xlu0 %v1648, 61
      %v2344 = vpop.permute.xlu0 %2343
      %v2345 = vsel %vm1050, %v2342, %v2344
      %v2346 = vsel %vm1050, %v2340, %v2342
      %v2347 = vsel %vm1050, %v2338, %v2340
      %v2348 = vsel %vm1050, %v2344, %v2338
      %2349 = vst [vmem:[#allocation2 + $0x5c0] sm:$0xff] %v2347
      %2350 = vst [vmem:[#allocation2 + $0x5c8] sm:$0xff] %v2346
      %2351 = vst [vmem:[#allocation2 + $0x5d0] sm:$0xff] %v2345
      %2352 = vst [vmem:[#allocation2 + $0x5d8] sm:$0xff] %v2348
      %2353 = vrot.lane.b32.xlu0 %v1645, 60
      %v2354 = vpop.permute.xlu0 %2353
      %2355 = vrot.lane.b32.xlu0 %v1646, 60
      %v2356 = vpop.permute.xlu0 %2355
      %2357 = vrot.lane.b32.xlu0 %v1647, 60
      %v2358 = vpop.permute.xlu0 %2357
      %2359 = vrot.lane.b32.xlu0 %v1648, 60
      %v2360 = vpop.permute.xlu0 %2359
      %v2361 = vsel %vm1067, %v2358, %v2360
      %v2362 = vsel %vm1067, %v2356, %v2358
      %v2363 = vsel %vm1067, %v2354, %v2356
      %v2364 = vsel %vm1067, %v2360, %v2354
      %2365 = vst [vmem:[#allocation2 + $0x5e0] sm:$0xff] %v2363
      %2366 = vst [vmem:[#allocation2 + $0x5e8] sm:$0xff] %v2362
      %2367 = vst [vmem:[#allocation2 + $0x5f0] sm:$0xff] %v2361
      %2368 = vst [vmem:[#allocation2 + $0x5f8] sm:$0xff] %v2364
      %2369 = vrot.lane.b32.xlu0 %v1645, 59
      %v2370 = vpop.permute.xlu0 %2369
      %2371 = vrot.lane.b32.xlu0 %v1646, 59
      %v2372 = vpop.permute.xlu0 %2371
      %2373 = vrot.lane.b32.xlu0 %v1647, 59
      %v2374 = vpop.permute.xlu0 %2373
      %2375 = vrot.lane.b32.xlu0 %v1648, 59
      %v2376 = vpop.permute.xlu0 %2375
      %v2377 = vsel %vm1084, %v2374, %v2376
      %v2378 = vsel %vm1084, %v2372, %v2374
      %v2379 = vsel %vm1084, %v2370, %v2372
      %v2380 = vsel %vm1084, %v2376, %v2370
      %2381 = vst [vmem:[#allocation2 + $0x600] sm:$0xff] %v2379
      %2382 = vst [vmem:[#allocation2 + $0x608] sm:$0xff] %v2378
      %2383 = vst [vmem:[#allocation2 + $0x610] sm:$0xff] %v2377
      %2384 = vst [vmem:[#allocation2 + $0x618] sm:$0xff] %v2380
      %v2385 = vld [vmem:[%s2] sm:$0xff]
      %v2386 = vld [vmem:[%s2 + $0x8] sm:$0xff]
      %v2387 = vld [vmem:[%s2 + $0x10] sm:$0xff]
      %v2388 = vld [vmem:[%s2 + $0x18] sm:$0xff]
      %v2389 = vld [vmem:[#allocation2] sm:$0xff]
      %v2390 = vld [vmem:[#allocation2 + $0x8] sm:$0xff]
      %v2391 = vld [vmem:[#allocation2 + $0x10] sm:$0xff]
      %v2392 = vld [vmem:[#allocation2 + $0x18] sm:$0xff]
      %v2393 = vld [vmem:[#allocation2 + $0x20] sm:$0xff]
      %v2394 = vld [vmem:[#allocation2 + $0x28] sm:$0xff]
      %v2395 = vld [vmem:[#allocation2 + $0x30] sm:$0xff]
      %v2396 = vld [vmem:[#allocation2 + $0x38] sm:$0xff]
      %v2397 = vld [vmem:[#allocation2 + $0x40] sm:$0xff]
      %v2398 = vld [vmem:[#allocation2 + $0x48] sm:$0xff]
      %v2399 = vld [vmem:[#allocation2 + $0x50] sm:$0xff]
      %v2400 = vld [vmem:[#allocation2 + $0x58] sm:$0xff]
      %v2401 = vld [vmem:[#allocation2 + $0x60] sm:$0xff]
      %v2402 = vld [vmem:[#allocation2 + $0x68] sm:$0xff]
      %v2403 = vld [vmem:[#allocation2 + $0x70] sm:$0xff]
      %v2404 = vld [vmem:[#allocation2 + $0x78] sm:$0xff]
      %v2405 = vld [vmem:[#allocation2 + $0x80] sm:$0xff]
      %v2406 = vld [vmem:[#allocation2 + $0x88] sm:$0xff]
      %v2407 = vld [vmem:[#allocation2 + $0x90] sm:$0xff]
      %v2408 = vld [vmem:[#allocation2 + $0x98] sm:$0xff]
      %v2409 = vld [vmem:[#allocation2 + $0xa0] sm:$0xff]
      %v2410 = vld [vmem:[#allocation2 + $0xa8] sm:$0xff]
      %v2411 = vld [vmem:[#allocation2 + $0xb0] sm:$0xff]
      %v2412 = vld [vmem:[#allocation2 + $0xb8] sm:$0xff]
      %v2413 = vld [vmem:[#allocation2 + $0xc0] sm:$0xff]
      %v2414 = vld [vmem:[#allocation2 + $0xc8] sm:$0xff]
      %v2415 = vld [vmem:[#allocation2 + $0xd0] sm:$0xff]
      %v2416 = vld [vmem:[#allocation2 + $0xd8] sm:$0xff]
      %v2417 = vld [vmem:[#allocation2 + $0xe0] sm:$0xff]
      %v2418 = vld [vmem:[#allocation2 + $0xe8] sm:$0xff]
      %v2419 = vld [vmem:[#allocation2 + $0xf0] sm:$0xff]
      %v2420 = vld [vmem:[#allocation2 + $0xf8] sm:$0xff]
      %v2421 = vld [vmem:[#allocation2 + $0x100] sm:$0xff]
      %v2422 = vld [vmem:[#allocation2 + $0x108] sm:$0xff]
      %v2423 = vld [vmem:[#allocation2 + $0x110] sm:$0xff]
      %v2424 = vld [vmem:[#allocation2 + $0x118] sm:$0xff]
      %v2425 = vld [vmem:[#allocation2 + $0x120] sm:$0xff]
      %v2426 = vld [vmem:[#allocation2 + $0x128] sm:$0xff]
      %v2427 = vld [vmem:[#allocation2 + $0x130] sm:$0xff]
      %v2428 = vld [vmem:[#allocation2 + $0x138] sm:$0xff]
      %v2429 = vld [vmem:[#allocation2 + $0x140] sm:$0xff]
      %v2430 = vld [vmem:[#allocation2 + $0x148] sm:$0xff]
      %v2431 = vld [vmem:[#allocation2 + $0x150] sm:$0xff]
      %v2432 = vld [vmem:[#allocation2 + $0x158] sm:$0xff]
      %v2433 = vld [vmem:[#allocation2 + $0x160] sm:$0xff]
      %v2434 = vld [vmem:[#allocation2 + $0x168] sm:$0xff]
      %v2435 = vld [vmem:[#allocation2 + $0x170] sm:$0xff]
      %v2436 = vld [vmem:[#allocation2 + $0x178] sm:$0xff]
      %v2437 = vld [vmem:[#allocation2 + $0x180] sm:$0xff]
      %v2438 = vld [vmem:[#allocation2 + $0x188] sm:$0xff]
      %v2439 = vld [vmem:[#allocation2 + $0x190] sm:$0xff]
      %v2440 = vld [vmem:[#allocation2 + $0x198] sm:$0xff]
      %v2441 = vld [vmem:[#allocation2 + $0x1a0] sm:$0xff]
      %v2442 = vld [vmem:[#allocation2 + $0x1a8] sm:$0xff]
      %v2443 = vld [vmem:[#allocation2 + $0x1b0] sm:$0xff]
      %v2444 = vld [vmem:[#allocation2 + $0x1b8] sm:$0xff]
      %v2445 = vld [vmem:[#allocation2 + $0x1c0] sm:$0xff]
      %v2446 = vld [vmem:[#allocation2 + $0x1c8] sm:$0xff]
      %v2447 = vld [vmem:[#allocation2 + $0x1d0] sm:$0xff]
      %v2448 = vld [vmem:[#allocation2 + $0x1d8] sm:$0xff]
      %v2449 = vld [vmem:[#allocation2 + $0x1e0] sm:$0xff]
      %v2450 = vld [vmem:[#allocation2 + $0x1e8] sm:$0xff]
      %v2451 = vld [vmem:[#allocation2 + $0x1f0] sm:$0xff]
      %v2452 = vld [vmem:[#allocation2 + $0x1f8] sm:$0xff]
      %v2453 = vld [vmem:[#allocation2 + $0x200] sm:$0xff]
      %v2454 = vld [vmem:[#allocation2 + $0x208] sm:$0xff]
      %v2455 = vld [vmem:[#allocation2 + $0x210] sm:$0xff]
      %v2456 = vld [vmem:[#allocation2 + $0x218] sm:$0xff]
      %v2457 = vld [vmem:[#allocation2 + $0x220] sm:$0xff]
      %v2458 = vld [vmem:[#allocation2 + $0x228] sm:$0xff]
      %v2459 = vld [vmem:[#allocation2 + $0x230] sm:$0xff]
      %v2460 = vld [vmem:[#allocation2 + $0x238] sm:$0xff]
      %v2461 = vld [vmem:[#allocation2 + $0x240] sm:$0xff]
      %v2462 = vld [vmem:[#allocation2 + $0x248] sm:$0xff]
      %v2463 = vld [vmem:[#allocation2 + $0x250] sm:$0xff]
      %v2464 = vld [vmem:[#allocation2 + $0x258] sm:$0xff]
      %v2465 = vld [vmem:[#allocation2 + $0x260] sm:$0xff]
      %v2466 = vld [vmem:[#allocation2 + $0x268] sm:$0xff]
      %v2467 = vld [vmem:[#allocation2 + $0x270] sm:$0xff]
      %v2468 = vld [vmem:[#allocation2 + $0x278] sm:$0xff]
      %v2469 = vld [vmem:[#allocation2 + $0x280] sm:$0xff]
      %v2470 = vld [vmem:[#allocation2 + $0x288] sm:$0xff]
      %v2471 = vld [vmem:[#allocation2 + $0x290] sm:$0xff]
      %v2472 = vld [vmem:[#allocation2 + $0x298] sm:$0xff]
      %v2473 = vld [vmem:[#allocation2 + $0x2a0] sm:$0xff]
      %v2474 = vld [vmem:[#allocation2 + $0x2a8] sm:$0xff]
      %v2475 = vld [vmem:[#allocation2 + $0x2b0] sm:$0xff]
      %v2476 = vld [vmem:[#allocation2 + $0x2b8] sm:$0xff]
      %v2477 = vld [vmem:[#allocation2 + $0x2c0] sm:$0xff]
      %v2478 = vld [vmem:[#allocation2 + $0x2c8] sm:$0xff]
      %v2479 = vld [vmem:[#allocation2 + $0x2d0] sm:$0xff]
      %v2480 = vld [vmem:[#allocation2 + $0x2d8] sm:$0xff]
      %v2481 = vld [vmem:[#allocation2 + $0x2e0] sm:$0xff]
      %v2482 = vld [vmem:[#allocation2 + $0x2e8] sm:$0xff]
      %v2483 = vld [vmem:[#allocation2 + $0x2f0] sm:$0xff]
      %v2484 = vld [vmem:[#allocation2 + $0x2f8] sm:$0xff]
      %v2485 = vld [vmem:[#allocation2 + $0x300] sm:$0xff]
      %v2486 = vld [vmem:[#allocation2 + $0x308] sm:$0xff]
      %v2487 = vld [vmem:[#allocation2 + $0x310] sm:$0xff]
      %v2488 = vld [vmem:[#allocation2 + $0x318] sm:$0xff]
      %v2489 = vld [vmem:[#allocation2 + $0x320] sm:$0xff]
      %v2490 = vld [vmem:[#allocation2 + $0x328] sm:$0xff]
      %v2491 = vld [vmem:[#allocation2 + $0x330] sm:$0xff]
      %v2492 = vld [vmem:[#allocation2 + $0x338] sm:$0xff]
      %v2493 = vld [vmem:[#allocation2 + $0x340] sm:$0xff]
      %v2494 = vld [vmem:[#allocation2 + $0x348] sm:$0xff]
      %v2495 = vld [vmem:[#allocation2 + $0x350] sm:$0xff]
      %v2496 = vld [vmem:[#allocation2 + $0x358] sm:$0xff]
      %v2497 = vld [vmem:[#allocation2 + $0x360] sm:$0xff]
      %v2498 = vld [vmem:[#allocation2 + $0x368] sm:$0xff]
      %v2499 = vld [vmem:[#allocation2 + $0x370] sm:$0xff]
      %v2500 = vld [vmem:[#allocation2 + $0x378] sm:$0xff]
      %v2501 = vld [vmem:[#allocation2 + $0x380] sm:$0xff]
      %v2502 = vld [vmem:[#allocation2 + $0x388] sm:$0xff]
      %v2503 = vld [vmem:[#allocation2 + $0x390] sm:$0xff]
      %v2504 = vld [vmem:[#allocation2 + $0x398] sm:$0xff]
      %v2505 = vld [vmem:[#allocation2 + $0x3a0] sm:$0xff]
      %v2506 = vld [vmem:[#allocation2 + $0x3a8] sm:$0xff]
      %v2507 = vld [vmem:[#allocation2 + $0x3b0] sm:$0xff]
      %v2508 = vld [vmem:[#allocation2 + $0x3b8] sm:$0xff]
      %v2509 = vld [vmem:[#allocation2 + $0x3c0] sm:$0xff]
      %v2510 = vld [vmem:[#allocation2 + $0x3c8] sm:$0xff]
      %v2511 = vld [vmem:[#allocation2 + $0x3d0] sm:$0xff]
      %v2512 = vld [vmem:[#allocation2 + $0x3d8] sm:$0xff]
      %v2513 = vld [vmem:[#allocation2 + $0x3e0] sm:$0xff]
      %v2514 = vld [vmem:[#allocation2 + $0x3e8] sm:$0xff]
      %v2515 = vld [vmem:[#allocation2 + $0x3f0] sm:$0xff]
      %v2516 = vld [vmem:[#allocation2 + $0x3f8] sm:$0xff]
      %v2517 = vld [vmem:[#allocation2 + $0x400] sm:$0xff]
      %v2518 = vld [vmem:[#allocation2 + $0x408] sm:$0xff]
      %v2519 = vld [vmem:[#allocation2 + $0x410] sm:$0xff]
      %v2520 = vld [vmem:[#allocation2 + $0x418] sm:$0xff]
      %v2521 = vld [vmem:[#allocation2 + $0x420] sm:$0xff]
      %v2522 = vld [vmem:[#allocation2 + $0x428] sm:$0xff]
      %v2523 = vld [vmem:[#allocation2 + $0x430] sm:$0xff]
      %v2524 = vld [vmem:[#allocation2 + $0x438] sm:$0xff]
      %v2525 = vld [vmem:[#allocation2 + $0x440] sm:$0xff]
      %v2526 = vld [vmem:[#allocation2 + $0x448] sm:$0xff]
      %v2527 = vld [vmem:[#allocation2 + $0x450] sm:$0xff]
      %v2528 = vld [vmem:[#allocation2 + $0x458] sm:$0xff]
      %v2529 = vld [vmem:[#allocation2 + $0x460] sm:$0xff]
      %v2530 = vld [vmem:[#allocation2 + $0x468] sm:$0xff]
      %v2531 = vld [vmem:[#allocation2 + $0x470] sm:$0xff]
      %v2532 = vld [vmem:[#allocation2 + $0x478] sm:$0xff]
      %v2533 = vld [vmem:[#allocation2 + $0x480] sm:$0xff]
      %v2534 = vld [vmem:[#allocation2 + $0x488] sm:$0xff]
      %v2535 = vld [vmem:[#allocation2 + $0x490] sm:$0xff]
      %v2536 = vld [vmem:[#allocation2 + $0x498] sm:$0xff]
      %v2537 = vld [vmem:[#allocation2 + $0x4a0] sm:$0xff]
      %v2538 = vld [vmem:[#allocation2 + $0x4a8] sm:$0xff]
      %v2539 = vld [vmem:[#allocation2 + $0x4b0] sm:$0xff]
      %v2540 = vld [vmem:[#allocation2 + $0x4b8] sm:$0xff]
      %v2541 = vld [vmem:[#allocation2 + $0x4c0] sm:$0xff]
      %v2542 = vld [vmem:[#allocation2 + $0x4c8] sm:$0xff]
      %v2543 = vld [vmem:[#allocation2 + $0x4d0] sm:$0xff]
      %v2544 = vld [vmem:[#allocation2 + $0x4d8] sm:$0xff]
      %v2545 = vld [vmem:[#allocation2 + $0x4e0] sm:$0xff]
      %v2546 = vld [vmem:[#allocation2 + $0x4e8] sm:$0xff]
      %v2547 = vld [vmem:[#allocation2 + $0x4f0] sm:$0xff]
      %v2548 = vld [vmem:[#allocation2 + $0x4f8] sm:$0xff]
      %v2549 = vld [vmem:[#allocation2 + $0x500] sm:$0xff]
      %v2550 = vld [vmem:[#allocation2 + $0x508] sm:$0xff]
      %v2551 = vld [vmem:[#allocation2 + $0x510] sm:$0xff]
      %v2552 = vld [vmem:[#allocation2 + $0x518] sm:$0xff]
      %v2553 = vld [vmem:[#allocation2 + $0x520] sm:$0xff]
      %v2554 = vld [vmem:[#allocation2 + $0x528] sm:$0xff]
      %v2555 = vld [vmem:[#allocation2 + $0x530] sm:$0xff]
      %v2556 = vld [vmem:[#allocation2 + $0x538] sm:$0xff]
      %v2557 = vld [vmem:[#allocation2 + $0x540] sm:$0xff]
      %v2558 = vld [vmem:[#allocation2 + $0x548] sm:$0xff]
      %v2559 = vld [vmem:[#allocation2 + $0x550] sm:$0xff]
      %v2560 = vld [vmem:[#allocation2 + $0x558] sm:$0xff]
      %v2561 = vld [vmem:[#allocation2 + $0x560] sm:$0xff]
      %v2562 = vld [vmem:[#allocation2 + $0x568] sm:$0xff]
      %v2563 = vld [vmem:[#allocation2 + $0x570] sm:$0xff]
      %v2564 = vld [vmem:[#allocation2 + $0x578] sm:$0xff]
      %v2565 = vld [vmem:[#allocation2 + $0x580] sm:$0xff]
      %v2566 = vld [vmem:[#allocation2 + $0x588] sm:$0xff]
      %v2567 = vld [vmem:[#allocation2 + $0x590] sm:$0xff]
      %v2568 = vld [vmem:[#allocation2 + $0x598] sm:$0xff]
      %v2569 = vld [vmem:[#allocation2 + $0x5a0] sm:$0xff]
      %v2570 = vld [vmem:[#allocation2 + $0x5a8] sm:$0xff]
      %v2571 = vld [vmem:[#allocation2 + $0x5b0] sm:$0xff]
      %v2572 = vld [vmem:[#allocation2 + $0x5b8] sm:$0xff]
      %v2573 = vld [vmem:[#allocation2 + $0x5c0] sm:$0xff]
      %v2574 = vld [vmem:[#allocation2 + $0x5c8] sm:$0xff]
      %v2575 = vld [vmem:[#allocation2 + $0x5d0] sm:$0xff]
      %v2576 = vld [vmem:[#allocation2 + $0x5d8] sm:$0xff]
      %v2577 = vld [vmem:[#allocation2 + $0x5e0] sm:$0xff]
      %v2578 = vld [vmem:[#allocation2 + $0x5e8] sm:$0xff]
      %v2579 = vld [vmem:[#allocation2 + $0x5f0] sm:$0xff]
      %v2580 = vld [vmem:[#allocation2 + $0x5f8] sm:$0xff]
      %v2581 = vld [vmem:[#allocation2 + $0x600] sm:$0xff]
      %v2582 = vld [vmem:[#allocation2 + $0x608] sm:$0xff]
      %v2583 = vld [vmem:[#allocation2 + $0x610] sm:$0xff]
      %v2584 = vld [vmem:[#allocation2 + $0x618] sm:$0xff]
      %v2586 = vsel %vm1293, %v2388, 0
      %2588 = vmatpush.msra.mxu0 %v2449
      %2589 = vmatpush.msra.mxu0 %v2445
      %2590 = vmatpush.msra.mxu0 %v2441
      %2591 = vmatpush.msra.mxu0 %v2437
      %2592 = vmatpush.msra.mxu0 %v2433
      %2593 = vmatpush.msra.mxu0 %v2429
      %2594 = vmatpush.msra.mxu0 %v2425
      %2595 = vmatpush.msra.mxu0 %v2421
      %2596 = vmatpush.msra.mxu0 %v2417
      %2597 = vmatpush.msra.mxu0 %v2413
      %2598 = vmatpush.msra.mxu0 %v2409
      %2599 = vmatpush.msra.mxu0 %v2405
      %2600 = vmatpush.msra.mxu0 %v2401
      %2601 = vmatpush.msra.mxu0 %v2397
      %2602 = vmatpush.msra.mxu0 %v2393
      %2603 = vmatpush.msra.mxu0 %v2389
      %2604 = vmatmul.f32.gmra.mxu0 %v2385
      %v2605 = vpop.f32.mrf.mxu0
      %v2606 = vadd.f32 0.0, %v2605
      %2607 = vdwg.mxu0
      %2608 = vmatpush.msra.mxu0 %v2513
      %2609 = vmatpush.msra.mxu0 %v2509
      %2610 = vmatpush.msra.mxu0 %v2505
      %2611 = vmatpush.msra.mxu0 %v2501
      %2612 = vmatpush.msra.mxu0 %v2497
      %2613 = vmatpush.msra.mxu0 %v2493
      %2614 = vmatpush.msra.mxu0 %v2489
      %2615 = vmatpush.msra.mxu0 %v2485
      %2616 = vmatpush.msra.mxu0 %v2481
      %2617 = vmatpush.msra.mxu0 %v2477
      %2618 = vmatpush.msra.mxu0 %v2473
      %2619 = vmatpush.msra.mxu0 %v2469
      %2620 = vmatpush.msra.mxu0 %v2465
      %2621 = vmatpush.msra.mxu0 %v2461
      %2622 = vmatpush.msra.mxu0 %v2457
      %2623 = vmatpush.msra.mxu0 %v2453
      %2624 = vmatmul.f32.gmra.mxu0 %v2386
      %v2625 = vpop.f32.mrf.mxu0
      %v2626 = vadd.f32 %v2606, %v2625
      %2627 = vdwg.mxu0
      %2628 = vmatpush.msra.mxu0 %v2577
      %2629 = vmatpush.msra.mxu0 %v2573
      %2630 = vmatpush.msra.mxu0 %v2569
      %2631 = vmatpush.msra.mxu0 %v2565
      %2632 = vmatpush.msra.mxu0 %v2561
      %2633 = vmatpush.msra.mxu0 %v2557
      %2634 = vmatpush.msra.mxu0 %v2553
      %2635 = vmatpush.msra.mxu0 %v2549
      %2636 = vmatpush.msra.mxu0 %v2545
      %2637 = vmatpush.msra.mxu0 %v2541
      %2638 = vmatpush.msra.mxu0 %v2537
      %2639 = vmatpush.msra.mxu0 %v2533
      %2640 = vmatpush.msra.mxu0 %v2529
      %2641 = vmatpush.msra.mxu0 %v2525
      %2642 = vmatpush.msra.mxu0 %v2521
      %2643 = vmatpush.msra.mxu0 %v2517
      %2644 = vmatmul.f32.gmra.mxu0 %v2387
      %v2645 = vpop.f32.mrf.mxu0
      %v2646 = vadd.f32 %v2626, %v2645
      %2647 = vdwg.mxu0
      %2648 = vmatpush.msra.mxu0 0.0
      %2649 = vmatpush.msra.mxu0 0.0
      %2650 = vmatpush.msra.mxu0 0.0
      %2651 = vmatpush.msra.mxu0 0.0
      %2652 = vmatpush.msra.mxu0 0.0
      %2653 = vmatpush.msra.mxu0 0.0
      %2654 = vmatpush.msra.mxu0 0.0
      %2655 = vmatpush.msra.mxu0 0.0
      %2656 = vmatpush.msra.mxu0 0.0
      %2657 = vmatpush.msra.mxu0 0.0
      %2658 = vmatpush.msra.mxu0 0.0
      %2659 = vmatpush.msra.mxu0 0.0
      %2660 = vmatpush.msra.mxu0 0.0
      %2661 = vmatpush.msra.mxu0 0.0
      %2662 = vmatpush.msra.mxu0 0.0
      %2663 = vmatpush.msra.mxu0 %v2581
      %2664 = vmatmul.f32.gmra.mxu0 %v2586
      %v2665 = vpop.f32.mrf.mxu0
      %v2666 = vadd.f32 %v2646, %v2665
      %2667 = vdwg.mxu0
      %2668 = vmatpush.msra.mxu0 %v2450
      %2669 = vmatpush.msra.mxu0 %v2446
      %2670 = vmatpush.msra.mxu0 %v2442
      %2671 = vmatpush.msra.mxu0 %v2438
      %2672 = vmatpush.msra.mxu0 %v2434
      %2673 = vmatpush.msra.mxu0 %v2430
      %2674 = vmatpush.msra.mxu0 %v2426
      %2675 = vmatpush.msra.mxu0 %v2422
      %2676 = vmatpush.msra.mxu0 %v2418
      %2677 = vmatpush.msra.mxu0 %v2414
      %2678 = vmatpush.msra.mxu0 %v2410
      %2679 = vmatpush.msra.mxu0 %v2406
      %2680 = vmatpush.msra.mxu0 %v2402
      %2681 = vmatpush.msra.mxu0 %v2398
      %2682 = vmatpush.msra.mxu0 %v2394
      %2683 = vmatpush.msra.mxu0 %v2390
      %2684 = vmatmul.f32.gmra.mxu0 %v2385
      %v2685 = vpop.f32.mrf.mxu0
      %v2686 = vadd.f32 0.0, %v2685
      %2687 = vdwg.mxu0
      %2688 = vmatpush.msra.mxu0 %v2514
      %2689 = vmatpush.msra.mxu0 %v2510
      %2690 = vmatpush.msra.mxu0 %v2506
      %2691 = vmatpush.msra.mxu0 %v2502
      %2692 = vmatpush.msra.mxu0 %v2498
      %2693 = vmatpush.msra.mxu0 %v2494
      %2694 = vmatpush.msra.mxu0 %v2490
      %2695 = vmatpush.msra.mxu0 %v2486
      %2696 = vmatpush.msra.mxu0 %v2482
      %2697 = vmatpush.msra.mxu0 %v2478
      %2698 = vmatpush.msra.mxu0 %v2474
      %2699 = vmatpush.msra.mxu0 %v2470
      %2700 = vmatpush.msra.mxu0 %v2466
      %2701 = vmatpush.msra.mxu0 %v2462
      %2702 = vmatpush.msra.mxu0 %v2458
      %2703 = vmatpush.msra.mxu0 %v2454
      %2704 = vmatmul.f32.gmra.mxu0 %v2386
      %v2705 = vpop.f32.mrf.mxu0
      %v2706 = vadd.f32 %v2686, %v2705
      %2707 = vdwg.mxu0
      %2708 = vmatpush.msra.mxu0 %v2578
      %2709 = vmatpush.msra.mxu0 %v2574
      %2710 = vmatpush.msra.mxu0 %v2570
      %2711 = vmatpush.msra.mxu0 %v2566
      %2712 = vmatpush.msra.mxu0 %v2562
      %2713 = vmatpush.msra.mxu0 %v2558
      %2714 = vmatpush.msra.mxu0 %v2554
      %2715 = vmatpush.msra.mxu0 %v2550
      %2716 = vmatpush.msra.mxu0 %v2546
      %2717 = vmatpush.msra.mxu0 %v2542
      %2718 = vmatpush.msra.mxu0 %v2538
      %2719 = vmatpush.msra.mxu0 %v2534
      %2720 = vmatpush.msra.mxu0 %v2530
      %2721 = vmatpush.msra.mxu0 %v2526
      %2722 = vmatpush.msra.mxu0 %v2522
      %2723 = vmatpush.msra.mxu0 %v2518
      %2724 = vmatmul.f32.gmra.mxu0 %v2387
      %v2725 = vpop.f32.mrf.mxu0
      %v2726 = vadd.f32 %v2706, %v2725
      %2727 = vdwg.mxu0
      %2728 = vmatpush.msra.mxu0 0.0
      %2729 = vmatpush.msra.mxu0 0.0
      %2730 = vmatpush.msra.mxu0 0.0
      %2731 = vmatpush.msra.mxu0 0.0
      %2732 = vmatpush.msra.mxu0 0.0
      %2733 = vmatpush.msra.mxu0 0.0
      %2734 = vmatpush.msra.mxu0 0.0
      %2735 = vmatpush.msra.mxu0 0.0
      %2736 = vmatpush.msra.mxu0 0.0
      %2737 = vmatpush.msra.mxu0 0.0
      %2738 = vmatpush.msra.mxu0 0.0
      %2739 = vmatpush.msra.mxu0 0.0
      %2740 = vmatpush.msra.mxu0 0.0
      %2741 = vmatpush.msra.mxu0 0.0
      %2742 = vmatpush.msra.mxu0 0.0
      %2743 = vmatpush.msra.mxu0 %v2582
      %2744 = vmatmul.f32.gmra.mxu0 %v2586
      %v2745 = vpop.f32.mrf.mxu0
      %v2746 = vadd.f32 %v2726, %v2745
      %2747 = vdwg.mxu0
      %2748 = vmatpush.msra.mxu0 %v2451
      %2749 = vmatpush.msra.mxu0 %v2447
      %2750 = vmatpush.msra.mxu0 %v2443
      %2751 = vmatpush.msra.mxu0 %v2439
      %2752 = vmatpush.msra.mxu0 %v2435
      %2753 = vmatpush.msra.mxu0 %v2431
      %2754 = vmatpush.msra.mxu0 %v2427
      %2755 = vmatpush.msra.mxu0 %v2423
      %2756 = vmatpush.msra.mxu0 %v2419
      %2757 = vmatpush.msra.mxu0 %v2415
      %2758 = vmatpush.msra.mxu0 %v2411
      %2759 = vmatpush.msra.mxu0 %v2407
      %2760 = vmatpush.msra.mxu0 %v2403
      %2761 = vmatpush.msra.mxu0 %v2399
      %2762 = vmatpush.msra.mxu0 %v2395
      %2763 = vmatpush.msra.mxu0 %v2391
      %2764 = vmatmul.f32.gmra.mxu0 %v2385
      %v2765 = vpop.f32.mrf.mxu0
      %v2766 = vadd.f32 0.0, %v2765
      %2767 = vdwg.mxu0
      %2768 = vmatpush.msra.mxu0 %v2515
      %2769 = vmatpush.msra.mxu0 %v2511
      %2770 = vmatpush.msra.mxu0 %v2507
      %2771 = vmatpush.msra.mxu0 %v2503
      %2772 = vmatpush.msra.mxu0 %v2499
      %2773 = vmatpush.msra.mxu0 %v2495
      %2774 = vmatpush.msra.mxu0 %v2491
      %2775 = vmatpush.msra.mxu0 %v2487
      %2776 = vmatpush.msra.mxu0 %v2483
      %2777 = vmatpush.msra.mxu0 %v2479
      %2778 = vmatpush.msra.mxu0 %v2475
      %2779 = vmatpush.msra.mxu0 %v2471
      %2780 = vmatpush.msra.mxu0 %v2467
      %2781 = vmatpush.msra.mxu0 %v2463
      %2782 = vmatpush.msra.mxu0 %v2459
      %2783 = vmatpush.msra.mxu0 %v2455
      %2784 = vmatmul.f32.gmra.mxu0 %v2386
      %v2785 = vpop.f32.mrf.mxu0
      %v2786 = vadd.f32 %v2766, %v2785
      %2787 = vdwg.mxu0
      %2788 = vmatpush.msra.mxu0 %v2579
      %2789 = vmatpush.msra.mxu0 %v2575
      %2790 = vmatpush.msra.mxu0 %v2571
      %2791 = vmatpush.msra.mxu0 %v2567
      %2792 = vmatpush.msra.mxu0 %v2563
      %2793 = vmatpush.msra.mxu0 %v2559
      %2794 = vmatpush.msra.mxu0 %v2555
      %2795 = vmatpush.msra.mxu0 %v2551
      %2796 = vmatpush.msra.mxu0 %v2547
      %2797 = vmatpush.msra.mxu0 %v2543
      %2798 = vmatpush.msra.mxu0 %v2539
      %2799 = vmatpush.msra.mxu0 %v2535
      %2800 = vmatpush.msra.mxu0 %v2531
      %2801 = vmatpush.msra.mxu0 %v2527
      %2802 = vmatpush.msra.mxu0 %v2523
      %2803 = vmatpush.msra.mxu0 %v2519
      %2804 = vmatmul.f32.gmra.mxu0 %v2387
      %v2805 = vpop.f32.mrf.mxu0
      %v2806 = vadd.f32 %v2786, %v2805
      %2807 = vdwg.mxu0
      %2808 = vmatpush.msra.mxu0 0.0
      %2809 = vmatpush.msra.mxu0 0.0
      %2810 = vmatpush.msra.mxu0 0.0
      %2811 = vmatpush.msra.mxu0 0.0
      %2812 = vmatpush.msra.mxu0 0.0
      %2813 = vmatpush.msra.mxu0 0.0
      %2814 = vmatpush.msra.mxu0 0.0
      %2815 = vmatpush.msra.mxu0 0.0
      %2816 = vmatpush.msra.mxu0 0.0
      %2817 = vmatpush.msra.mxu0 0.0
      %2818 = vmatpush.msra.mxu0 0.0
      %2819 = vmatpush.msra.mxu0 0.0
      %2820 = vmatpush.msra.mxu0 0.0
      %2821 = vmatpush.msra.mxu0 0.0
      %2822 = vmatpush.msra.mxu0 0.0
      %2823 = vmatpush.msra.mxu0 %v2583
      %2824 = vmatmul.f32.gmra.mxu0 %v2586
      %v2825 = vpop.f32.mrf.mxu0
      %v2826 = vadd.f32 %v2806, %v2825
      %2827 = vdwg.mxu0
      %2828 = vmatpush.msra.mxu0 %v2452
      %2829 = vmatpush.msra.mxu0 %v2448
      %2830 = vmatpush.msra.mxu0 %v2444
      %2831 = vmatpush.msra.mxu0 %v2440
      %2832 = vmatpush.msra.mxu0 %v2436
      %2833 = vmatpush.msra.mxu0 %v2432
      %2834 = vmatpush.msra.mxu0 %v2428
      %2835 = vmatpush.msra.mxu0 %v2424
      %2836 = vmatpush.msra.mxu0 %v2420
      %2837 = vmatpush.msra.mxu0 %v2416
      %2838 = vmatpush.msra.mxu0 %v2412
      %2839 = vmatpush.msra.mxu0 %v2408
      %2840 = vmatpush.msra.mxu0 %v2404
      %2841 = vmatpush.msra.mxu0 %v2400
      %2842 = vmatpush.msra.mxu0 %v2396
      %2843 = vmatpush.msra.mxu0 %v2392
      %2844 = vmatmul.f32.gmra.mxu0 %v2385
      %v2845 = vpop.f32.mrf.mxu0
      %v2846 = vadd.f32 0.0, %v2845
      %2847 = vdwg.mxu0
      %2848 = vmatpush.msra.mxu0 %v2516
      %2849 = vmatpush.msra.mxu0 %v2512
      %2850 = vmatpush.msra.mxu0 %v2508
      %2851 = vmatpush.msra.mxu0 %v2504
      %2852 = vmatpush.msra.mxu0 %v2500
      %2853 = vmatpush.msra.mxu0 %v2496
      %2854 = vmatpush.msra.mxu0 %v2492
      %2855 = vmatpush.msra.mxu0 %v2488
      %2856 = vmatpush.msra.mxu0 %v2484
      %2857 = vmatpush.msra.mxu0 %v2480
      %2858 = vmatpush.msra.mxu0 %v2476
      %2859 = vmatpush.msra.mxu0 %v2472
      %2860 = vmatpush.msra.mxu0 %v2468
      %2861 = vmatpush.msra.mxu0 %v2464
      %2862 = vmatpush.msra.mxu0 %v2460
      %2863 = vmatpush.msra.mxu0 %v2456
      %2864 = vmatmul.f32.gmra.mxu0 %v2386
      %v2865 = vpop.f32.mrf.mxu0
      %v2866 = vadd.f32 %v2846, %v2865
      %2867 = vdwg.mxu0
      %2868 = vmatpush.msra.mxu0 %v2580
      %2869 = vmatpush.msra.mxu0 %v2576
      %2870 = vmatpush.msra.mxu0 %v2572
      %2871 = vmatpush.msra.mxu0 %v2568
      %2872 = vmatpush.msra.mxu0 %v2564
      %2873 = vmatpush.msra.mxu0 %v2560
      %2874 = vmatpush.msra.mxu0 %v2556
      %2875 = vmatpush.msra.mxu0 %v2552
      %2876 = vmatpush.msra.mxu0 %v2548
      %2877 = vmatpush.msra.mxu0 %v2544
      %2878 = vmatpush.msra.mxu0 %v2540
      %2879 = vmatpush.msra.mxu0 %v2536
      %2880 = vmatpush.msra.mxu0 %v2532
      %2881 = vmatpush.msra.mxu0 %v2528
      %2882 = vmatpush.msra.mxu0 %v2524
      %2883 = vmatpush.msra.mxu0 %v2520
      %2884 = vmatmul.f32.gmra.mxu0 %v2387
      %v2885 = vpop.f32.mrf.mxu0
      %v2886 = vadd.f32 %v2866, %v2885
      %2887 = vdwg.mxu0
      %2888 = vmatpush.msra.mxu0 0.0
      %2889 = vmatpush.msra.mxu0 0.0
      %2890 = vmatpush.msra.mxu0 0.0
      %2891 = vmatpush.msra.mxu0 0.0
      %2892 = vmatpush.msra.mxu0 0.0
      %2893 = vmatpush.msra.mxu0 0.0
      %2894 = vmatpush.msra.mxu0 0.0
      %2895 = vmatpush.msra.mxu0 0.0
      %2896 = vmatpush.msra.mxu0 0.0
      %2897 = vmatpush.msra.mxu0 0.0
      %2898 = vmatpush.msra.mxu0 0.0
      %2899 = vmatpush.msra.mxu0 0.0
      %2900 = vmatpush.msra.mxu0 0.0
      %2901 = vmatpush.msra.mxu0 0.0
      %2902 = vmatpush.msra.mxu0 0.0
      %2903 = vmatpush.msra.mxu0 %v2584
      %2904 = vmatmul.f32.gmra.mxu0 %v2586
      %v2905 = vpop.f32.mrf.mxu0
      %v2906 = vadd.f32 %v2886, %v2905
      %2907 = vdwg.mxu0
      %v2908 = vld [vmem:[%s5] sm:$0xff]
      %2910 = vset.pattern.permute.xlu0 0
      %2911 = vperm.xlu0 %2910, %v2908
      %v2912 = vpop.permute.xlu0 %2911
      %v2914 = vmul.f32 %v2666, %v2912
      %v2915 = vmul.f32 %v2746, %v2912
      %v2916 = vmul.f32 %v2826, %v2912
      %v2917 = vmul.f32 %v2906, %v2912
      %v2918 = vld [vmem:[%s6] sm:$0xff]
      %2920 = vset.pattern.permute.xlu0 0
      %2921 = vperm.xlu0 %2920, %v2918
      %v2922 = vpop.permute.xlu0 %2921
      %v2924 = vadd.f32 %v2914, %v2922
      %v2925 = vadd.f32 %v2915, %v2922
      %v2926 = vadd.f32 %v2916, %v2922
      %v2927 = vadd.f32 %v2917, %v2922
      %v2928 = vxor.u32 %v2924, 2147483648
      %v2929 = vxor.u32 %v2925, 2147483648
      %v2930 = vxor.u32 %v2926, 2147483648
      %v2931 = vxor.u32 %v2927, 2147483648
      %v2932 = vmul.f32 %v2928, 1.442695
      %v2933 = vpow.pop %v2932
      %v2934 = vmul.f32 %v2929, 1.442695
      %v2935 = vpow.pop %v2934
      %v2936 = vmul.f32 %v2930, 1.442695
      %v2937 = vpow.pop %v2936
      %v2938 = vmul.f32 %v2931, 1.442695
      %v2939 = vpow.pop %v2938
      %v2940 = vadd.f32 %v2933, 1.0
      %v2941 = vadd.f32 %v2935, 1.0
      %v2942 = vadd.f32 %v2937, 1.0
      %v2943 = vadd.f32 %v2939, 1.0
      %v2944 = vrcp.pop %v2940
      %v2945 = vmul.f32 %v2940, %v2944
      %v2946 = vsub.f32 1.0, %v2945
      %v2947 = vmul.f32 %v2944, %v2946
      %v2948 = vadd.f32 %v2944, %v2947
      %vm2949 = vweird.f32 %v2940
      %vm2950 = vweird.f32 %v2944
      %vm2951 = vmor %vm2949, %vm2950
      %v2952 = vsel %vm2951, %v2944, %v2948
      %v2953 = vand.u32 2147483647, %v2940
      %vm2954 = vcmp.eq.f32.partialorder %v2953, 8.507059e+37
      %v2955 = vand.u32 %v2940, 2147483648
      %v2956 = vor.u32 1.1754944e-38, %v2955
      %v2957 = vsel %vm2954, %v2956, %v2952
      %v2958 = vmul.f32 1.0, %v2957
      %v2959 = vrcp.pop %v2941
      %v2960 = vmul.f32 %v2941, %v2959
      %v2961 = vsub.f32 1.0, %v2960
      %v2962 = vmul.f32 %v2959, %v2961
      %v2963 = vadd.f32 %v2959, %v2962
      %vm2964 = vweird.f32 %v2941
      %vm2965 = vweird.f32 %v2959
      %vm2966 = vmor %vm2964, %vm2965
      %v2967 = vsel %vm2966, %v2959, %v2963
      %v2968 = vand.u32 2147483647, %v2941
      %vm2969 = vcmp.eq.f32.partialorder %v2968, 8.507059e+37
      %v2970 = vand.u32 %v2941, 2147483648
      %v2971 = vor.u32 1.1754944e-38, %v2970
      %v2972 = vsel %vm2969, %v2971, %v2967
      %v2973 = vmul.f32 1.0, %v2972
      %v2974 = vrcp.pop %v2942
      %v2975 = vmul.f32 %v2942, %v2974
      %v2976 = vsub.f32 1.0, %v2975
      %v2977 = vmul.f32 %v2974, %v2976
      %v2978 = vadd.f32 %v2974, %v2977
      %vm2979 = vweird.f32 %v2942
      %vm2980 = vweird.f32 %v2974
      %vm2981 = vmor %vm2979, %vm2980
      %v2982 = vsel %vm2981, %v2974, %v2978
      %v2983 = vand.u32 2147483647, %v2942
      %vm2984 = vcmp.eq.f32.partialorder %v2983, 8.507059e+37
      %v2985 = vand.u32 %v2942, 2147483648
      %v2986 = vor.u32 1.1754944e-38, %v2985
      %v2987 = vsel %vm2984, %v2986, %v2982
      %v2988 = vmul.f32 1.0, %v2987
      %v2989 = vrcp.pop %v2943
      %v2990 = vmul.f32 %v2943, %v2989
      %v2991 = vsub.f32 1.0, %v2990
      %v2992 = vmul.f32 %v2989, %v2991
      %v2993 = vadd.f32 %v2989, %v2992
      %vm2994 = vweird.f32 %v2943
      %vm2995 = vweird.f32 %v2989
      %vm2996 = vmor %vm2994, %vm2995
      %v2997 = vsel %vm2996, %v2989, %v2993
      %v2998 = vand.u32 2147483647, %v2943
      %vm2999 = vcmp.eq.f32.partialorder %v2998, 8.507059e+37
      %v3000 = vand.u32 %v2943, 2147483648
      %v3001 = vor.u32 1.1754944e-38, %v3000
      %v3002 = vsel %vm2999, %v3001, %v2997
      %v3003 = vmul.f32 1.0, %v3002
      %v3004 = vmul.f32 %v306, %v2958
      %v3005 = vmul.f32 %v307, %v2973
      %v3006 = vmul.f32 %v308, %v2988
      %v3007 = vmul.f32 %v309, %v3003
      %3008 = vst [vmem:[%s305] sm:$0xff] %v3004
      %3009 = vst [vmem:[%s305 + $0x8] sm:$0xff] %v3005
      %3010 = vst [vmem:[%s305 + $0x10] sm:$0xff] %v3006
      %3011 = vst [vmem:[%s305 + $0x18] sm:$0xff] %v3007
      %p3012 = scmp.lt.s32.totalorder %s19, 1
      %s3013 = scalar_select %p3012, %s19, 1
      %s3014 = smul.addr %s3013, 4
      %s3015 = smul.addr %s3014, 8
      %s3016 = scalar_lea.vmem %s8, %s3015
      // Predicated region
      $region53: #{spa_cnn_forward.1} parent=51 // pred_check
        %p3017 = pneg %p210
      $region54: #{spa_cnn_forward.1} parent=51 // pred_check_branch
        %3019 = sbr.rel (%p3017) target = $region56
      $region55: #{spa_cnn_forward.1} parent=51 // pred_region
        _
      $region56: #{spa_cnn_forward.1} parent=51 // pred_fallthru
        _
    $region52: #{spa_cnn_forward.1} parent=5 // pred_fallthru
      _
    %p3020 = scmp.le.s32.totalorder 2, %s14
    // Predicated region
    $region57: #{spa_cnn_forward.1} parent=5 // pred_check
      %p3021 = pneg %p3020
    $region58: #{spa_cnn_forward.1} parent=5 // pred_check_branch
      %3023 = sbr.rel (%p3021) target = $region60
    $region59: #{spa_cnn_forward.1} parent=5 // pred_region
      %s3024 = ssub.s32 %s14, 2
      // Predicated region
      $region61: #{spa_cnn_forward.1} parent=59 // pred_check
        %p3025 = pneg %p216
      $region62: #{spa_cnn_forward.1} parent=59 // pred_check_branch
        %3027 = sbr.rel (%p3025) target = $region64
      $region63: #{spa_cnn_forward.1} parent=59 // pred_region
        %p3028 = scmp.lt.s32.totalorder %s20, 1
        %s3029 = scalar_select %p3028, %s20, 1
        %s3030 = smul.addr %s3029, 4
        %s3031 = smul.addr %s3030, 8
        %s3032 = scalar_lea.vmem %s8, %s3031
      $region64: #{spa_cnn_forward.1} parent=59 // pred_fallthru
        _
    $region60: #{spa_cnn_forward.1} parent=5 // pred_fallthru
      _
  $region6: #{spa_cnn_forward.1} parent=0 // loop_footer
    %s18 = sadd.s32 1, %s14
  $region7: #{spa_cnn_forward.1} parent=0 // loop_footer_branch
    %13 = sbr.rel target = $region3
  $region8: #{spa_cnn_forward.1} parent=0 // loop_exit
    _

</llo_original>
